<compile_context>
chip_gen: v7x
topology: tpu7x:2x2x1
jax: 0.10.0
libtpu: 0.0.40
codegen_flags: <defaults>
</compile_context>

<pallas_src>
import functools
import math

import jax
import jax.numpy as jnp
import numpy as np
from jax.experimental import pallas as pl
from jax.experimental.pallas import tpu as pltpu


def _dmon_kernel(m_ref, dinv_r_ref, d_ref, xws_ref, xwt_ref, bg_ref, wf_ref, bf_ref,
                 s_ref, t_ref, loss_ref,
                 ss_acc, cb_acc, cs_acc, dsum_acc,
                 *, num_clusters, num_nodes):
    f32 = jnp.float32
    bf16 = jnp.bfloat16

    i = pl.program_id(0)
    nt = pl.num_programs(0)
    tn = m_ref.shape[0]           # rows of A^T in this tile
    n_pad = m_ref.shape[1]        # padded node count
    cp = s_ref.shape[1]           # padded cluster lane width (128)
    c = num_clusters
    sqrt_c = math.sqrt(float(c))  # ||I_C||_F

    # ---- init resident outputs / accumulators on the first tile ----------------
    @pl.when(i == 0)
    def _init():
        t_ref[...] = jnp.zeros_like(t_ref)
        loss_ref[...] = jnp.zeros_like(loss_ref)
        ss_acc[...] = jnp.zeros_like(ss_acc)
        cb_acc[...] = jnp.zeros_like(cb_acc)
        cs_acc[...] = jnp.zeros_like(cs_acc)
        dsum_acc[...] = jnp.zeros_like(dsum_acc)

    m_tile = m_ref[...]                                   # (TN, N_pad) bf16 rows of A^T
    adj_t = (m_tile != 0).astype(bf16)                    # binary loss adjacency tile

    # ---- GCNConv with gcn_norm folded into xw_s = dinv * (x @ Wg) ---------------
    #   h[t] = relu( dinv[t] * ( sum_s A[s,t]*xw_s[s] + xw_s[t] ) + bg )
    prop = jnp.dot(m_tile, xws_ref[...], preferred_element_type=f32)
    h = jnp.maximum(
        dinv_r_ref[...] * (prop + xwt_ref[...].astype(f32)) + bg_ref[...], 0.0)

    # ---- fused DMoN MLP (Linear->Linear, act=None, eval dropout) + softmax ------
    # TODO(synk): dropout (p=0.5) is treated as eval/identity (no deterministic
    # Pallas equivalent of the PyTorch RNG stream).
    logits = (jnp.dot(h.astype(bf16), wf_ref[...], preferred_element_type=f32)
              + bf_ref[...])                               # padded lanes biased to -1e30
    logits = logits - jnp.max(logits, axis=-1, keepdims=True)
    e = jnp.exp(logits)
    s = e * pl.reciprocal(jnp.sum(e, axis=-1, keepdims=True), approx=True)

    if num_nodes != n_pad:                                 # static: zero padded-node rows
        row_ids = i * tn + jax.lax.broadcasted_iota(jnp.int32, (tn, 1), 0)
        s = jnp.where(row_ids < num_nodes, s, 0.0)

    s_b = s.astype(bf16)
    s_ref[...] = s_b                                       # lane-dense bf16 store

    # ---- accumulate DMoN loss reductions ----------------------------------------
    d_r = d_ref[...]                                       # (TN, 1) binary out-degrees
    t_ref[...] += jax.lax.dot_general(                     # T = S^T Adj^T      (CP, N_pad)
        s_b, adj_t, (((0,), (0,)), ((), ())), preferred_element_type=f32)
    ss_acc[...] += jax.lax.dot_general(                    # S^T S              (CP, CP)
        s, s, (((0,), (0,)), ((), ())), preferred_element_type=f32)
    cb_acc[...] += jnp.sum(d_r * s, axis=0, keepdims=True)  # d^T S             (1, CP)
    cs_acc[...] += jnp.sum(s, axis=0, keepdims=True)         # colsum(S)        (1, CP)
    dsum_acc[...] += jnp.sum(d_r, keepdims=True)              # sum(d) = 2m     (1, 1)

    # ---- finalize the closed-form loss pieces on the last tile ------------------
    @pl.when(i == nt - 1)
    def _finalize():
        rr = jax.lax.broadcasted_iota(jnp.int32, (cp, cp), 0)
        cc = jax.lax.broadcasted_iota(jnp.int32, (cp, cp), 1)
        eye_c = jnp.logical_and(rr == cc, rr < c).astype(f32)

        two_m = dsum_acc[...]                              # (1, 1)

        ssv = ss_acc[...]                                  # orthogonality loss
        ss_fro = jnp.sqrt(jnp.sum(ssv * ssv, keepdims=True))
        diff = ssv / ss_fro - eye_c * (1.0 / sqrt_c)
        ortho = jnp.sqrt(jnp.sum(diff * diff, keepdims=True))

        csv = cs_acc[...]                                  # cluster-size loss
        cluster_l = (jnp.sqrt(jnp.sum(csv * csv, keepdims=True))
                     * (sqrt_c / float(num_nodes)) - 1.0)

        cbv = cb_acc[...]                                  # ||d^T S||^2 / 2m
        tr_norm = jnp.sum(cbv * cbv, keepdims=True) / two_m

        lane = jax.lax.broadcasted_iota(jnp.int32, (1, loss_ref.shape[1]), 1)
        loss_ref[...] = (ortho * (lane == 0).astype(f32)
                         + cluster_l * (lane == 1).astype(f32)
                         + tr_norm * (lane == 2).astype(f32)
                         + two_m * (lane == 3).astype(f32))


def _choose_tile(n, requested=None):
    """Row tile (>=128, multiple of 128) and padded node count."""
    if requested is not None and requested >= 128 and requested % 128 == 0:
        tn = int(requested)
    else:
        tn = 256 if n >= 256 else 128
    n_pad = ((max(n, tn) + tn - 1) // tn) * tn
    return tn, n_pad


def dmon_forward(x, edge_index, edge_weight, params, tile_n=None):
    """Pallas implementation of DMON.forward (layer=1, eval mode).

    Returns (cluster (1, N, C) f32, total_loss scalar f32)."""
    x = x.astype(jnp.float32)
    N, F = x.shape
    wg, bg, w1, b1, w2, b2 = params
    H = wg.shape[1]
    C = w2.shape[1]
    CP = 128                                      # lane-dense padded cluster width

    TN, N_pad = _choose_tile(N, tile_n)

    row, col = edge_index[0], edge_index[1]
    w_e = edge_weight.astype(jnp.float32)

    # ---- O(E)/O(N) glue: one N^2 scatter, everything else vectors / tiny matmuls
    # M = A^T (weighted, no self loops), scattered directly in bf16.
    m_adj = (jnp.zeros((N_pad, N_pad), jnp.bfloat16)
             .at[col, row].add(w_e.astype(jnp.bfloat16)))
    # gcn_norm degrees with self-loop weight 1: deg[t] = 1 + sum_{s->t} w(s,t)
    deg = jnp.ones((N_pad,), jnp.float32).at[col].add(w_e)
    dinv = jnp.where(deg > 0, jax.lax.rsqrt(deg), 0.0)
    # binary out-degrees (= to_dense_adj(edge_index).sum(-1)); assumes no duplicate edges
    d_out = jnp.zeros((N_pad,), jnp.float32).at[row].add(jnp.ones_like(w_e))

    # dinv folded into the resident GCN operand: xw_s = dinv * (x @ Wg)   (bf16)
    xw = jnp.zeros((N_pad, H), jnp.float32).at[:N, :].set(x @ wg)
    xw_s = (dinv[:, None] * xw).astype(jnp.bfloat16)

    # fused MLP head padded to 128 lanes: Wf = W1 @ W2_pad, bf = b1 @ W2_pad + b2_pad.
    # Padded logits get a -1e30 bias so their softmax mass is exactly zero.
    w2p = jnp.zeros((H, CP), jnp.float32).at[:, :C].set(w2.astype(jnp.float32))
    b2p = jnp.full((1, CP), -1e30, jnp.float32).at[:, :C].set(b2.astype(jnp.float32))
    wf = (w1.astype(jnp.float32) @ w2p).astype(jnp.bfloat16)
    bf = b1.astype(jnp.float32) @ w2p + b2p

    dinv_r = dinv.reshape(N_pad, 1)
    d_r = d_out.reshape(N_pad, 1)

    grid = (N_pad // TN,)
    kernel = functools.partial(_dmon_kernel, num_clusters=C, num_nodes=N)

    # VMEM budget from actual buffer sizes (double-buffered tiled blocks, resident
    # blocks, resident output accumulators, scratch) with 2x headroom.
    vmem_need = (
        2 * (TN * N_pad * 2 + 2 * TN * 4 + TN * H * 2 + TN * CP * 2)   # per-tile blocks
        + 2 * (N_pad * H * 2 + H * 4 + H * CP * 2 + CP * 4)            # resident inputs
        + 2 * (CP * N_pad * 4 + 128 * 4)                               # resident outputs
        + CP * CP * 4 + 2 * CP * 4 + 4)                                # scratch
    vmem_limit = int(min(100 * 2**20, max(32 * 2**20, 2 * vmem_need)))

    s_pad, t_out, losses = pl.pallas_call(
        kernel,
        out_shape=(jax.ShapeDtypeStruct((N_pad, CP), jnp.bfloat16),   # S (lane padded)
                   jax.ShapeDtypeStruct((CP, N_pad), jnp.float32),    # T = S^T Adj^T
                   jax.ShapeDtypeStruct((1, 128), jnp.float32)),      # loss pieces
        grid=grid,
        in_specs=[
            pl.BlockSpec((TN, N_pad), lambda i: (i, 0)),   # A^T row tile (bf16 stream)
            pl.BlockSpec((TN, 1), lambda i: (i, 0)),       # dinv rows
            pl.BlockSpec((TN, 1), lambda i: (i, 0)),       # binary out-degrees
            pl.BlockSpec((N_pad, H), lambda i: (0, 0)),    # dinv*(x@Wg), resident
            pl.BlockSpec((TN, H), lambda i: (i, 0)),       # dinv*(x@Wg), this row tile
            pl.BlockSpec((1, H), lambda i: (0, 0)),        # GCN bias
            pl.BlockSpec((H, CP), lambda i: (0, 0)),       # fused MLP weight
            pl.BlockSpec((1, CP), lambda i: (0, 0)),       # fused MLP bias (pad -1e30)
        ],
        out_specs=(
            pl.BlockSpec((TN, CP), lambda i: (i, 0)),
            pl.BlockSpec((CP, N_pad), lambda i: (0, 0)),   # output-resident accumulator
            pl.BlockSpec((1, 128), lambda i: (0, 0)),
        ),
        scratch_shapes=[
            pltpu.VMEM((CP, CP), jnp.float32),   # S^T S
            pltpu.VMEM((1, CP), jnp.float32),    # d^T S
            pltpu.VMEM((1, CP), jnp.float32),    # colsum(S)
            pltpu.VMEM((1, 1), jnp.float32),     # sum(d) = 2m
        ],
        compiler_params=pltpu.CompilerParams(
            # Reductions carried across row tiles -> sequential grid axis.
            # TODO(synk): v7x dual-TC split (per-core partials + combine) not done.
            dimension_semantics=("arbitrary",),
            vmem_limit_bytes=vmem_limit),
    )(m_adj, dinv_r, d_r, xw_s, xw_s, bg.astype(jnp.float32), wf, bf)

    # Tiny O(N*C) epilogue: trace + spectral assembly from kernel-exported pieces.
    s_f = s_pad.astype(jnp.float32)
    cluster = s_f[None, :N, :C]
    trace = jnp.einsum('cn,nc->', t_out, s_f,
                       precision=jax.lax.Precision.HIGHEST)   # tr(S^T Adj S)
    ortho, cluster_l, tr_norm, two_m = (losses[0, 0], losses[0, 1],
                                        losses[0, 2], losses[0, 3])
    spectral = -(trace - tr_norm) / two_m
    return cluster, spectral + ortho + cluster_l


def dmon_reference(x, edge_index, edge_weight, params):
    """Pure-JAX f32 reference mirroring the PyTorch-Geometric math (eval mode)."""
    x = x.astype(jnp.float32)
    N = x.shape[0]
    row, col = edge_index[0], edge_index[1]
    a = jnp.zeros((N, N), jnp.float32).at[row, col].add(edge_weight.astype(jnp.float32))
    a_sl = a + jnp.eye(N)
    deg = a_sl.sum(0)
    dinv = jnp.where(deg > 0, deg ** -0.5, 0.0)
    p = (dinv[:, None] * a_sl * dinv[None, :]).T
    adj = jnp.zeros((N, N), jnp.float32).at[row, col].add(1.0)

    wg, bg, w1, b1, w2, b2 = params
    h = jax.nn.relu(p @ (x @ wg) + bg)
    logits = (h @ w1 + b1) @ w2 + b2
    s = jax.nn.softmax(logits, axis=-1)
    C = s.shape[1]

    out_adj = s.T @ adj @ s
    d = adj.sum(1)
    m = d.sum() / 2.0
    ca = s.T @ d[:, None]
    cb = d[None, :] @ s
    normalizer = (ca @ cb) / 2.0 / m
    spectral = -jnp.trace(out_adj - normalizer) / 2.0 / m

    ss = s.T @ s
    i_s = jnp.eye(C)
    ortho = jnp.linalg.norm(ss / jnp.linalg.norm(ss) - i_s / jnp.linalg.norm(i_s))

    csz = s.sum(0)
    cluster_loss = jnp.linalg.norm(csz) / N * jnp.linalg.norm(i_s) - 1.0
    return s[None], spectral + ortho + cluster_loss


if __name__ == "__main__":
    key = jax.random.PRNGKey(0)
    # N deliberately not a multiple of the 256 default tile -> exercises padding,
    # row masking, and cross-tile accumulation (grid of 2).
    N, F, H, C = 384, 16, 64, 16
    ks = jax.random.split(key, 8)

    x = jax.random.normal(ks[0], (N, F), jnp.float32)

    # Undirected graph: ring edges (i, i+1) plus chords (i, i+7), both directions,
    # shared (positive) weights, no self loops, no duplicate edges.
    src = jnp.arange(N, dtype=jnp.int32)
    dst1 = (src + 1) % N
    dst2 = (src + 7) % N
    e_src = jnp.concatenate([src, src])
    e_dst = jnp.concatenate([dst1, dst2])
    edge_index = jnp.stack([jnp.concatenate([e_src, e_dst]),
                            jnp.concatenate([e_dst, e_src])])
    w_half = jax.random.uniform(ks[1], (2 * N,), jnp.float32, minval=0.5, maxval=1.5)
    edge_weight = jnp.concatenate([w_half, w_half])

    # Deterministic synthetic parameters (GCNConv lin + bias, DMoN MLP = 2 Linear).
    params = (
        0.2 * jax.random.normal(ks[2], (F, H), jnp.float32),   # GCN weight
        0.1 * jax.random.normal(ks[3], (1, H), jnp.float32),   # GCN bias
        0.2 * jax.random.normal(ks[4], (H, H), jnp.float32),   # MLP Linear 1
        0.1 * jax.random.normal(ks[5], (1, H), jnp.float32),
        0.2 * jax.random.normal(ks[6], (H, C), jnp.float32),   # MLP Linear 2 -> k
        0.1 * jax.random.normal(ks[7], (1, C), jnp.float32),
    )

    cluster, loss = dmon_forward(x, edge_index, edge_weight, params)
    jax.block_until_ready((cluster, loss))

    cluster_ref, loss_ref_val = dmon_reference(x, edge_index, edge_weight, params)
    # bf16 matmul operands / bf16 S with f32 accumulation -> bf16-level tolerance.
    np.testing.assert_allclose(np.asarray(cluster), np.asarray(cluster_ref),
                               rtol=2e-2, atol=2e-2)
    np.testing.assert_allclose(np.asarray(loss), np.asarray(loss_ref_val),
                               rtol=2e-2, atol=2e-2)

    print("KERNEL_OK")
</pallas_src>

<mosaic_0001>
module attributes {stable_mosaic.version = 11 : i64} {
  func.func @_dmon_kernel(%arg0: i32, %arg1: memref<256x512xbf16, #tpu.memory_space<vmem>>, %arg2: memref<256x1xf32, #tpu.memory_space<vmem>>, %arg3: memref<256x1xf32, #tpu.memory_space<vmem>>, %arg4: memref<512x64xbf16, #tpu.memory_space<vmem>>, %arg5: memref<256x64xbf16, #tpu.memory_space<vmem>>, %arg6: memref<1x64xf32, #tpu.memory_space<vmem>>, %arg7: memref<64x128xbf16, #tpu.memory_space<vmem>>, %arg8: memref<1x128xf32, #tpu.memory_space<vmem>>, %arg9: memref<256x128xbf16, #tpu.memory_space<vmem>>, %arg10: memref<128x512xf32, #tpu.memory_space<vmem>>, %arg11: memref<1x128xf32, #tpu.memory_space<vmem>>, %arg12: memref<128x128xf32, #tpu.memory_space<vmem>>, %arg13: memref<1x128xf32, #tpu.memory_space<vmem>>, %arg14: memref<1x128xf32, #tpu.memory_space<vmem>>, %arg15: memref<1x1xf32, #tpu.memory_space<vmem>>) attributes {dimension_semantics = [#tpu.dimension_semantics<arbitrary>], iteration_bounds = array<i64: 2>, scalar_prefetch = 0 : i64, scratch_operands = 4 : i64, tpu.core_type = #tpu.core_type<tc>, window_params = [{transform_indices = @transform_0, window_bounds = array<i64: 256, 512>}, {transform_indices = @transform_1, window_bounds = array<i64: 256, 1>}, {transform_indices = @transform_2, window_bounds = array<i64: 256, 1>}, {pipeline_mode = #tpu.pipeline_mode<synchronous>, transform_indices = @transform_3, window_bounds = array<i64: 512, 64>}, {transform_indices = @transform_4, window_bounds = array<i64: 256, 64>}, {pipeline_mode = #tpu.pipeline_mode<synchronous>, transform_indices = @transform_5, window_bounds = array<i64: 1, 64>}, {pipeline_mode = #tpu.pipeline_mode<synchronous>, transform_indices = @transform_6, window_bounds = array<i64: 64, 128>}, {pipeline_mode = #tpu.pipeline_mode<synchronous>, transform_indices = @transform_7, window_bounds = array<i64: 1, 128>}, {transform_indices = @transform_8, window_bounds = array<i64: 256, 128>}, {pipeline_mode = #tpu.pipeline_mode<synchronous>, transform_indices = @transform_9, window_bounds = array<i64: 128, 512>}, {pipeline_mode = #tpu.pipeline_mode<synchronous>, transform_indices = @transform_10, window_bounds = array<i64: 1, 128>}]} {
    %c0_i32 = arith.constant 0 : i32
    %0 = arith.cmpi eq, %arg0, %c0_i32 : i32
    %1 = arith.extui %0 : i1 to i32
    %c0_i32_0 = arith.constant 0 : i32
    %2 = arith.cmpi ne, %1, %c0_i32_0 : i32
    scf.if %2 {
      %cst_50 = arith.constant 0.000000e+00 : f32
      %82 = vector.broadcast %cst_50 : f32 to vector<128x512xf32>
      %c0_51 = arith.constant 0 : index
      %c0_52 = arith.constant 0 : index
      %83 = vector.load %arg10[%c0_51, %c0_52] : memref<128x512xf32, #tpu.memory_space<vmem>>, vector<128x512xf32>
      tpu.vector_store %arg10[%c0_51, %c0_52], %82 {strides = array<i32>} : memref<128x512xf32, #tpu.memory_space<vmem>>, vector<128x512xf32>,
      %cst_53 = arith.constant 0.000000e+00 : f32
      %84 = vector.broadcast %cst_53 : f32 to vector<1x128xf32>
      %c0_54 = arith.constant 0 : index
      %c0_55 = arith.constant 0 : index
      %85 = vector.load %arg11[%c0_54, %c0_55] : memref<1x128xf32, #tpu.memory_space<vmem>>, vector<1x128xf32>
      tpu.vector_store %arg11[%c0_54, %c0_55], %84 {strides = array<i32>} : memref<1x128xf32, #tpu.memory_space<vmem>>, vector<1x128xf32>,
      %cst_56 = arith.constant 0.000000e+00 : f32
      %86 = vector.broadcast %cst_56 : f32 to vector<128x128xf32>
      %c0_57 = arith.constant 0 : index
      %c0_58 = arith.constant 0 : index
      %87 = vector.load %arg12[%c0_57, %c0_58] : memref<128x128xf32, #tpu.memory_space<vmem>>, vector<128x128xf32>
      tpu.vector_store %arg12[%c0_57, %c0_58], %86 {strides = array<i32>} : memref<128x128xf32, #tpu.memory_space<vmem>>, vector<128x128xf32>,
      %cst_59 = arith.constant 0.000000e+00 : f32
      %88 = vector.broadcast %cst_59 : f32 to vector<1x128xf32>
      %c0_60 = arith.constant 0 : index
      %c0_61 = arith.constant 0 : index
      %89 = vector.load %arg13[%c0_60, %c0_61] : memref<1x128xf32, #tpu.memory_space<vmem>>, vector<1x128xf32>
      tpu.vector_store %arg13[%c0_60, %c0_61], %88 {strides = array<i32>} : memref<1x128xf32, #tpu.memory_space<vmem>>, vector<1x128xf32>,
      %cst_62 = arith.constant 0.000000e+00 : f32
      %90 = vector.broadcast %cst_62 : f32 to vector<1x128xf32>
      %c0_63 = arith.constant 0 : index
      %c0_64 = arith.constant 0 : index
      %91 = vector.load %arg14[%c0_63, %c0_64] : memref<1x128xf32, #tpu.memory_space<vmem>>, vector<1x128xf32>
      tpu.vector_store %arg14[%c0_63, %c0_64], %90 {strides = array<i32>} : memref<1x128xf32, #tpu.memory_space<vmem>>, vector<1x128xf32>,
      %cst_65 = arith.constant 0.000000e+00 : f32
      %92 = vector.broadcast %cst_65 : f32 to vector<1x1xf32>
      %c0_66 = arith.constant 0 : index
      %c0_67 = arith.constant 0 : index
      %93 = vector.load %arg15[%c0_66, %c0_67] : memref<1x1xf32, #tpu.memory_space<vmem>>, vector<1x1xf32>
      tpu.vector_store %arg15[%c0_66, %c0_67], %92 {strides = array<i32>} : memref<1x1xf32, #tpu.memory_space<vmem>>, vector<1x1xf32>,
    } else {
    }
    %c0 = arith.constant 0 : index
    %c0_1 = arith.constant 0 : index
    %3 = vector.load %arg1[%c0, %c0_1] : memref<256x512xbf16, #tpu.memory_space<vmem>>, vector<256x512xbf16>
    %cst = arith.constant 0.000000e+00 : bf16
    %4 = vector.broadcast %cst : bf16 to vector<256x512xbf16>
    %5 = arith.cmpf one, %3, %4 : vector<256x512xbf16>
    %6 = arith.extui %5 : vector<256x512xi1> to vector<256x512xi32>
    %7 = arith.sitofp %6 : vector<256x512xi32> to vector<256x512xf32>
    %8 = arith.truncf %7 : vector<256x512xf32> to vector<256x512xbf16>
    %c0_2 = arith.constant 0 : index
    %c0_3 = arith.constant 0 : index
    %9 = vector.load %arg4[%c0_2, %c0_3] : memref<512x64xbf16, #tpu.memory_space<vmem>>, vector<512x64xbf16>
    %cst_4 = arith.constant dense<0.000000e+00> : vector<256x64xf32>
    %10 = tpu.matmul %3, %9, %cst_4 {dimension_numbers = #tpu.dot_dimension_numbers<[1], [0], [0], [1], [0, 0, 1, 1], [], []>} : vector<256x512xbf16>, vector<512x64xbf16>, vector<256x64xf32> -> vector<256x64xf32>
    %c0_5 = arith.constant 0 : index
    %c0_6 = arith.constant 0 : index
    %11 = vector.load %arg2[%c0_5, %c0_6] : memref<256x1xf32, #tpu.memory_space<vmem>>, vector<256x1xf32>
    %c0_7 = arith.constant 0 : index
    %c0_8 = arith.constant 0 : index
    %12 = vector.load %arg5[%c0_7, %c0_8] : memref<256x64xbf16, #tpu.memory_space<vmem>>, vector<256x64xbf16>
    %13 = arith.extf %12 : vector<256x64xbf16> to vector<256x64xf32>
    %14 = arith.addf %10, %13 : vector<256x64xf32>
    %15 = vector.broadcast %11 : vector<256x1xf32> to vector<256x64xf32>
    %16 = arith.mulf %15, %14 : vector<256x64xf32>
    %c0_9 = arith.constant 0 : index
    %c0_10 = arith.constant 0 : index
    %17 = vector.load %arg6[%c0_9, %c0_10] : memref<1x64xf32, #tpu.memory_space<vmem>>, vector<1x64xf32>
    %18 = vector.broadcast %17 : vector<1x64xf32> to vector<256x64xf32>
    %19 = arith.addf %16, %18 : vector<256x64xf32>
    %cst_11 = arith.constant 0.000000e+00 : f32
    %20 = vector.broadcast %cst_11 : f32 to vector<256x64xf32>
    %21 = arith.maximumf %19, %20 : vector<256x64xf32>
    %22 = arith.truncf %21 : vector<256x64xf32> to vector<256x64xbf16>
    %c0_12 = arith.constant 0 : index
    %c0_13 = arith.constant 0 : index
    %23 = vector.load %arg7[%c0_12, %c0_13] : memref<64x128xbf16, #tpu.memory_space<vmem>>, vector<64x128xbf16>
    %cst_14 = arith.constant dense<0.000000e+00> : vector<256x128xf32>
    %24 = tpu.matmul %22, %23, %cst_14 {dimension_numbers = #tpu.dot_dimension_numbers<[1], [0], [0], [1], [0, 0, 1, 1], [], []>} : vector<256x64xbf16>, vector<64x128xbf16>, vector<256x128xf32> -> vector<256x128xf32>
    %c0_15 = arith.constant 0 : index
    %c0_16 = arith.constant 0 : index
    %25 = vector.load %arg8[%c0_15, %c0_16] : memref<1x128xf32, #tpu.memory_space<vmem>>, vector<1x128xf32>
    %26 = vector.broadcast %25 : vector<1x128xf32> to vector<256x128xf32>
    %27 = arith.addf %24, %26 : vector<256x128xf32>
    %cst_17 = arith.constant dense<0xFF800000> : vector<256xf32>
    %28 = vector.multi_reduction <maximumf>, %27, %cst_17 [1] : vector<256x128xf32> to vector<256xf32>
    %29 = vector.shape_cast %28 : vector<256xf32> to vector<256x1xf32>
    %30 = vector.broadcast %29 : vector<256x1xf32> to vector<256x128xf32>
    %31 = arith.subf %27, %30 : vector<256x128xf32>
    %32 = math.exp %31 : vector<256x128xf32>
    %cst_18 = arith.constant dense<0.000000e+00> : vector<256xf32>
    %33 = vector.multi_reduction <add>, %32, %cst_18 [1] : vector<256x128xf32> to vector<256xf32>
    %34 = vector.shape_cast %33 : vector<256xf32> to vector<256x1xf32>
    %35 = tpu.reciprocal %34 {approx = true} : vector<256x1xf32> -> vector<256x1xf32>
    %36 = vector.broadcast %35 : vector<256x1xf32> to vector<256x128xf32>
    %37 = arith.mulf %32, %36 : vector<256x128xf32>
    %c256_i32 = arith.constant 256 : i32
    %38 = arith.muli %arg0, %c256_i32 : i32
    %39 = tpu.iota {dimensions = array<i32: 0>} : vector<256x1xi32>
    %40 = vector.broadcast %38 : i32 to vector<256x1xi32>
    %41 = arith.addi %40, %39 : vector<256x1xi32>
    %c384_i32 = arith.constant 384 : i32
    %42 = vector.broadcast %c384_i32 : i32 to vector<256x1xi32>
    %43 = arith.cmpi slt, %41, %42 : vector<256x1xi32>
    %cst_19 = arith.constant 0.000000e+00 : f32
    %44 = vector.shape_cast %43 : vector<256x1xi1> to vector<256x1xi1>
    %45 = vector.broadcast %44 : vector<256x1xi1> to vector<256x128xi1>
    %46 = vector.broadcast %cst_19 : f32 to vector<256x128xf32>
    %47 = arith.select %45, %37, %46 : vector<256x128xi1>, vector<256x128xf32>
    %48 = arith.truncf %47 : vector<256x128xf32> to vector<256x128xbf16>
    %c0_20 = arith.constant 0 : index
    %c0_21 = arith.constant 0 : index
    %49 = vector.load %arg9[%c0_20, %c0_21] : memref<256x128xbf16, #tpu.memory_space<vmem>>, vector<256x128xbf16>
    tpu.vector_store %arg9[%c0_20, %c0_21], %48 {strides = array<i32>} : memref<256x128xbf16, #tpu.memory_space<vmem>>, vector<256x128xbf16>,
    %c0_22 = arith.constant 0 : index
    %c0_23 = arith.constant 0 : index
    %50 = vector.load %arg3[%c0_22, %c0_23] : memref<256x1xf32, #tpu.memory_space<vmem>>, vector<256x1xf32>
    %c0_24 = arith.constant 0 : index
    %c0_25 = arith.constant 0 : index
    %51 = vector.load %arg10[%c0_24, %c0_25] : memref<128x512xf32, #tpu.memory_space<vmem>>, vector<128x512xf32>
    %cst_26 = arith.constant dense<0.000000e+00> : vector<128x512xf32>
    %52 = tpu.matmul %48, %8, %cst_26 {dimension_numbers = #tpu.dot_dimension_numbers<[0], [0], [1], [1], [0, 1, 1, 1], [], []>} : vector<256x128xbf16>, vector<256x512xbf16>, vector<128x512xf32> -> vector<128x512xf32>
    %53 = arith.addf %51, %52 : vector<128x512xf32>
    %c0_27 = arith.constant 0 : index
    %c0_28 = arith.constant 0 : index
    %54 = vector.load %arg10[%c0_27, %c0_28] : memref<128x512xf32, #tpu.memory_space<vmem>>, vector<128x512xf32>
    tpu.vector_store %arg10[%c0_27, %c0_28], %53 {strides = array<i32>} : memref<128x512xf32, #tpu.memory_space<vmem>>, vector<128x512xf32>,
    %c0_29 = arith.constant 0 : index
    %c0_30 = arith.constant 0 : index
    %55 = vector.load %arg12[%c0_29, %c0_30] : memref<128x128xf32, #tpu.memory_space<vmem>>, vector<128x128xf32>
    %cst_31 = arith.constant dense<0.000000e+00> : vector<128x128xf32>
    %56 = tpu.matmul %47, %47, %cst_31 {dimension_numbers = #tpu.dot_dimension_numbers<[0], [0], [1], [1], [0, 1, 1, 1], [], []>} : vector<256x128xf32>, vector<256x128xf32>, vector<128x128xf32> -> vector<128x128xf32>
    %57 = arith.addf %55, %56 : vector<128x128xf32>
    %c0_32 = arith.constant 0 : index
    %c0_33 = arith.constant 0 : index
    %58 = vector.load %arg12[%c0_32, %c0_33] : memref<128x128xf32, #tpu.memory_space<vmem>>, vector<128x128xf32>
    tpu.vector_store %arg12[%c0_32, %c0_33], %57 {strides = array<i32>} : memref<128x128xf32, #tpu.memory_space<vmem>>, vector<128x128xf32>,
    %c0_34 = arith.constant 0 : index
    %c0_35 = arith.constant 0 : index
    %59 = vector.load %arg13[%c0_34, %c0_35] : memref<1x128xf32, #tpu.memory_space<vmem>>, vector<1x128xf32>
    %60 = vector.broadcast %50 : vector<256x1xf32> to vector<256x128xf32>
    %61 = arith.mulf %60, %47 : vector<256x128xf32>
    %cst_36 = arith.constant dense<0.000000e+00> : vector<128xf32>
    %62 = vector.multi_reduction <add>, %61, %cst_36 [0] : vector<256x128xf32> to vector<128xf32>
    %63 = vector.shape_cast %62 : vector<128xf32> to vector<1x128xf32>
    %64 = arith.addf %59, %63 : vector<1x128xf32>
    %c0_37 = arith.constant 0 : index
    %c0_38 = arith.constant 0 : index
    %65 = vector.load %arg13[%c0_37, %c0_38] : memref<1x128xf32, #tpu.memory_space<vmem>>, vector<1x128xf32>
    tpu.vector_store %arg13[%c0_37, %c0_38], %64 {strides = array<i32>} : memref<1x128xf32, #tpu.memory_space<vmem>>, vector<1x128xf32>,
    %c0_39 = arith.constant 0 : index
    %c0_40 = arith.constant 0 : index
    %66 = vector.load %arg14[%c0_39, %c0_40] : memref<1x128xf32, #tpu.memory_space<vmem>>, vector<1x128xf32>
    %cst_41 = arith.constant dense<0.000000e+00> : vector<128xf32>
    %67 = vector.multi_reduction <add>, %47, %cst_41 [0] : vector<256x128xf32> to vector<128xf32>
    %68 = vector.shape_cast %67 : vector<128xf32> to vector<1x128xf32>
    %69 = arith.addf %66, %68 : vector<1x128xf32>
    %c0_42 = arith.constant 0 : index
    %c0_43 = arith.constant 0 : index
    %70 = vector.load %arg14[%c0_42, %c0_43] : memref<1x128xf32, #tpu.memory_space<vmem>>, vector<1x128xf32>
    tpu.vector_store %arg14[%c0_42, %c0_43], %69 {strides = array<i32>} : memref<1x128xf32, #tpu.memory_space<vmem>>, vector<1x128xf32>,
    %c0_44 = arith.constant 0 : index
    %c0_45 = arith.constant 0 : index
    %71 = vector.load %arg15[%c0_44, %c0_45] : memref<1x1xf32, #tpu.memory_space<vmem>>, vector<1x1xf32>
    %72 = vector.shape_cast %50 : vector<256x1xf32> to vector<1x256x1xf32>
    %cst_46 = arith.constant dense<0.000000e+00> : vector<1xf32>
    %73 = vector.multi_reduction <add>, %72, %cst_46 [1, 2] : vector<1x256x1xf32> to vector<1xf32>
    %74 = vector.shape_cast %73 : vector<1xf32> to vector<1x1x1xf32>
    %75 = vector.extract %74[0, 0, 0] : f32 from vector<1x1x1xf32>
    %76 = vector.broadcast %75 : f32 to vector<1x1xf32>
    %77 = arith.addf %71, %76 : vector<1x1xf32>
    %c0_47 = arith.constant 0 : index
    %c0_48 = arith.constant 0 : index
    %78 = vector.load %arg15[%c0_47, %c0_48] : memref<1x1xf32, #tpu.memory_space<vmem>>, vector<1x1xf32>
    tpu.vector_store %arg15[%c0_47, %c0_48], %77 {strides = array<i32>} : memref<1x1xf32, #tpu.memory_space<vmem>>, vector<1x1xf32>,
    %c1_i32 = arith.constant 1 : i32
    %79 = arith.cmpi eq, %arg0, %c1_i32 : i32
    %80 = arith.extui %79 : i1 to i32
    %c0_i32_49 = arith.constant 0 : i32
    %81 = arith.cmpi ne, %80, %c0_i32_49 : i32
    scf.if %81 {
      %82 = tpu.iota {dimensions = array<i32: 0>} : vector<128x128xi32>
      %83 = tpu.iota {dimensions = array<i32: 1>} : vector<128x128xi32>
      %84 = arith.cmpi eq, %82, %83 : vector<128x128xi32>
      %c16_i32 = arith.constant 16 : i32
      %85 = vector.broadcast %c16_i32 : i32 to vector<128x128xi32>
      %86 = arith.cmpi slt, %82, %85 : vector<128x128xi32>
      %87 = arith.andi %84, %86 : vector<128x128xi1>
      %88 = arith.extui %87 : vector<128x128xi1> to vector<128x128xi32>
      %89 = arith.sitofp %88 : vector<128x128xi32> to vector<128x128xf32>
      %c0_50 = arith.constant 0 : index
      %c0_51 = arith.constant 0 : index
      %90 = vector.load %arg15[%c0_50, %c0_51] : memref<1x1xf32, #tpu.memory_space<vmem>>, vector<1x1xf32>
      %c0_52 = arith.constant 0 : index
      %c0_53 = arith.constant 0 : index
      %91 = vector.load %arg12[%c0_52, %c0_53] : memref<128x128xf32, #tpu.memory_space<vmem>>, vector<128x128xf32>
      %92 = arith.mulf %91, %91 : vector<128x128xf32>
      %93 = vector.shape_cast %92 : vector<128x128xf32> to vector<1x128x128xf32>
      %cst_54 = arith.constant dense<0.000000e+00> : vector<1xf32>
      %94 = vector.multi_reduction <add>, %93, %cst_54 [1, 2] : vector<1x128x128xf32> to vector<1xf32>
      %95 = vector.shape_cast %94 : vector<1xf32> to vector<1x1x1xf32>
      %96 = vector.extract %95[0, 0, 0] : f32 from vector<1x1x1xf32>
      %97 = vector.broadcast %96 : f32 to vector<1x1xf32>
      %98 = math.sqrt %97 : vector<1x1xf32>
      %99 = vector.broadcast %98 : vector<1x1xf32> to vector<128x128xf32>
      %100 = arith.divf %91, %99 : vector<128x128xf32>
      %cst_55 = arith.constant 2.500000e-01 : f32
      %101 = vector.broadcast %cst_55 : f32 to vector<128x128xf32>
      %102 = arith.mulf %89, %101 : vector<128x128xf32>
      %103 = arith.subf %100, %102 : vector<128x128xf32>
      %104 = arith.mulf %103, %103 : vector<128x128xf32>
      %105 = vector.shape_cast %104 : vector<128x128xf32> to vector<1x128x128xf32>
      %cst_56 = arith.constant dense<0.000000e+00> : vector<1xf32>
      %106 = vector.multi_reduction <add>, %105, %cst_56 [1, 2] : vector<1x128x128xf32> to vector<1xf32>
      %107 = vector.shape_cast %106 : vector<1xf32> to vector<1x1x1xf32>
      %108 = vector.extract %107[0, 0, 0] : f32 from vector<1x1x1xf32>
      %109 = vector.broadcast %108 : f32 to vector<1x1xf32>
      %110 = math.sqrt %109 : vector<1x1xf32>
      %c0_57 = arith.constant 0 : index
      %c0_58 = arith.constant 0 : index
      %111 = vector.load %arg14[%c0_57, %c0_58] : memref<1x128xf32, #tpu.memory_space<vmem>>, vector<1x128xf32>
      %112 = arith.mulf %111, %111 : vector<1x128xf32>
      %113 = vector.shape_cast %112 : vector<1x128xf32> to vector<1x1x128xf32>
      %cst_59 = arith.constant dense<0.000000e+00> : vector<1xf32>
      %114 = vector.multi_reduction <add>, %113, %cst_59 [1, 2] : vector<1x1x128xf32> to vector<1xf32>
      %115 = vector.shape_cast %114 : vector<1xf32> to vector<1x1x1xf32>
      %116 = vector.extract %115[0, 0, 0] : f32 from vector<1x1x1xf32>
      %117 = vector.broadcast %116 : f32 to vector<1x1xf32>
      %118 = math.sqrt %117 : vector<1x1xf32>
      %cst_60 = arith.constant 0.010416667 : f32
      %119 = vector.broadcast %cst_60 : f32 to vector<1x1xf32>
      %120 = arith.mulf %118, %119 : vector<1x1xf32>
      %cst_61 = arith.constant 1.000000e+00 : f32
      %121 = vector.broadcast %cst_61 : f32 to vector<1x1xf32>
      %122 = arith.subf %120, %121 : vector<1x1xf32>
      %c0_62 = arith.constant 0 : index
      %c0_63 = arith.constant 0 : index
      %123 = vector.load %arg13[%c0_62, %c0_63] : memref<1x128xf32, #tpu.memory_space<vmem>>, vector<1x128xf32>
      %124 = arith.mulf %123, %123 : vector<1x128xf32>
      %125 = vector.shape_cast %124 : vector<1x128xf32> to vector<1x1x128xf32>
      %cst_64 = arith.constant dense<0.000000e+00> : vector<1xf32>
      %126 = vector.multi_reduction <add>, %125, %cst_64 [1, 2] : vector<1x1x128xf32> to vector<1xf32>
      %127 = vector.shape_cast %126 : vector<1xf32> to vector<1x1x1xf32>
      %128 = vector.extract %127[0, 0, 0] : f32 from vector<1x1x1xf32>
      %129 = vector.broadcast %128 : f32 to vector<1x1xf32>
      %130 = arith.divf %129, %90 : vector<1x1xf32>
      %131 = tpu.iota {dimensions = array<i32: 1>} : vector<1x128xi32>
      %c0_i32_65 = arith.constant 0 : i32
      %132 = vector.broadcast %c0_i32_65 : i32 to vector<1x128xi32>
      %133 = arith.cmpi eq, %131, %132 : vector<1x128xi32>
      %134 = arith.extui %133 : vector<1x128xi1> to vector<1x128xi32>
      %135 = arith.sitofp %134 : vector<1x128xi32> to vector<1x128xf32>
      %136 = vector.broadcast %110 : vector<1x1xf32> to vector<1x128xf32>
      %137 = arith.mulf %136, %135 : vector<1x128xf32>
      %c1_i32_66 = arith.constant 1 : i32
      %138 = vector.broadcast %c1_i32_66 : i32 to vector<1x128xi32>
      %139 = arith.cmpi eq, %131, %138 : vector<1x128xi32>
      %140 = arith.extui %139 : vector<1x128xi1> to vector<1x128xi32>
      %141 = arith.sitofp %140 : vector<1x128xi32> to vector<1x128xf32>
      %142 = vector.broadcast %122 : vector<1x1xf32> to vector<1x128xf32>
      %143 = arith.mulf %142, %141 : vector<1x128xf32>
      %144 = arith.addf %137, %143 : vector<1x128xf32>
      %c2_i32 = arith.constant 2 : i32
      %145 = vector.broadcast %c2_i32 : i32 to vector<1x128xi32>
      %146 = arith.cmpi eq, %131, %145 : vector<1x128xi32>
      %147 = arith.extui %146 : vector<1x128xi1> to vector<1x128xi32>
      %148 = arith.sitofp %147 : vector<1x128xi32> to vector<1x128xf32>
      %149 = vector.broadcast %130 : vector<1x1xf32> to vector<1x128xf32>
      %150 = arith.mulf %149, %148 : vector<1x128xf32>
      %151 = arith.addf %144, %150 : vector<1x128xf32>
      %c3_i32 = arith.constant 3 : i32
      %152 = vector.broadcast %c3_i32 : i32 to vector<1x128xi32>
      %153 = arith.cmpi eq, %131, %152 : vector<1x128xi32>
      %154 = arith.extui %153 : vector<1x128xi1> to vector<1x128xi32>
      %155 = arith.sitofp %154 : vector<1x128xi32> to vector<1x128xf32>
      %156 = vector.broadcast %90 : vector<1x1xf32> to vector<1x128xf32>
      %157 = arith.mulf %156, %155 : vector<1x128xf32>
      %158 = arith.addf %151, %157 : vector<1x128xf32>
      %c0_67 = arith.constant 0 : index
      %c0_68 = arith.constant 0 : index
      %159 = vector.load %arg11[%c0_67, %c0_68] : memref<1x128xf32, #tpu.memory_space<vmem>>, vector<1x128xf32>
      tpu.vector_store %arg11[%c0_67, %c0_68], %158 {strides = array<i32>} : memref<1x128xf32, #tpu.memory_space<vmem>>, vector<1x128xf32>,
    } else {
    }
    return
  }
  func.func @transform_0(%arg0: i32) -> (i32, i32) {
    %c0_i32 = arith.constant 0 : i32
    %c0_i32_0 = arith.constant 0 : i32
    return %arg0, %c0_i32 : i32, i32
  }
  func.func @transform_1(%arg0: i32) -> (i32, i32) {
    %c0_i32 = arith.constant 0 : i32
    %c0_i32_0 = arith.constant 0 : i32
    return %arg0, %c0_i32 : i32, i32
  }
  func.func @transform_2(%arg0: i32) -> (i32, i32) {
    %c0_i32 = arith.constant 0 : i32
    %c0_i32_0 = arith.constant 0 : i32
    return %arg0, %c0_i32 : i32, i32
  }
  func.func @transform_3(%arg0: i32) -> (i32, i32) {
    %c0_i32 = arith.constant 0 : i32
    %c0_i32_0 = arith.constant 0 : i32
    %c0_i32_1 = arith.constant 0 : i32
    return %c0_i32, %c0_i32_0 : i32, i32
  }
  func.func @transform_4(%arg0: i32) -> (i32, i32) {
    %c0_i32 = arith.constant 0 : i32
    %c0_i32_0 = arith.constant 0 : i32
    return %arg0, %c0_i32 : i32, i32
  }
  func.func @transform_5(%arg0: i32) -> (i32, i32) {
    %c0_i32 = arith.constant 0 : i32
    %c0_i32_0 = arith.constant 0 : i32
    %c0_i32_1 = arith.constant 0 : i32
    return %c0_i32, %c0_i32_0 : i32, i32
  }
  func.func @transform_6(%arg0: i32) -> (i32, i32) {
    %c0_i32 = arith.constant 0 : i32
    %c0_i32_0 = arith.constant 0 : i32
    %c0_i32_1 = arith.constant 0 : i32
    return %c0_i32, %c0_i32_0 : i32, i32
  }
  func.func @transform_7(%arg0: i32) -> (i32, i32) {
    %c0_i32 = arith.constant 0 : i32
    %c0_i32_0 = arith.constant 0 : i32
    %c0_i32_1 = arith.constant 0 : i32
    return %c0_i32, %c0_i32_0 : i32, i32
  }
  func.func @transform_8(%arg0: i32) -> (i32, i32) {
    %c0_i32 = arith.constant 0 : i32
    %c0_i32_0 = arith.constant 0 : i32
    return %arg0, %c0_i32 : i32, i32
  }
  func.func @transform_9(%arg0: i32) -> (i32, i32) {
    %c0_i32 = arith.constant 0 : i32
    %c0_i32_0 = arith.constant 0 : i32
    %c0_i32_1 = arith.constant 0 : i32
    return %c0_i32, %c0_i32_0 : i32, i32
  }
  func.func @transform_10(%arg0: i32) -> (i32, i32) {
    %c0_i32 = arith.constant 0 : i32
    %c0_i32_0 = arith.constant 0 : i32
    %c0_i32_1 = arith.constant 0 : i32
    return %c0_i32, %c0_i32_0 : i32, i32
  }
}

</mosaic_0001>

<llo_original>
// kernel: tpu_custom_call.1
$region0: #{tpu_custom_call.1}
  #allocation0 [shape = 'u32[]', space=smem, size = 0x4, offset = 0x4, fixed_abs, tag = 'smem constant byte address 0x4 - core index']
  #allocation1 [shape = 'u32[144,128]{1,0:T(1,128)}', space=vmem, size = 0x12000, scoped, tag = 'internal scratch']
  #allocation2 [shape = 'f32[128,128]{1,0:T(8,128)}', space=vmem, size = 0x10000, scoped, tag = 'scratch operand']
  #allocation3 [shape = 'f32[1,128]{1,0:T(1,128)}', space=vmem, size = 0x200, scoped, tag = 'scratch operand']
  #allocation4 [shape = 'f32[1,128]{1,0:T(1,128)}', space=vmem, size = 0x200, scoped, tag = 'scratch operand']
  #allocation5 [shape = 'f32[1,1]{1,0:T(1,128)}', space=vmem, size = 0x200, scoped, tag = 'scratch operand']
  %s0 = inlined_call_operand.vmem [shape: bf16[512,512], index: 0, kind: input, shape index: {}]
  %s1 = inlined_call_operand.vmem [shape: f32[512,1], index: 1, kind: input, shape index: {}]
  %s2 = inlined_call_operand.vmem [shape: f32[512,1], index: 2, kind: input, shape index: {}]
  %s3 = inlined_call_operand.vmem [shape: bf16[512,64], index: 3, kind: input, shape index: {}]
  %s4 = inlined_call_operand.vmem [shape: bf16[512,64], index: 4, kind: input, shape index: {}]
  %s5 = inlined_call_operand.vmem [shape: f32[1,64], index: 5, kind: input, shape index: {}]
  %s6 = inlined_call_operand.vmem [shape: bf16[64,128], index: 6, kind: input, shape index: {}]
  %s7 = inlined_call_operand.vmem [shape: f32[1,128], index: 7, kind: input, shape index: {}]
  %s8 = inlined_call_operand.hbm [shape: bf16[512,128], index: 8, kind: output, shape index: {0}]
  %s9 = inlined_call_operand.hbm [shape: f32[128,512], index: 9, kind: output, shape index: {1}]
  %s10 = inlined_call_operand.hbm [shape: f32[1,128], index: 10, kind: output, shape index: {2}]
  %11 = xla_tuple %s8, %s9, %s10
  %s12 = sld [smem:[#allocation0]]
  $region89: #{tpu_custom_call.1} parent=0
    _
  %s14 = ssub.s32 1, %s12
  %s15 = scalar_select 0, %s14, %s12
  $region1: #{tpu_custom_call.1} parent=0
    #allocation6 [shape = 'u8[131072]{0}', space=vmem, size = 0x20000, scoped, tag = 'output window, operand 0']
    #allocation7 [shape = 's32[2]{0}', space=sflag, size = 0x8, scoped, tag = 'scoped memory for tpu_custom_call.1']
    #allocation8 [shape = 'u8[262144]{0}', space=vmem, size = 0x40000, scoped, tag = 'output window, operand 1, single buffered']
    #allocation9 [shape = 's32[1]{0}', space=sflag, size = 0x4, scoped, tag = 'scoped memory for tpu_custom_call.1']
    #allocation10 [shape = 'u8[512]{0}', space=vmem, size = 0x400, scoped, tag = 'output window, operand 2, single buffered']
    %16 = vsyncpa [#allocation7], 0
    %s17 = scalar_lea.sflag [#allocation7], 1
    %18 = vsyncpa %s17, 0
    %19 = vsyncpa [#allocation9], 0
    loop: start=0, step=1, limit=4
    $region2: #{tpu_custom_call.1} parent=1 // loop_pre_header
      _
    $region3: #{tpu_custom_call.1} parent=1 // loop_header
      %s21 = sphi 0, %s25
      %p22 = scmp.ge.s32.totalorder %s21, 4
      %s31 = sphi 0, %s33
      %s34 = sphi 0, %s31
      %s35 = sphi 0, %s34
      %s51 = sphi 0, %s35
      %s57 = sphi 0, %s59
      %s60 = sphi 0, %s57
      %s61 = sphi 0, %s60
      %s77 = sphi 0, %s61
      %s83 = sphi 0, %s85
      %s86 = sphi 0, %s83
      %s87 = sphi 0, %s86
      %s103 = sphi 0, %s87
      %s107 = sphi 0, %s107
      %s109 = sphi 0, %s107
      %s110 = sphi 0, %s109
      %s124 = sphi 0, %s110
      %s130 = sphi 0, %s132
      %s133 = sphi 0, %s130
      %s134 = sphi 0, %s133
      %s150 = sphi 0, %s134
      %s154 = sphi 0, %s154
      %s156 = sphi 0, %s154
      %s157 = sphi 0, %s156
      %s171 = sphi 0, %s157
      %s175 = sphi 0, %s175
      %s177 = sphi 0, %s175
      %s178 = sphi 0, %s177
      %s192 = sphi 0, %s178
      %s196 = sphi 0, %s196
      %s198 = sphi 0, %s196
      %s199 = sphi 0, %s198
      %s213 = sphi 0, %s199
      %s219 = sphi 0, %s221
      %s222 = sphi 0, %s219
      %s223 = sphi 0, %s222
      %s239 = sphi 0, %s223
      %s243 = sphi 0, %s243
      %s245 = sphi 0, %s243
      %s246 = sphi 0, %s245
      %s260 = sphi 0, %s246
      %s264 = sphi 0, %s264
      %s266 = sphi 0, %s264
      %s267 = sphi 0, %s266
      %s281 = sphi 0, %s267
    $region4: #{tpu_custom_call.1} parent=1 // loop_header_branch
      %24 = sbr.rel (%p22) target = $region8
    $region5: #{tpu_custom_call.1} parent=1 // loop_body
      %s26 = ssub.s32 %s21, 1
      %s27 = ssub.s32 %s21, 2
      %s28 = sadd.s32 %s21, 1
      %s29 = ssub.s32 %s21, %s28
      %p30 = scmp.eq.s32.totalorder %s29, 0
      %s32 = sadd.s32 %s31, 1
      %s33 = scalar_select %p30, %s31, %s32
      %p36 = pneg %p30
      %p37 = scmp.eq.s32.totalorder %s21, 1
      %p38 = por %p36, %p37
      %p39 = scmp.ne.s32.totalorder %s31, %s34
      %p40 = scmp.eq.s32.totalorder %s21, 0
      %p41 = por %p39, %p40
      %p42 = scmp.ne.s32.totalorder %s31, %s34
      %p43 = scmp.eq.s32.totalorder %s26, 1
      %p44 = por %p42, %p43
      %p45 = scmp.ne.s32.totalorder %s34, %s35
      %p46 = scmp.eq.s32.totalorder %s26, 0
      %p47 = por %p45, %p46
      %p48 = scmp.ne.s32.totalorder %s34, %s35
      %p49 = scmp.eq.s32.totalorder %s27, 1
      %p50 = por %p48, %p49
      %p52 = scmp.ne.s32.totalorder %s35, %s51
      %p53 = scmp.eq.s32.totalorder %s27, 0
      %p54 = por %p52, %p53
      %s55 = ssub.s32 %s21, %s28
      %p56 = scmp.eq.s32.totalorder %s55, 0
      %s58 = sadd.s32 %s57, 1
      %s59 = scalar_select %p56, %s57, %s58
      %p62 = pneg %p56
      %p63 = scmp.eq.s32.totalorder %s21, 1
      %p64 = por %p62, %p63
      %p65 = scmp.ne.s32.totalorder %s57, %s60
      %p66 = scmp.eq.s32.totalorder %s21, 0
      %p67 = por %p65, %p66
      %p68 = scmp.ne.s32.totalorder %s57, %s60
      %p69 = scmp.eq.s32.totalorder %s26, 1
      %p70 = por %p68, %p69
      %p71 = scmp.ne.s32.totalorder %s60, %s61
      %p72 = scmp.eq.s32.totalorder %s26, 0
      %p73 = por %p71, %p72
      %p74 = scmp.ne.s32.totalorder %s60, %s61
      %p75 = scmp.eq.s32.totalorder %s27, 1
      %p76 = por %p74, %p75
      %p78 = scmp.ne.s32.totalorder %s61, %s77
      %p79 = scmp.eq.s32.totalorder %s27, 0
      %p80 = por %p78, %p79
      %s81 = ssub.s32 %s21, %s28
      %p82 = scmp.eq.s32.totalorder %s81, 0
      %s84 = sadd.s32 %s83, 1
      %s85 = scalar_select %p82, %s83, %s84
      %p88 = pneg %p82
      %p89 = scmp.eq.s32.totalorder %s21, 1
      %p90 = por %p88, %p89
      %p91 = scmp.ne.s32.totalorder %s83, %s86
      %p92 = scmp.eq.s32.totalorder %s21, 0
      %p93 = por %p91, %p92
      %p94 = scmp.ne.s32.totalorder %s83, %s86
      %p95 = scmp.eq.s32.totalorder %s26, 1
      %p96 = por %p94, %p95
      %p97 = scmp.ne.s32.totalorder %s86, %s87
      %p98 = scmp.eq.s32.totalorder %s26, 0
      %p99 = por %p97, %p98
      %p100 = scmp.ne.s32.totalorder %s86, %s87
      %p101 = scmp.eq.s32.totalorder %s27, 1
      %p102 = por %p100, %p101
      %p104 = scmp.ne.s32.totalorder %s87, %s103
      %p105 = scmp.eq.s32.totalorder %s27, 0
      %p106 = por %p104, %p105
      %s108 = sadd.s32 %s107, 1
      %p111 = scmp.eq.s32.totalorder %s21, 1
      %p112 = scmp.ne.s32.totalorder %s107, %s109
      %p113 = scmp.eq.s32.totalorder %s21, 0
      %p114 = por %p112, %p113
      %p115 = scmp.ne.s32.totalorder %s107, %s109
      %p116 = scmp.eq.s32.totalorder %s26, 1
      %p117 = por %p115, %p116
      %p118 = scmp.ne.s32.totalorder %s109, %s110
      %p119 = scmp.eq.s32.totalorder %s26, 0
      %p120 = por %p118, %p119
      %p121 = scmp.ne.s32.totalorder %s109, %s110
      %p122 = scmp.eq.s32.totalorder %s27, 1
      %p123 = por %p121, %p122
      %p125 = scmp.ne.s32.totalorder %s110, %s124
      %p126 = scmp.eq.s32.totalorder %s27, 0
      %p127 = por %p125, %p126
      %s128 = ssub.s32 %s21, %s28
      %p129 = scmp.eq.s32.totalorder %s128, 0
      %s131 = sadd.s32 %s130, 1
      %s132 = scalar_select %p129, %s130, %s131
      %p135 = pneg %p129
      %p136 = scmp.eq.s32.totalorder %s21, 1
      %p137 = por %p135, %p136
      %p138 = scmp.ne.s32.totalorder %s130, %s133
      %p139 = scmp.eq.s32.totalorder %s21, 0
      %p140 = por %p138, %p139
      %p141 = scmp.ne.s32.totalorder %s130, %s133
      %p142 = scmp.eq.s32.totalorder %s26, 1
      %p143 = por %p141, %p142
      %p144 = scmp.ne.s32.totalorder %s133, %s134
      %p145 = scmp.eq.s32.totalorder %s26, 0
      %p146 = por %p144, %p145
      %p147 = scmp.ne.s32.totalorder %s133, %s134
      %p148 = scmp.eq.s32.totalorder %s27, 1
      %p149 = por %p147, %p148
      %p151 = scmp.ne.s32.totalorder %s134, %s150
      %p152 = scmp.eq.s32.totalorder %s27, 0
      %p153 = por %p151, %p152
      %s155 = sadd.s32 %s154, 1
      %p158 = scmp.eq.s32.totalorder %s21, 1
      %p159 = scmp.ne.s32.totalorder %s154, %s156
      %p160 = scmp.eq.s32.totalorder %s21, 0
      %p161 = por %p159, %p160
      %p162 = scmp.ne.s32.totalorder %s154, %s156
      %p163 = scmp.eq.s32.totalorder %s26, 1
      %p164 = por %p162, %p163
      %p165 = scmp.ne.s32.totalorder %s156, %s157
      %p166 = scmp.eq.s32.totalorder %s26, 0
      %p167 = por %p165, %p166
      %p168 = scmp.ne.s32.totalorder %s156, %s157
      %p169 = scmp.eq.s32.totalorder %s27, 1
      %p170 = por %p168, %p169
      %p172 = scmp.ne.s32.totalorder %s157, %s171
      %p173 = scmp.eq.s32.totalorder %s27, 0
      %p174 = por %p172, %p173
      %s176 = sadd.s32 %s175, 1
      %p179 = scmp.eq.s32.totalorder %s21, 1
      %p180 = scmp.ne.s32.totalorder %s175, %s177
      %p181 = scmp.eq.s32.totalorder %s21, 0
      %p182 = por %p180, %p181
      %p183 = scmp.ne.s32.totalorder %s175, %s177
      %p184 = scmp.eq.s32.totalorder %s26, 1
      %p185 = por %p183, %p184
      %p186 = scmp.ne.s32.totalorder %s177, %s178
      %p187 = scmp.eq.s32.totalorder %s26, 0
      %p188 = por %p186, %p187
      %p189 = scmp.ne.s32.totalorder %s177, %s178
      %p190 = scmp.eq.s32.totalorder %s27, 1
      %p191 = por %p189, %p190
      %p193 = scmp.ne.s32.totalorder %s178, %s192
      %p194 = scmp.eq.s32.totalorder %s27, 0
      %p195 = por %p193, %p194
      %s197 = sadd.s32 %s196, 1
      %p200 = scmp.eq.s32.totalorder %s21, 1
      %p201 = scmp.ne.s32.totalorder %s196, %s198
      %p202 = scmp.eq.s32.totalorder %s21, 0
      %p203 = por %p201, %p202
      %p204 = scmp.ne.s32.totalorder %s196, %s198
      %p205 = scmp.eq.s32.totalorder %s26, 1
      %p206 = por %p204, %p205
      %p207 = scmp.ne.s32.totalorder %s198, %s199
      %p208 = scmp.eq.s32.totalorder %s26, 0
      %p209 = por %p207, %p208
      %p210 = scmp.ne.s32.totalorder %s198, %s199
      %p211 = scmp.eq.s32.totalorder %s27, 1
      %p212 = por %p210, %p211
      %p214 = scmp.ne.s32.totalorder %s199, %s213
      %p215 = scmp.eq.s32.totalorder %s27, 0
      %p216 = por %p214, %p215
      %s217 = ssub.s32 %s21, %s28
      %p218 = scmp.eq.s32.totalorder %s217, 0
      %s220 = sadd.s32 %s219, 1
      %s221 = scalar_select %p218, %s219, %s220
      %p224 = pneg %p218
      %p225 = scmp.eq.s32.totalorder %s21, 1
      %p226 = por %p224, %p225
      %p227 = scmp.ne.s32.totalorder %s219, %s222
      %p228 = scmp.eq.s32.totalorder %s21, 0
      %p229 = por %p227, %p228
      %p230 = scmp.ne.s32.totalorder %s219, %s222
      %p231 = scmp.eq.s32.totalorder %s26, 1
      %p232 = por %p230, %p231
      %p233 = scmp.ne.s32.totalorder %s222, %s223
      %p234 = scmp.eq.s32.totalorder %s26, 0
      %p235 = por %p233, %p234
      %p236 = scmp.ne.s32.totalorder %s222, %s223
      %p237 = scmp.eq.s32.totalorder %s27, 1
      %p238 = por %p236, %p237
      %p240 = scmp.ne.s32.totalorder %s223, %s239
      %p241 = scmp.eq.s32.totalorder %s27, 0
      %p242 = por %p240, %p241
      %s244 = sadd.s32 %s243, 1
      %p247 = scmp.eq.s32.totalorder %s21, 1
      %p248 = scmp.ne.s32.totalorder %s243, %s245
      %p249 = scmp.eq.s32.totalorder %s21, 0
      %p250 = por %p248, %p249
      %p251 = scmp.ne.s32.totalorder %s243, %s245
      %p252 = scmp.eq.s32.totalorder %s26, 1
      %p253 = por %p251, %p252
      %p254 = scmp.ne.s32.totalorder %s245, %s246
      %p255 = scmp.eq.s32.totalorder %s26, 0
      %p256 = por %p254, %p255
      %p257 = scmp.ne.s32.totalorder %s245, %s246
      %p258 = scmp.eq.s32.totalorder %s27, 1
      %p259 = por %p257, %p258
      %p261 = scmp.ne.s32.totalorder %s246, %s260
      %p262 = scmp.eq.s32.totalorder %s27, 0
      %p263 = por %p261, %p262
      %s265 = sadd.s32 %s264, 1
      %p268 = scmp.eq.s32.totalorder %s21, 1
      %p269 = scmp.ne.s32.totalorder %s264, %s266
      %p270 = scmp.eq.s32.totalorder %s21, 0
      %p271 = por %p269, %p270
      %p272 = scmp.ne.s32.totalorder %s264, %s266
      %p273 = scmp.eq.s32.totalorder %s26, 1
      %p274 = por %p272, %p273
      %p275 = scmp.ne.s32.totalorder %s266, %s267
      %p276 = scmp.eq.s32.totalorder %s26, 0
      %p277 = por %p275, %p276
      %p278 = scmp.ne.s32.totalorder %s266, %s267
      %p279 = scmp.eq.s32.totalorder %s27, 1
      %p280 = por %p278, %p279
      %p282 = scmp.ne.s32.totalorder %s267, %s281
      %p283 = scmp.eq.s32.totalorder %s27, 0
      %p284 = por %p282, %p283
      %p285 = scmp.le.s32.totalorder 1, %s21
      %p286 = scmp.lt.s32.totalorder %s21, 3
      %p287 = pnand %p285, %p286
      %p288 = pneg %p287
      // Predicated region
      $region9: #{tpu_custom_call.1} parent=5 // pred_check
        _
      $region10: #{tpu_custom_call.1} parent=5 // pred_check_branch
        %290 = sbr.rel (%p287) target = $region12
      $region11: #{tpu_custom_call.1} parent=5 // pred_region
        %s291 = ssub.s32 %s21, 1
        // Predicated region
        $region13: #{tpu_custom_call.1} parent=11 // pred_check
          %p292 = pneg %p120
        $region14: #{tpu_custom_call.1} parent=11 // pred_check_branch
          %294 = sbr.rel (%p292) target = $region16
        $region15: #{tpu_custom_call.1} parent=11 // pred_region
          _
        $region16: #{tpu_custom_call.1} parent=11 // pred_fallthru
          _
        // Predicated region
        $region17: #{tpu_custom_call.1} parent=11 // pred_check
          %p295 = pneg %p167
        $region18: #{tpu_custom_call.1} parent=11 // pred_check_branch
          %297 = sbr.rel (%p295) target = $region20
        $region19: #{tpu_custom_call.1} parent=11 // pred_region
          _
        $region20: #{tpu_custom_call.1} parent=11 // pred_fallthru
          _
        // Predicated region
        $region21: #{tpu_custom_call.1} parent=11 // pred_check
          %p298 = pneg %p188
        $region22: #{tpu_custom_call.1} parent=11 // pred_check_branch
          %300 = sbr.rel (%p298) target = $region24
        $region23: #{tpu_custom_call.1} parent=11 // pred_region
          _
        $region24: #{tpu_custom_call.1} parent=11 // pred_fallthru
          _
        // Predicated region
        $region25: #{tpu_custom_call.1} parent=11 // pred_check
          %p301 = pneg %p209
        $region26: #{tpu_custom_call.1} parent=11 // pred_check_branch
          %303 = sbr.rel (%p301) target = $region28
        $region27: #{tpu_custom_call.1} parent=11 // pred_region
          _
        $region28: #{tpu_custom_call.1} parent=11 // pred_fallthru
          _
      $region12: #{tpu_custom_call.1} parent=5 // pred_fallthru
        _
      %p304 = scmp.lt.s32.totalorder %s21, 2
      // Predicated region
      $region29: #{tpu_custom_call.1} parent=5 // pred_check
        %p305 = pneg %p304
      $region30: #{tpu_custom_call.1} parent=5 // pred_check_branch
        %307 = sbr.rel (%p305) target = $region32
      $region31: #{tpu_custom_call.1} parent=5 // pred_region
        // Predicated region
        $region33: #{tpu_custom_call.1} parent=31 // pred_check
          %p308 = pneg %p41
        $region34: #{tpu_custom_call.1} parent=31 // pred_check_branch
          %310 = sbr.rel (%p308) target = $region36
        $region35: #{tpu_custom_call.1} parent=31 // pred_region
          %s311 = smul.u32 32, %s21
          %p312 = scmp.lt.s32.totalorder %s311, 63
          %s313 = scalar_select %p312, %s311, 63
          %s314 = smul.addr %s313, 4
          %s315 = smul.addr %s314, 4
          %s316 = scalar_lea.vmem %s0, %s315
          %s317 = smul.u32 32, %s21
        $region36: #{tpu_custom_call.1} parent=31 // pred_fallthru
          _
        // Predicated region
        $region37: #{tpu_custom_call.1} parent=31 // pred_check
          %p318 = pneg %p67
        $region38: #{tpu_custom_call.1} parent=31 // pred_check_branch
          %320 = sbr.rel (%p318) target = $region40
        $region39: #{tpu_custom_call.1} parent=31 // pred_region
          %s321 = smul.u32 32, %s21
          %p322 = scmp.lt.s32.totalorder %s321, 63
          %s323 = scalar_select %p322, %s321, 63
          %s324 = smul.addr %s323, 8
          %s325 = scalar_lea.vmem %s1, %s324
          %s326 = smul.u32 32, %s21
        $region40: #{tpu_custom_call.1} parent=31 // pred_fallthru
          _
        // Predicated region
        $region41: #{tpu_custom_call.1} parent=31 // pred_check
          %p327 = pneg %p93
        $region42: #{tpu_custom_call.1} parent=31 // pred_check_branch
          %329 = sbr.rel (%p327) target = $region44
        $region43: #{tpu_custom_call.1} parent=31 // pred_region
          %s330 = smul.u32 32, %s21
          %p331 = scmp.lt.s32.totalorder %s330, 63
          %s332 = scalar_select %p331, %s330, 63
          %s333 = smul.addr %s332, 8
          %s334 = scalar_lea.vmem %s2, %s333
          %s335 = smul.u32 32, %s21
        $region44: #{tpu_custom_call.1} parent=31 // pred_fallthru
          _
        // Predicated region
        $region45: #{tpu_custom_call.1} parent=31 // pred_check
          %p336 = pneg %p140
        $region46: #{tpu_custom_call.1} parent=31 // pred_check_branch
          %338 = sbr.rel (%p336) target = $region48
        $region47: #{tpu_custom_call.1} parent=31 // pred_region
          %s339 = smul.u32 32, %s21
          %p340 = scmp.lt.s32.totalorder %s339, 63
          %s341 = scalar_select %p340, %s339, 63
          %s342 = smul.addr %s341, 4
          %s343 = scalar_lea.vmem %s4, %s342
          %s344 = smul.u32 32, %s21
        $region48: #{tpu_custom_call.1} parent=31 // pred_fallthru
          _
      $region32: #{tpu_custom_call.1} parent=5 // pred_fallthru
        _
      %p345 = scmp.le.s32.totalorder 1, %s21
      %p346 = scmp.lt.s32.totalorder %s21, 3
      %p347 = pnand %p345, %p346
      %p348 = pneg %p347
      // Predicated region
      $region49: #{tpu_custom_call.1} parent=5 // pred_check
        _
      $region50: #{tpu_custom_call.1} parent=5 // pred_check_branch
        %350 = sbr.rel (%p347) target = $region52
      $region51: #{tpu_custom_call.1} parent=5 // pred_region
        %s351 = ssub.s32 %s21, 1
        %s352 = smul.u32 32, %s26
        %p353 = scmp.lt.s32.totalorder %s352, 63
        %s354 = scalar_select %p353, %s352, 63
        %s355 = smul.addr %s354, 4
        %s356 = smul.addr %s355, 4
        %s357 = scalar_lea.vmem %s0, %s356
        %p358 = pneg %p47
        %p359 = pneg %p44
        %s360 = smul.u32 32, %s26
        %p361 = scmp.lt.s32.totalorder %s360, 63
        %s362 = scalar_select %p361, %s360, 63
        %s363 = smul.addr %s362, 8
        %s364 = scalar_lea.vmem %s1, %s363
        %p365 = pneg %p73
        %p366 = pneg %p70
        %s367 = smul.u32 32, %s26
        %p368 = scmp.lt.s32.totalorder %s367, 63
        %s369 = scalar_select %p368, %s367, 63
        %s370 = smul.addr %s369, 8
        %s371 = scalar_lea.vmem %s2, %s370
        %p372 = pneg %p99
        %p373 = pneg %p96
        %p374 = pneg %p120
        %p375 = pneg %p117
        %s376 = smul.u32 32, %s26
        %p377 = scmp.lt.s32.totalorder %s376, 63
        %s378 = scalar_select %p377, %s376, 63
        %s379 = smul.addr %s378, 4
        %s380 = scalar_lea.vmem %s4, %s379
        %p381 = pneg %p146
        %p382 = pneg %p143
        %p383 = pneg %p167
        %p384 = pneg %p164
        %p385 = pneg %p188
        %p386 = pneg %p185
        %p387 = pneg %p209
        %p388 = pneg %p206
        %p389 = pneg %p235
        %p390 = pneg %p232
        %s391 = sand.u32 %s222, 1
        %s392 = scalar_lea.sflag [#allocation7], %s391
        %s393 = sand.u32 %s222, 1
        %s394 = smul.addr %s393, 128
        %s395 = scalar_lea.vmem [#allocation6], %s394
        %p396 = pneg %p256
        %p397 = pneg %p253
        %p398 = pneg %p277
        %p399 = pneg %p274
        %s400 = smul.u32 32, %s26
        %p401 = scmp.lt.s32.totalorder %s400, 63
        %s402 = scalar_select %p401, %s400, 63
        %s403 = smul.addr %s402, 4
        %s404 = smul.addr %s403, 4
        %s405 = scalar_lea.vmem %s0, %s404
        %s406 = smul.u32 32, %s26
        %s407 = smul.u32 32, %s26
        %p408 = scmp.lt.s32.totalorder %s407, 63
        %s409 = scalar_select %p408, %s407, 63
        %s410 = smul.addr %s409, 8
        %s411 = scalar_lea.vmem %s1, %s410
        %s412 = smul.u32 32, %s26
        %s413 = smul.u32 32, %s26
        %p414 = scmp.lt.s32.totalorder %s413, 63
        %s415 = scalar_select %p414, %s413, 63
        %s416 = smul.addr %s415, 8
        %s417 = scalar_lea.vmem %s2, %s416
        %s418 = smul.u32 32, %s26
        %s419 = smul.u32 32, %s26
        %p420 = scmp.lt.s32.totalorder %s419, 63
        %s421 = scalar_select %p420, %s419, 63
        %s422 = smul.addr %s421, 4
        %s423 = scalar_lea.vmem %s4, %s422
        %s424 = smul.u32 32, %s26
        %s425 = smul.u32 32, %s26
        %p429 = scmp.eq.s32.totalorder %s26, 0
        // Predicated region
        $region53: #{tpu_custom_call.1} parent=51 // pred_check
          %p430 = pneg %p429
        $region54: #{tpu_custom_call.1} parent=51 // pred_check_branch
          %432 = sbr.rel (%p430) target = $region56
        $region55: #{tpu_custom_call.1} parent=51 // pred_region
          %433 = vst [vmem:[#allocation8] sm:$0xff] 0.0
          %434 = vst [vmem:[#allocation8 + $0x8] sm:$0xff] 0.0
          %435 = vst [vmem:[#allocation8 + $0x10] sm:$0xff] 0.0
          %436 = vst [vmem:[#allocation8 + $0x18] sm:$0xff] 0.0
          %437 = vst [vmem:[#allocation8 + $0x20] sm:$0xff] 0.0
          %438 = vst [vmem:[#allocation8 + $0x28] sm:$0xff] 0.0
          %439 = vst [vmem:[#allocation8 + $0x30] sm:$0xff] 0.0
          %440 = vst [vmem:[#allocation8 + $0x38] sm:$0xff] 0.0
          %441 = vst [vmem:[#allocation8 + $0x40] sm:$0xff] 0.0
          %442 = vst [vmem:[#allocation8 + $0x48] sm:$0xff] 0.0
          %443 = vst [vmem:[#allocation8 + $0x50] sm:$0xff] 0.0
          %444 = vst [vmem:[#allocation8 + $0x58] sm:$0xff] 0.0
          %445 = vst [vmem:[#allocation8 + $0x60] sm:$0xff] 0.0
          %446 = vst [vmem:[#allocation8 + $0x68] sm:$0xff] 0.0
          %447 = vst [vmem:[#allocation8 + $0x70] sm:$0xff] 0.0
          %448 = vst [vmem:[#allocation8 + $0x78] sm:$0xff] 0.0
          %449 = vst [vmem:[#allocation8 + $0x80] sm:$0xff] 0.0
          %450 = vst [vmem:[#allocation8 + $0x88] sm:$0xff] 0.0
          %451 = vst [vmem:[#allocation8 + $0x90] sm:$0xff] 0.0
          %452 = vst [vmem:[#allocation8 + $0x98] sm:$0xff] 0.0
          %453 = vst [vmem:[#allocation8 + $0xa0] sm:$0xff] 0.0
          %454 = vst [vmem:[#allocation8 + $0xa8] sm:$0xff] 0.0
          %455 = vst [vmem:[#allocation8 + $0xb0] sm:$0xff] 0.0
          %456 = vst [vmem:[#allocation8 + $0xb8] sm:$0xff] 0.0
          %457 = vst [vmem:[#allocation8 + $0xc0] sm:$0xff] 0.0
          %458 = vst [vmem:[#allocation8 + $0xc8] sm:$0xff] 0.0
          %459 = vst [vmem:[#allocation8 + $0xd0] sm:$0xff] 0.0
          %460 = vst [vmem:[#allocation8 + $0xd8] sm:$0xff] 0.0
          %461 = vst [vmem:[#allocation8 + $0xe0] sm:$0xff] 0.0
          %462 = vst [vmem:[#allocation8 + $0xe8] sm:$0xff] 0.0
          %463 = vst [vmem:[#allocation8 + $0xf0] sm:$0xff] 0.0
          %464 = vst [vmem:[#allocation8 + $0xf8] sm:$0xff] 0.0
          %465 = vst [vmem:[#allocation8 + $0x100] sm:$0xff] 0.0
          %466 = vst [vmem:[#allocation8 + $0x108] sm:$0xff] 0.0
          %467 = vst [vmem:[#allocation8 + $0x110] sm:$0xff] 0.0
          %468 = vst [vmem:[#allocation8 + $0x118] sm:$0xff] 0.0
          %469 = vst [vmem:[#allocation8 + $0x120] sm:$0xff] 0.0
          %470 = vst [vmem:[#allocation8 + $0x128] sm:$0xff] 0.0
          %471 = vst [vmem:[#allocation8 + $0x130] sm:$0xff] 0.0
          %472 = vst [vmem:[#allocation8 + $0x138] sm:$0xff] 0.0
          %473 = vst [vmem:[#allocation8 + $0x140] sm:$0xff] 0.0
          %474 = vst [vmem:[#allocation8 + $0x148] sm:$0xff] 0.0
          %475 = vst [vmem:[#allocation8 + $0x150] sm:$0xff] 0.0
          %476 = vst [vmem:[#allocation8 + $0x158] sm:$0xff] 0.0
          %477 = vst [vmem:[#allocation8 + $0x160] sm:$0xff] 0.0
          %478 = vst [vmem:[#allocation8 + $0x168] sm:$0xff] 0.0
          %479 = vst [vmem:[#allocation8 + $0x170] sm:$0xff] 0.0
          %480 = vst [vmem:[#allocation8 + $0x178] sm:$0xff] 0.0
          %481 = vst [vmem:[#allocation8 + $0x180] sm:$0xff] 0.0
          %482 = vst [vmem:[#allocation8 + $0x188] sm:$0xff] 0.0
          %483 = vst [vmem:[#allocation8 + $0x190] sm:$0xff] 0.0
          %484 = vst [vmem:[#allocation8 + $0x198] sm:$0xff] 0.0
          %485 = vst [vmem:[#allocation8 + $0x1a0] sm:$0xff] 0.0
          %486 = vst [vmem:[#allocation8 + $0x1a8] sm:$0xff] 0.0
          %487 = vst [vmem:[#allocation8 + $0x1b0] sm:$0xff] 0.0
          %488 = vst [vmem:[#allocation8 + $0x1b8] sm:$0xff] 0.0
          %489 = vst [vmem:[#allocation8 + $0x1c0] sm:$0xff] 0.0
          %490 = vst [vmem:[#allocation8 + $0x1c8] sm:$0xff] 0.0
          %491 = vst [vmem:[#allocation8 + $0x1d0] sm:$0xff] 0.0
          %492 = vst [vmem:[#allocation8 + $0x1d8] sm:$0xff] 0.0
          %493 = vst [vmem:[#allocation8 + $0x1e0] sm:$0xff] 0.0
          %494 = vst [vmem:[#allocation8 + $0x1e8] sm:$0xff] 0.0
          %495 = vst [vmem:[#allocation8 + $0x1f0] sm:$0xff] 0.0
          %496 = vst [vmem:[#allocation8 + $0x1f8] sm:$0xff] 0.0
          %497 = vst [vmem:[#allocation10] sm:$0x1] 0.0
          %498 = vst [vmem:[#allocation2] sm:$0xff] 0.0
          %499 = vst [vmem:[#allocation2 + $0x8] sm:$0xff] 0.0
          %500 = vst [vmem:[#allocation2 + $0x10] sm:$0xff] 0.0
          %501 = vst [vmem:[#allocation2 + $0x18] sm:$0xff] 0.0
          %502 = vst [vmem:[#allocation2 + $0x20] sm:$0xff] 0.0
          %503 = vst [vmem:[#allocation2 + $0x28] sm:$0xff] 0.0
          %504 = vst [vmem:[#allocation2 + $0x30] sm:$0xff] 0.0
          %505 = vst [vmem:[#allocation2 + $0x38] sm:$0xff] 0.0
          %506 = vst [vmem:[#allocation2 + $0x40] sm:$0xff] 0.0
          %507 = vst [vmem:[#allocation2 + $0x48] sm:$0xff] 0.0
          %508 = vst [vmem:[#allocation2 + $0x50] sm:$0xff] 0.0
          %509 = vst [vmem:[#allocation2 + $0x58] sm:$0xff] 0.0
          %510 = vst [vmem:[#allocation2 + $0x60] sm:$0xff] 0.0
          %511 = vst [vmem:[#allocation2 + $0x68] sm:$0xff] 0.0
          %512 = vst [vmem:[#allocation2 + $0x70] sm:$0xff] 0.0
          %513 = vst [vmem:[#allocation2 + $0x78] sm:$0xff] 0.0
          %514 = vst [vmem:[#allocation3] sm:$0x1] 0.0
          %515 = vst [vmem:[#allocation4] sm:$0x1] 0.0
          %vm516 = vcmask 0
          %517 = vst.msk [vmem:[#allocation5] sm:$0x1] %vm516, 0.0
        $region56: #{tpu_custom_call.1} parent=51 // pred_fallthru
          _
        %v518 = vld [vmem:[%s405] sm:$0xff]
        %v519 = vld [vmem:[%s405 + $0x8] sm:$0xff]
        %v520 = vld [vmem:[%s405 + $0x10] sm:$0xff]
        %v521 = vld [vmem:[%s405 + $0x18] sm:$0xff]
        %v522 = vld [vmem:[%s405 + $0x20] sm:$0xff]
        %v523 = vld [vmem:[%s405 + $0x28] sm:$0xff]
        %v524 = vld [vmem:[%s405 + $0x30] sm:$0xff]
        %v525 = vld [vmem:[%s405 + $0x38] sm:$0xff]
        %v526 = vld [vmem:[%s405 + $0x40] sm:$0xff]
        %v527 = vld [vmem:[%s405 + $0x48] sm:$0xff]
        %v528 = vld [vmem:[%s405 + $0x50] sm:$0xff]
        %v529 = vld [vmem:[%s405 + $0x58] sm:$0xff]
        %v530 = vld [vmem:[%s405 + $0x60] sm:$0xff]
        %v531 = vld [vmem:[%s405 + $0x68] sm:$0xff]
        %v532 = vld [vmem:[%s405 + $0x70] sm:$0xff]
        %v533 = vld [vmem:[%s405 + $0x78] sm:$0xff]
        %v534 = vld [vmem:[%s405 + $0x80] sm:$0xff]
        %v535 = vld [vmem:[%s405 + $0x88] sm:$0xff]
        %v536 = vld [vmem:[%s405 + $0x90] sm:$0xff]
        %v537 = vld [vmem:[%s405 + $0x98] sm:$0xff]
        %v538 = vld [vmem:[%s405 + $0xa0] sm:$0xff]
        %v539 = vld [vmem:[%s405 + $0xa8] sm:$0xff]
        %v540 = vld [vmem:[%s405 + $0xb0] sm:$0xff]
        %v541 = vld [vmem:[%s405 + $0xb8] sm:$0xff]
        %v542 = vld [vmem:[%s405 + $0xc0] sm:$0xff]
        %v543 = vld [vmem:[%s405 + $0xc8] sm:$0xff]
        %v544 = vld [vmem:[%s405 + $0xd0] sm:$0xff]
        %v545 = vld [vmem:[%s405 + $0xd8] sm:$0xff]
        %v546 = vld [vmem:[%s405 + $0xe0] sm:$0xff]
        %v547 = vld [vmem:[%s405 + $0xe8] sm:$0xff]
        %v548 = vld [vmem:[%s405 + $0xf0] sm:$0xff]
        %v549 = vld [vmem:[%s405 + $0xf8] sm:$0xff]
        %v550 = vld [vmem:[%s405 + $0x100] sm:$0xff]
        %v551 = vld [vmem:[%s405 + $0x108] sm:$0xff]
        %v552 = vld [vmem:[%s405 + $0x110] sm:$0xff]
        %v553 = vld [vmem:[%s405 + $0x118] sm:$0xff]
        %v554 = vld [vmem:[%s405 + $0x120] sm:$0xff]
        %v555 = vld [vmem:[%s405 + $0x128] sm:$0xff]
        %v556 = vld [vmem:[%s405 + $0x130] sm:$0xff]
        %v557 = vld [vmem:[%s405 + $0x138] sm:$0xff]
        %v558 = vld [vmem:[%s405 + $0x140] sm:$0xff]
        %v559 = vld [vmem:[%s405 + $0x148] sm:$0xff]
        %v560 = vld [vmem:[%s405 + $0x150] sm:$0xff]
        %v561 = vld [vmem:[%s405 + $0x158] sm:$0xff]
        %v562 = vld [vmem:[%s405 + $0x160] sm:$0xff]
        %v563 = vld [vmem:[%s405 + $0x168] sm:$0xff]
        %v564 = vld [vmem:[%s405 + $0x170] sm:$0xff]
        %v565 = vld [vmem:[%s405 + $0x178] sm:$0xff]
        %v566 = vld [vmem:[%s405 + $0x180] sm:$0xff]
        %v567 = vld [vmem:[%s405 + $0x188] sm:$0xff]
        %v568 = vld [vmem:[%s405 + $0x190] sm:$0xff]
        %v569 = vld [vmem:[%s405 + $0x198] sm:$0xff]
        %v570 = vld [vmem:[%s405 + $0x1a0] sm:$0xff]
        %v571 = vld [vmem:[%s405 + $0x1a8] sm:$0xff]
        %v572 = vld [vmem:[%s405 + $0x1b0] sm:$0xff]
        %v573 = vld [vmem:[%s405 + $0x1b8] sm:$0xff]
        %v574 = vld [vmem:[%s405 + $0x1c0] sm:$0xff]
        %v575 = vld [vmem:[%s405 + $0x1c8] sm:$0xff]
        %v576 = vld [vmem:[%s405 + $0x1d0] sm:$0xff]
        %v577 = vld [vmem:[%s405 + $0x1d8] sm:$0xff]
        %v578 = vld [vmem:[%s405 + $0x1e0] sm:$0xff]
        %v579 = vld [vmem:[%s405 + $0x1e8] sm:$0xff]
        %v580 = vld [vmem:[%s405 + $0x1f0] sm:$0xff]
        %v581 = vld [vmem:[%s405 + $0x1f8] sm:$0xff]
        %vm582 = vcmp.ne.bf16.partialorder %v518, 0
        %vm583 = vcmp.ne.bf16.partialorder %v519, 0
        %vm584 = vcmp.ne.bf16.partialorder %v520, 0
        %vm585 = vcmp.ne.bf16.partialorder %v521, 0
        %vm586 = vcmp.ne.bf16.partialorder %v522, 0
        %vm587 = vcmp.ne.bf16.partialorder %v523, 0
        %vm588 = vcmp.ne.bf16.partialorder %v524, 0
        %vm589 = vcmp.ne.bf16.partialorder %v525, 0
        %vm590 = vcmp.ne.bf16.partialorder %v526, 0
        %vm591 = vcmp.ne.bf16.partialorder %v527, 0
        %vm592 = vcmp.ne.bf16.partialorder %v528, 0
        %vm593 = vcmp.ne.bf16.partialorder %v529, 0
        %vm594 = vcmp.ne.bf16.partialorder %v530, 0
        %vm595 = vcmp.ne.bf16.partialorder %v531, 0
        %vm596 = vcmp.ne.bf16.partialorder %v532, 0
        %vm597 = vcmp.ne.bf16.partialorder %v533, 0
        %vm598 = vcmp.ne.bf16.partialorder %v534, 0
        %vm599 = vcmp.ne.bf16.partialorder %v535, 0
        %vm600 = vcmp.ne.bf16.partialorder %v536, 0
        %vm601 = vcmp.ne.bf16.partialorder %v537, 0
        %vm602 = vcmp.ne.bf16.partialorder %v538, 0
        %vm603 = vcmp.ne.bf16.partialorder %v539, 0
        %vm604 = vcmp.ne.bf16.partialorder %v540, 0
        %vm605 = vcmp.ne.bf16.partialorder %v541, 0
        %vm606 = vcmp.ne.bf16.partialorder %v542, 0
        %vm607 = vcmp.ne.bf16.partialorder %v543, 0
        %vm608 = vcmp.ne.bf16.partialorder %v544, 0
        %vm609 = vcmp.ne.bf16.partialorder %v545, 0
        %vm610 = vcmp.ne.bf16.partialorder %v546, 0
        %vm611 = vcmp.ne.bf16.partialorder %v547, 0
        %vm612 = vcmp.ne.bf16.partialorder %v548, 0
        %vm613 = vcmp.ne.bf16.partialorder %v549, 0
        %vm614 = vcmp.ne.bf16.partialorder %v550, 0
        %vm615 = vcmp.ne.bf16.partialorder %v551, 0
        %vm616 = vcmp.ne.bf16.partialorder %v552, 0
        %vm617 = vcmp.ne.bf16.partialorder %v553, 0
        %vm618 = vcmp.ne.bf16.partialorder %v554, 0
        %vm619 = vcmp.ne.bf16.partialorder %v555, 0
        %vm620 = vcmp.ne.bf16.partialorder %v556, 0
        %vm621 = vcmp.ne.bf16.partialorder %v557, 0
        %vm622 = vcmp.ne.bf16.partialorder %v558, 0
        %vm623 = vcmp.ne.bf16.partialorder %v559, 0
        %vm624 = vcmp.ne.bf16.partialorder %v560, 0
        %vm625 = vcmp.ne.bf16.partialorder %v561, 0
        %vm626 = vcmp.ne.bf16.partialorder %v562, 0
        %vm627 = vcmp.ne.bf16.partialorder %v563, 0
        %vm628 = vcmp.ne.bf16.partialorder %v564, 0
        %vm629 = vcmp.ne.bf16.partialorder %v565, 0
        %vm630 = vcmp.ne.bf16.partialorder %v566, 0
        %vm631 = vcmp.ne.bf16.partialorder %v567, 0
        %vm632 = vcmp.ne.bf16.partialorder %v568, 0
        %vm633 = vcmp.ne.bf16.partialorder %v569, 0
        %vm634 = vcmp.ne.bf16.partialorder %v570, 0
        %vm635 = vcmp.ne.bf16.partialorder %v571, 0
        %vm636 = vcmp.ne.bf16.partialorder %v572, 0
        %vm637 = vcmp.ne.bf16.partialorder %v573, 0
        %vm638 = vcmp.ne.bf16.partialorder %v574, 0
        %vm639 = vcmp.ne.bf16.partialorder %v575, 0
        %vm640 = vcmp.ne.bf16.partialorder %v576, 0
        %vm641 = vcmp.ne.bf16.partialorder %v577, 0
        %vm642 = vcmp.ne.bf16.partialorder %v578, 0
        %vm643 = vcmp.ne.bf16.partialorder %v579, 0
        %vm644 = vcmp.ne.bf16.partialorder %v580, 0
        %vm645 = vcmp.ne.bf16.partialorder %v581, 0
        %v646 = vsel %vm582, 65537, 0
        %v647 = vsel %vm583, 65537, 0
        %v648 = vsel %vm584, 65537, 0
        %v649 = vsel %vm585, 65537, 0
        %v650 = vsel %vm586, 65537, 0
        %v651 = vsel %vm587, 65537, 0
        %v652 = vsel %vm588, 65537, 0
        %v653 = vsel %vm589, 65537, 0
        %v654 = vsel %vm590, 65537, 0
        %v655 = vsel %vm591, 65537, 0
        %v656 = vsel %vm592, 65537, 0
        %v657 = vsel %vm593, 65537, 0
        %v658 = vsel %vm594, 65537, 0
        %v659 = vsel %vm595, 65537, 0
        %v660 = vsel %vm596, 65537, 0
        %v661 = vsel %vm597, 65537, 0
        %v662 = vsel %vm598, 65537, 0
        %v663 = vsel %vm599, 65537, 0
        %v664 = vsel %vm600, 65537, 0
        %v665 = vsel %vm601, 65537, 0
        %v666 = vsel %vm602, 65537, 0
        %v667 = vsel %vm603, 65537, 0
        %v668 = vsel %vm604, 65537, 0
        %v669 = vsel %vm605, 65537, 0
        %v670 = vsel %vm606, 65537, 0
        %v671 = vsel %vm607, 65537, 0
        %v672 = vsel %vm608, 65537, 0
        %v673 = vsel %vm609, 65537, 0
        %v674 = vsel %vm610, 65537, 0
        %v675 = vsel %vm611, 65537, 0
        %v676 = vsel %vm612, 65537, 0
        %v677 = vsel %vm613, 65537, 0
        %v678 = vsel %vm614, 65537, 0
        %v679 = vsel %vm615, 65537, 0
        %v680 = vsel %vm616, 65537, 0
        %v681 = vsel %vm617, 65537, 0
        %v682 = vsel %vm618, 65537, 0
        %v683 = vsel %vm619, 65537, 0
        %v684 = vsel %vm620, 65537, 0
        %v685 = vsel %vm621, 65537, 0
        %v686 = vsel %vm622, 65537, 0
        %v687 = vsel %vm623, 65537, 0
        %v688 = vsel %vm624, 65537, 0
        %v689 = vsel %vm625, 65537, 0
        %v690 = vsel %vm626, 65537, 0
        %v691 = vsel %vm627, 65537, 0
        %v692 = vsel %vm628, 65537, 0
        %v693 = vsel %vm629, 65537, 0
        %v694 = vsel %vm630, 65537, 0
        %v695 = vsel %vm631, 65537, 0
        %v696 = vsel %vm632, 65537, 0
        %v697 = vsel %vm633, 65537, 0
        %v698 = vsel %vm634, 65537, 0
        %v699 = vsel %vm635, 65537, 0
        %v700 = vsel %vm636, 65537, 0
        %v701 = vsel %vm637, 65537, 0
        %v702 = vsel %vm638, 65537, 0
        %v703 = vsel %vm639, 65537, 0
        %v704 = vsel %vm640, 65537, 0
        %v705 = vsel %vm641, 65537, 0
        %v706 = vsel %vm642, 65537, 0
        %v707 = vsel %vm643, 65537, 0
        %v708 = vsel %vm644, 65537, 0
        %v709 = vsel %vm645, 65537, 0
        %v710 = vunpack.c.l.b16 %v646
        %v711 = vunpack.c.h.b16 %v646
        %v712 = vunpack.c.l.b16 %v647
        %v713 = vunpack.c.h.b16 %v647
        %v714 = vunpack.c.l.b16 %v648
        %v715 = vunpack.c.h.b16 %v648
        %v716 = vunpack.c.l.b16 %v649
        %v717 = vunpack.c.h.b16 %v649
        %v718 = vunpack.c.l.b16 %v650
        %v719 = vunpack.c.h.b16 %v650
        %v720 = vunpack.c.l.b16 %v651
        %v721 = vunpack.c.h.b16 %v651
        %v722 = vunpack.c.l.b16 %v652
        %v723 = vunpack.c.h.b16 %v652
        %v724 = vunpack.c.l.b16 %v653
        %v725 = vunpack.c.h.b16 %v653
        %v726 = vunpack.c.l.b16 %v654
        %v727 = vunpack.c.h.b16 %v654
        %v728 = vunpack.c.l.b16 %v655
        %v729 = vunpack.c.h.b16 %v655
        %v730 = vunpack.c.l.b16 %v656
        %v731 = vunpack.c.h.b16 %v656
        %v732 = vunpack.c.l.b16 %v657
        %v733 = vunpack.c.h.b16 %v657
        %v734 = vunpack.c.l.b16 %v658
        %v735 = vunpack.c.h.b16 %v658
        %v736 = vunpack.c.l.b16 %v659
        %v737 = vunpack.c.h.b16 %v659
        %v738 = vunpack.c.l.b16 %v660
        %v739 = vunpack.c.h.b16 %v660
        %v740 = vunpack.c.l.b16 %v661
        %v741 = vunpack.c.h.b16 %v661
        %v742 = vunpack.c.l.b16 %v662
        %v743 = vunpack.c.h.b16 %v662
        %v744 = vunpack.c.l.b16 %v663
        %v745 = vunpack.c.h.b16 %v663
        %v746 = vunpack.c.l.b16 %v664
        %v747 = vunpack.c.h.b16 %v664
        %v748 = vunpack.c.l.b16 %v665
        %v749 = vunpack.c.h.b16 %v665
        %v750 = vunpack.c.l.b16 %v666
        %v751 = vunpack.c.h.b16 %v666
        %v752 = vunpack.c.l.b16 %v667
        %v753 = vunpack.c.h.b16 %v667
        %v754 = vunpack.c.l.b16 %v668
        %v755 = vunpack.c.h.b16 %v668
        %v756 = vunpack.c.l.b16 %v669
        %v757 = vunpack.c.h.b16 %v669
        %v758 = vunpack.c.l.b16 %v670
        %v759 = vunpack.c.h.b16 %v670
        %v760 = vunpack.c.l.b16 %v671
        %v761 = vunpack.c.h.b16 %v671
        %v762 = vunpack.c.l.b16 %v672
        %v763 = vunpack.c.h.b16 %v672
        %v764 = vunpack.c.l.b16 %v673
        %v765 = vunpack.c.h.b16 %v673
        %v766 = vunpack.c.l.b16 %v674
        %v767 = vunpack.c.h.b16 %v674
        %v768 = vunpack.c.l.b16 %v675
        %v769 = vunpack.c.h.b16 %v675
        %v770 = vunpack.c.l.b16 %v676
        %v771 = vunpack.c.h.b16 %v676
        %v772 = vunpack.c.l.b16 %v677
        %v773 = vunpack.c.h.b16 %v677
        %v774 = vunpack.c.l.b16 %v678
        %v775 = vunpack.c.h.b16 %v678
        %v776 = vunpack.c.l.b16 %v679
        %v777 = vunpack.c.h.b16 %v679
        %v778 = vunpack.c.l.b16 %v680
        %v779 = vunpack.c.h.b16 %v680
        %v780 = vunpack.c.l.b16 %v681
        %v781 = vunpack.c.h.b16 %v681
        %v782 = vunpack.c.l.b16 %v682
        %v783 = vunpack.c.h.b16 %v682
        %v784 = vunpack.c.l.b16 %v683
        %v785 = vunpack.c.h.b16 %v683
        %v786 = vunpack.c.l.b16 %v684
        %v787 = vunpack.c.h.b16 %v684
        %v788 = vunpack.c.l.b16 %v685
        %v789 = vunpack.c.h.b16 %v685
        %v790 = vunpack.c.l.b16 %v686
        %v791 = vunpack.c.h.b16 %v686
        %v792 = vunpack.c.l.b16 %v687
        %v793 = vunpack.c.h.b16 %v687
        %v794 = vunpack.c.l.b16 %v688
        %v795 = vunpack.c.h.b16 %v688
        %v796 = vunpack.c.l.b16 %v689
        %v797 = vunpack.c.h.b16 %v689
        %v798 = vunpack.c.l.b16 %v690
        %v799 = vunpack.c.h.b16 %v690
        %v800 = vunpack.c.l.b16 %v691
        %v801 = vunpack.c.h.b16 %v691
        %v802 = vunpack.c.l.b16 %v692
        %v803 = vunpack.c.h.b16 %v692
        %v804 = vunpack.c.l.b16 %v693
        %v805 = vunpack.c.h.b16 %v693
        %v806 = vunpack.c.l.b16 %v694
        %v807 = vunpack.c.h.b16 %v694
        %v808 = vunpack.c.l.b16 %v695
        %v809 = vunpack.c.h.b16 %v695
        %v810 = vunpack.c.l.b16 %v696
        %v811 = vunpack.c.h.b16 %v696
        %v812 = vunpack.c.l.b16 %v697
        %v813 = vunpack.c.h.b16 %v697
        %v814 = vunpack.c.l.b16 %v698
        %v815 = vunpack.c.h.b16 %v698
        %v816 = vunpack.c.l.b16 %v699
        %v817 = vunpack.c.h.b16 %v699
        %v818 = vunpack.c.l.b16 %v700
        %v819 = vunpack.c.h.b16 %v700
        %v820 = vunpack.c.l.b16 %v701
        %v821 = vunpack.c.h.b16 %v701
        %v822 = vunpack.c.l.b16 %v702
        %v823 = vunpack.c.h.b16 %v702
        %v824 = vunpack.c.l.b16 %v703
        %v825 = vunpack.c.h.b16 %v703
        %v826 = vunpack.c.l.b16 %v704
        %v827 = vunpack.c.h.b16 %v704
        %v828 = vunpack.c.l.b16 %v705
        %v829 = vunpack.c.h.b16 %v705
        %v830 = vunpack.c.l.b16 %v706
        %v831 = vunpack.c.h.b16 %v706
        %v832 = vunpack.c.l.b16 %v707
        %v833 = vunpack.c.h.b16 %v707
        %v834 = vunpack.c.l.b16 %v708
        %v835 = vunpack.c.h.b16 %v708
        %v836 = vunpack.c.l.b16 %v709
        %v837 = vunpack.c.h.b16 %v709
        %vm838 = vcmp.ne.s32.totalorder %v710, 0
        %vm839 = vcmp.ne.s32.totalorder %v711, 0
        %vm840 = vcmp.ne.s32.totalorder %v712, 0
        %vm841 = vcmp.ne.s32.totalorder %v713, 0
        %vm842 = vcmp.ne.s32.totalorder %v714, 0
        %vm843 = vcmp.ne.s32.totalorder %v715, 0
        %vm844 = vcmp.ne.s32.totalorder %v716, 0
        %vm845 = vcmp.ne.s32.totalorder %v717, 0
        %vm846 = vcmp.ne.s32.totalorder %v718, 0
        %vm847 = vcmp.ne.s32.totalorder %v719, 0
        %vm848 = vcmp.ne.s32.totalorder %v720, 0
        %vm849 = vcmp.ne.s32.totalorder %v721, 0
        %vm850 = vcmp.ne.s32.totalorder %v722, 0
        %vm851 = vcmp.ne.s32.totalorder %v723, 0
        %vm852 = vcmp.ne.s32.totalorder %v724, 0
        %vm853 = vcmp.ne.s32.totalorder %v725, 0
        %vm854 = vcmp.ne.s32.totalorder %v726, 0
        %vm855 = vcmp.ne.s32.totalorder %v727, 0
        %vm856 = vcmp.ne.s32.totalorder %v728, 0
        %vm857 = vcmp.ne.s32.totalorder %v729, 0
        %vm858 = vcmp.ne.s32.totalorder %v730, 0
        %vm859 = vcmp.ne.s32.totalorder %v731, 0
        %vm860 = vcmp.ne.s32.totalorder %v732, 0
        %vm861 = vcmp.ne.s32.totalorder %v733, 0
        %vm862 = vcmp.ne.s32.totalorder %v734, 0
        %vm863 = vcmp.ne.s32.totalorder %v735, 0
        %vm864 = vcmp.ne.s32.totalorder %v736, 0
        %vm865 = vcmp.ne.s32.totalorder %v737, 0
        %vm866 = vcmp.ne.s32.totalorder %v738, 0
        %vm867 = vcmp.ne.s32.totalorder %v739, 0
        %vm868 = vcmp.ne.s32.totalorder %v740, 0
        %vm869 = vcmp.ne.s32.totalorder %v741, 0
        %vm870 = vcmp.ne.s32.totalorder %v742, 0
        %vm871 = vcmp.ne.s32.totalorder %v743, 0
        %vm872 = vcmp.ne.s32.totalorder %v744, 0
        %vm873 = vcmp.ne.s32.totalorder %v745, 0
        %vm874 = vcmp.ne.s32.totalorder %v746, 0
        %vm875 = vcmp.ne.s32.totalorder %v747, 0
        %vm876 = vcmp.ne.s32.totalorder %v748, 0
        %vm877 = vcmp.ne.s32.totalorder %v749, 0
        %vm878 = vcmp.ne.s32.totalorder %v750, 0
        %vm879 = vcmp.ne.s32.totalorder %v751, 0
        %vm880 = vcmp.ne.s32.totalorder %v752, 0
        %vm881 = vcmp.ne.s32.totalorder %v753, 0
        %vm882 = vcmp.ne.s32.totalorder %v754, 0
        %vm883 = vcmp.ne.s32.totalorder %v755, 0
        %vm884 = vcmp.ne.s32.totalorder %v756, 0
        %vm885 = vcmp.ne.s32.totalorder %v757, 0
        %vm886 = vcmp.ne.s32.totalorder %v758, 0
        %vm887 = vcmp.ne.s32.totalorder %v759, 0
        %vm888 = vcmp.ne.s32.totalorder %v760, 0
        %vm889 = vcmp.ne.s32.totalorder %v761, 0
        %vm890 = vcmp.ne.s32.totalorder %v762, 0
        %vm891 = vcmp.ne.s32.totalorder %v763, 0
        %vm892 = vcmp.ne.s32.totalorder %v764, 0
        %vm893 = vcmp.ne.s32.totalorder %v765, 0
        %vm894 = vcmp.ne.s32.totalorder %v766, 0
        %vm895 = vcmp.ne.s32.totalorder %v767, 0
        %vm896 = vcmp.ne.s32.totalorder %v768, 0
        %vm897 = vcmp.ne.s32.totalorder %v769, 0
        %vm898 = vcmp.ne.s32.totalorder %v770, 0
        %vm899 = vcmp.ne.s32.totalorder %v771, 0
        %vm900 = vcmp.ne.s32.totalorder %v772, 0
        %vm901 = vcmp.ne.s32.totalorder %v773, 0
        %vm902 = vcmp.ne.s32.totalorder %v774, 0
        %vm903 = vcmp.ne.s32.totalorder %v775, 0
        %vm904 = vcmp.ne.s32.totalorder %v776, 0
        %vm905 = vcmp.ne.s32.totalorder %v777, 0
        %vm906 = vcmp.ne.s32.totalorder %v778, 0
        %vm907 = vcmp.ne.s32.totalorder %v779, 0
        %vm908 = vcmp.ne.s32.totalorder %v780, 0
        %vm909 = vcmp.ne.s32.totalorder %v781, 0
        %vm910 = vcmp.ne.s32.totalorder %v782, 0
        %vm911 = vcmp.ne.s32.totalorder %v783, 0
        %vm912 = vcmp.ne.s32.totalorder %v784, 0
        %vm913 = vcmp.ne.s32.totalorder %v785, 0
        %vm914 = vcmp.ne.s32.totalorder %v786, 0
        %vm915 = vcmp.ne.s32.totalorder %v787, 0
        %vm916 = vcmp.ne.s32.totalorder %v788, 0
        %vm917 = vcmp.ne.s32.totalorder %v789, 0
        %vm918 = vcmp.ne.s32.totalorder %v790, 0
        %vm919 = vcmp.ne.s32.totalorder %v791, 0
        %vm920 = vcmp.ne.s32.totalorder %v792, 0
        %vm921 = vcmp.ne.s32.totalorder %v793, 0
        %vm922 = vcmp.ne.s32.totalorder %v794, 0
        %vm923 = vcmp.ne.s32.totalorder %v795, 0
        %vm924 = vcmp.ne.s32.totalorder %v796, 0
        %vm925 = vcmp.ne.s32.totalorder %v797, 0
        %vm926 = vcmp.ne.s32.totalorder %v798, 0
        %vm927 = vcmp.ne.s32.totalorder %v799, 0
        %vm928 = vcmp.ne.s32.totalorder %v800, 0
        %vm929 = vcmp.ne.s32.totalorder %v801, 0
        %vm930 = vcmp.ne.s32.totalorder %v802, 0
        %vm931 = vcmp.ne.s32.totalorder %v803, 0
        %vm932 = vcmp.ne.s32.totalorder %v804, 0
        %vm933 = vcmp.ne.s32.totalorder %v805, 0
        %vm934 = vcmp.ne.s32.totalorder %v806, 0
        %vm935 = vcmp.ne.s32.totalorder %v807, 0
        %vm936 = vcmp.ne.s32.totalorder %v808, 0
        %vm937 = vcmp.ne.s32.totalorder %v809, 0
        %vm938 = vcmp.ne.s32.totalorder %v810, 0
        %vm939 = vcmp.ne.s32.totalorder %v811, 0
        %vm940 = vcmp.ne.s32.totalorder %v812, 0
        %vm941 = vcmp.ne.s32.totalorder %v813, 0
        %vm942 = vcmp.ne.s32.totalorder %v814, 0
        %vm943 = vcmp.ne.s32.totalorder %v815, 0
        %vm944 = vcmp.ne.s32.totalorder %v816, 0
        %vm945 = vcmp.ne.s32.totalorder %v817, 0
        %vm946 = vcmp.ne.s32.totalorder %v818, 0
        %vm947 = vcmp.ne.s32.totalorder %v819, 0
        %vm948 = vcmp.ne.s32.totalorder %v820, 0
        %vm949 = vcmp.ne.s32.totalorder %v821, 0
        %vm950 = vcmp.ne.s32.totalorder %v822, 0
        %vm951 = vcmp.ne.s32.totalorder %v823, 0
        %vm952 = vcmp.ne.s32.totalorder %v824, 0
        %vm953 = vcmp.ne.s32.totalorder %v825, 0
        %vm954 = vcmp.ne.s32.totalorder %v826, 0
        %vm955 = vcmp.ne.s32.totalorder %v827, 0
        %vm956 = vcmp.ne.s32.totalorder %v828, 0
        %vm957 = vcmp.ne.s32.totalorder %v829, 0
        %vm958 = vcmp.ne.s32.totalorder %v830, 0
        %vm959 = vcmp.ne.s32.totalorder %v831, 0
        %vm960 = vcmp.ne.s32.totalorder %v832, 0
        %vm961 = vcmp.ne.s32.totalorder %v833, 0
        %vm962 = vcmp.ne.s32.totalorder %v834, 0
        %vm963 = vcmp.ne.s32.totalorder %v835, 0
        %vm964 = vcmp.ne.s32.totalorder %v836, 0
        %vm965 = vcmp.ne.s32.totalorder %v837, 0
        %v966 = vsel %vm838, 1, 0
        %v967 = vsel %vm839, 1, 0
        %v968 = vsel %vm840, 1, 0
        %v969 = vsel %vm841, 1, 0
        %v970 = vsel %vm842, 1, 0
        %v971 = vsel %vm843, 1, 0
        %v972 = vsel %vm844, 1, 0
        %v973 = vsel %vm845, 1, 0
        %v974 = vsel %vm846, 1, 0
        %v975 = vsel %vm847, 1, 0
        %v976 = vsel %vm848, 1, 0
        %v977 = vsel %vm849, 1, 0
        %v978 = vsel %vm850, 1, 0
        %v979 = vsel %vm851, 1, 0
        %v980 = vsel %vm852, 1, 0
        %v981 = vsel %vm853, 1, 0
        %v982 = vsel %vm854, 1, 0
        %v983 = vsel %vm855, 1, 0
        %v984 = vsel %vm856, 1, 0
        %v985 = vsel %vm857, 1, 0
        %v986 = vsel %vm858, 1, 0
        %v987 = vsel %vm859, 1, 0
        %v988 = vsel %vm860, 1, 0
        %v989 = vsel %vm861, 1, 0
        %v990 = vsel %vm862, 1, 0
        %v991 = vsel %vm863, 1, 0
        %v992 = vsel %vm864, 1, 0
        %v993 = vsel %vm865, 1, 0
        %v994 = vsel %vm866, 1, 0
        %v995 = vsel %vm867, 1, 0
        %v996 = vsel %vm868, 1, 0
        %v997 = vsel %vm869, 1, 0
        %v998 = vsel %vm870, 1, 0
        %v999 = vsel %vm871, 1, 0
        %v1000 = vsel %vm872, 1, 0
        %v1001 = vsel %vm873, 1, 0
        %v1002 = vsel %vm874, 1, 0
        %v1003 = vsel %vm875, 1, 0
        %v1004 = vsel %vm876, 1, 0
        %v1005 = vsel %vm877, 1, 0
        %v1006 = vsel %vm878, 1, 0
        %v1007 = vsel %vm879, 1, 0
        %v1008 = vsel %vm880, 1, 0
        %v1009 = vsel %vm881, 1, 0
        %v1010 = vsel %vm882, 1, 0
        %v1011 = vsel %vm883, 1, 0
        %v1012 = vsel %vm884, 1, 0
        %v1013 = vsel %vm885, 1, 0
        %v1014 = vsel %vm886, 1, 0
        %v1015 = vsel %vm887, 1, 0
        %v1016 = vsel %vm888, 1, 0
        %v1017 = vsel %vm889, 1, 0
        %v1018 = vsel %vm890, 1, 0
        %v1019 = vsel %vm891, 1, 0
        %v1020 = vsel %vm892, 1, 0
        %v1021 = vsel %vm893, 1, 0
        %v1022 = vsel %vm894, 1, 0
        %v1023 = vsel %vm895, 1, 0
        %v1024 = vsel %vm896, 1, 0
        %v1025 = vsel %vm897, 1, 0
        %v1026 = vsel %vm898, 1, 0
        %v1027 = vsel %vm899, 1, 0
        %v1028 = vsel %vm900, 1, 0
        %v1029 = vsel %vm901, 1, 0
        %v1030 = vsel %vm902, 1, 0
        %v1031 = vsel %vm903, 1, 0
        %v1032 = vsel %vm904, 1, 0
        %v1033 = vsel %vm905, 1, 0
        %v1034 = vsel %vm906, 1, 0
        %v1035 = vsel %vm907, 1, 0
        %v1036 = vsel %vm908, 1, 0
        %v1037 = vsel %vm909, 1, 0
        %v1038 = vsel %vm910, 1, 0
        %v1039 = vsel %vm911, 1, 0
        %v1040 = vsel %vm912, 1, 0
        %v1041 = vsel %vm913, 1, 0
        %v1042 = vsel %vm914, 1, 0
        %v1043 = vsel %vm915, 1, 0
        %v1044 = vsel %vm916, 1, 0
        %v1045 = vsel %vm917, 1, 0
        %v1046 = vsel %vm918, 1, 0
        %v1047 = vsel %vm919, 1, 0
        %v1048 = vsel %vm920, 1, 0
        %v1049 = vsel %vm921, 1, 0
        %v1050 = vsel %vm922, 1, 0
        %v1051 = vsel %vm923, 1, 0
        %v1052 = vsel %vm924, 1, 0
        %v1053 = vsel %vm925, 1, 0
        %v1054 = vsel %vm926, 1, 0
        %v1055 = vsel %vm927, 1, 0
        %v1056 = vsel %vm928, 1, 0
        %v1057 = vsel %vm929, 1, 0
        %v1058 = vsel %vm930, 1, 0
        %v1059 = vsel %vm931, 1, 0
        %v1060 = vsel %vm932, 1, 0
        %v1061 = vsel %vm933, 1, 0
        %v1062 = vsel %vm934, 1, 0
        %v1063 = vsel %vm935, 1, 0
        %v1064 = vsel %vm936, 1, 0
        %v1065 = vsel %vm937, 1, 0
        %v1066 = vsel %vm938, 1, 0
        %v1067 = vsel %vm939, 1, 0
        %v1068 = vsel %vm940, 1, 0
        %v1069 = vsel %vm941, 1, 0
        %v1070 = vsel %vm942, 1, 0
        %v1071 = vsel %vm943, 1, 0
        %v1072 = vsel %vm944, 1, 0
        %v1073 = vsel %vm945, 1, 0
        %v1074 = vsel %vm946, 1, 0
        %v1075 = vsel %vm947, 1, 0
        %v1076 = vsel %vm948, 1, 0
        %v1077 = vsel %vm949, 1, 0
        %v1078 = vsel %vm950, 1, 0
        %v1079 = vsel %vm951, 1, 0
        %v1080 = vsel %vm952, 1, 0
        %v1081 = vsel %vm953, 1, 0
        %v1082 = vsel %vm954, 1, 0
        %v1083 = vsel %vm955, 1, 0
        %v1084 = vsel %vm956, 1, 0
        %v1085 = vsel %vm957, 1, 0
        %v1086 = vsel %vm958, 1, 0
        %v1087 = vsel %vm959, 1, 0
        %v1088 = vsel %vm960, 1, 0
        %v1089 = vsel %vm961, 1, 0
        %v1090 = vsel %vm962, 1, 0
        %v1091 = vsel %vm963, 1, 0
        %v1092 = vsel %vm964, 1, 0
        %v1093 = vsel %vm965, 1, 0
        %v1094 = vcvt.s32.f32 %v966
        %v1095 = vcvt.s32.f32 %v967
        %v1096 = vcvt.s32.f32 %v968
        %v1097 = vcvt.s32.f32 %v969
        %v1098 = vcvt.s32.f32 %v970
        %v1099 = vcvt.s32.f32 %v971
        %v1100 = vcvt.s32.f32 %v972
        %v1101 = vcvt.s32.f32 %v973
        %v1102 = vcvt.s32.f32 %v974
        %v1103 = vcvt.s32.f32 %v975
        %v1104 = vcvt.s32.f32 %v976
        %v1105 = vcvt.s32.f32 %v977
        %v1106 = vcvt.s32.f32 %v978
        %v1107 = vcvt.s32.f32 %v979
        %v1108 = vcvt.s32.f32 %v980
        %v1109 = vcvt.s32.f32 %v981
        %v1110 = vcvt.s32.f32 %v982
        %v1111 = vcvt.s32.f32 %v983
        %v1112 = vcvt.s32.f32 %v984
        %v1113 = vcvt.s32.f32 %v985
        %v1114 = vcvt.s32.f32 %v986
        %v1115 = vcvt.s32.f32 %v987
        %v1116 = vcvt.s32.f32 %v988
        %v1117 = vcvt.s32.f32 %v989
        %v1118 = vcvt.s32.f32 %v990
        %v1119 = vcvt.s32.f32 %v991
        %v1120 = vcvt.s32.f32 %v992
        %v1121 = vcvt.s32.f32 %v993
        %v1122 = vcvt.s32.f32 %v994
        %v1123 = vcvt.s32.f32 %v995
        %v1124 = vcvt.s32.f32 %v996
        %v1125 = vcvt.s32.f32 %v997
        %v1126 = vcvt.s32.f32 %v998
        %v1127 = vcvt.s32.f32 %v999
        %v1128 = vcvt.s32.f32 %v1000
        %v1129 = vcvt.s32.f32 %v1001
        %v1130 = vcvt.s32.f32 %v1002
        %v1131 = vcvt.s32.f32 %v1003
        %v1132 = vcvt.s32.f32 %v1004
        %v1133 = vcvt.s32.f32 %v1005
        %v1134 = vcvt.s32.f32 %v1006
        %v1135 = vcvt.s32.f32 %v1007
        %v1136 = vcvt.s32.f32 %v1008
        %v1137 = vcvt.s32.f32 %v1009
        %v1138 = vcvt.s32.f32 %v1010
        %v1139 = vcvt.s32.f32 %v1011
        %v1140 = vcvt.s32.f32 %v1012
        %v1141 = vcvt.s32.f32 %v1013
        %v1142 = vcvt.s32.f32 %v1014
        %v1143 = vcvt.s32.f32 %v1015
        %v1144 = vcvt.s32.f32 %v1016
        %v1145 = vcvt.s32.f32 %v1017
        %v1146 = vcvt.s32.f32 %v1018
        %v1147 = vcvt.s32.f32 %v1019
        %v1148 = vcvt.s32.f32 %v1020
        %v1149 = vcvt.s32.f32 %v1021
        %v1150 = vcvt.s32.f32 %v1022
        %v1151 = vcvt.s32.f32 %v1023
        %v1152 = vcvt.s32.f32 %v1024
        %v1153 = vcvt.s32.f32 %v1025
        %v1154 = vcvt.s32.f32 %v1026
        %v1155 = vcvt.s32.f32 %v1027
        %v1156 = vcvt.s32.f32 %v1028
        %v1157 = vcvt.s32.f32 %v1029
        %v1158 = vcvt.s32.f32 %v1030
        %v1159 = vcvt.s32.f32 %v1031
        %v1160 = vcvt.s32.f32 %v1032
        %v1161 = vcvt.s32.f32 %v1033
        %v1162 = vcvt.s32.f32 %v1034
        %v1163 = vcvt.s32.f32 %v1035
        %v1164 = vcvt.s32.f32 %v1036
        %v1165 = vcvt.s32.f32 %v1037
        %v1166 = vcvt.s32.f32 %v1038
        %v1167 = vcvt.s32.f32 %v1039
        %v1168 = vcvt.s32.f32 %v1040
        %v1169 = vcvt.s32.f32 %v1041
        %v1170 = vcvt.s32.f32 %v1042
        %v1171 = vcvt.s32.f32 %v1043
        %v1172 = vcvt.s32.f32 %v1044
        %v1173 = vcvt.s32.f32 %v1045
        %v1174 = vcvt.s32.f32 %v1046
        %v1175 = vcvt.s32.f32 %v1047
        %v1176 = vcvt.s32.f32 %v1048
        %v1177 = vcvt.s32.f32 %v1049
        %v1178 = vcvt.s32.f32 %v1050
        %v1179 = vcvt.s32.f32 %v1051
        %v1180 = vcvt.s32.f32 %v1052
        %v1181 = vcvt.s32.f32 %v1053
        %v1182 = vcvt.s32.f32 %v1054
        %v1183 = vcvt.s32.f32 %v1055
        %v1184 = vcvt.s32.f32 %v1056
        %v1185 = vcvt.s32.f32 %v1057
        %v1186 = vcvt.s32.f32 %v1058
        %v1187 = vcvt.s32.f32 %v1059
        %v1188 = vcvt.s32.f32 %v1060
        %v1189 = vcvt.s32.f32 %v1061
        %v1190 = vcvt.s32.f32 %v1062
        %v1191 = vcvt.s32.f32 %v1063
        %v1192 = vcvt.s32.f32 %v1064
        %v1193 = vcvt.s32.f32 %v1065
        %v1194 = vcvt.s32.f32 %v1066
        %v1195 = vcvt.s32.f32 %v1067
        %v1196 = vcvt.s32.f32 %v1068
        %v1197 = vcvt.s32.f32 %v1069
        %v1198 = vcvt.s32.f32 %v1070
        %v1199 = vcvt.s32.f32 %v1071
        %v1200 = vcvt.s32.f32 %v1072
        %v1201 = vcvt.s32.f32 %v1073
        %v1202 = vcvt.s32.f32 %v1074
        %v1203 = vcvt.s32.f32 %v1075
        %v1204 = vcvt.s32.f32 %v1076
        %v1205 = vcvt.s32.f32 %v1077
        %v1206 = vcvt.s32.f32 %v1078
        %v1207 = vcvt.s32.f32 %v1079
        %v1208 = vcvt.s32.f32 %v1080
        %v1209 = vcvt.s32.f32 %v1081
        %v1210 = vcvt.s32.f32 %v1082
        %v1211 = vcvt.s32.f32 %v1083
        %v1212 = vcvt.s32.f32 %v1084
        %v1213 = vcvt.s32.f32 %v1085
        %v1214 = vcvt.s32.f32 %v1086
        %v1215 = vcvt.s32.f32 %v1087
        %v1216 = vcvt.s32.f32 %v1088
        %v1217 = vcvt.s32.f32 %v1089
        %v1218 = vcvt.s32.f32 %v1090
        %v1219 = vcvt.s32.f32 %v1091
        %v1220 = vcvt.s32.f32 %v1092
        %v1221 = vcvt.s32.f32 %v1093
        %v1222 = vpack.c.bf16 %v1098, %v1094
        %v1223 = vpack.c.bf16 %v1099, %v1095
        %v1224 = vpack.c.bf16 %v1100, %v1096
        %v1225 = vpack.c.bf16 %v1101, %v1097
        %v1226 = vpack.c.bf16 %v1106, %v1102
        %v1227 = vpack.c.bf16 %v1107, %v1103
        %v1228 = vpack.c.bf16 %v1108, %v1104
        %v1229 = vpack.c.bf16 %v1109, %v1105
        %v1230 = vpack.c.bf16 %v1114, %v1110
        %v1231 = vpack.c.bf16 %v1115, %v1111
        %v1232 = vpack.c.bf16 %v1116, %v1112
        %v1233 = vpack.c.bf16 %v1117, %v1113
        %v1234 = vpack.c.bf16 %v1122, %v1118
        %v1235 = vpack.c.bf16 %v1123, %v1119
        %v1236 = vpack.c.bf16 %v1124, %v1120
        %v1237 = vpack.c.bf16 %v1125, %v1121
        %v1238 = vpack.c.bf16 %v1130, %v1126
        %v1239 = vpack.c.bf16 %v1131, %v1127
        %v1240 = vpack.c.bf16 %v1132, %v1128
        %v1241 = vpack.c.bf16 %v1133, %v1129
        %v1242 = vpack.c.bf16 %v1138, %v1134
        %v1243 = vpack.c.bf16 %v1139, %v1135
        %v1244 = vpack.c.bf16 %v1140, %v1136
        %v1245 = vpack.c.bf16 %v1141, %v1137
        %v1246 = vpack.c.bf16 %v1146, %v1142
        %v1247 = vpack.c.bf16 %v1147, %v1143
        %v1248 = vpack.c.bf16 %v1148, %v1144
        %v1249 = vpack.c.bf16 %v1149, %v1145
        %v1250 = vpack.c.bf16 %v1154, %v1150
        %v1251 = vpack.c.bf16 %v1155, %v1151
        %v1252 = vpack.c.bf16 %v1156, %v1152
        %v1253 = vpack.c.bf16 %v1157, %v1153
        %v1254 = vpack.c.bf16 %v1162, %v1158
        %v1255 = vpack.c.bf16 %v1163, %v1159
        %v1256 = vpack.c.bf16 %v1164, %v1160
        %v1257 = vpack.c.bf16 %v1165, %v1161
        %v1258 = vpack.c.bf16 %v1170, %v1166
        %v1259 = vpack.c.bf16 %v1171, %v1167
        %v1260 = vpack.c.bf16 %v1172, %v1168
        %v1261 = vpack.c.bf16 %v1173, %v1169
        %v1262 = vpack.c.bf16 %v1178, %v1174
        %v1263 = vpack.c.bf16 %v1179, %v1175
        %v1264 = vpack.c.bf16 %v1180, %v1176
        %v1265 = vpack.c.bf16 %v1181, %v1177
        %v1266 = vpack.c.bf16 %v1186, %v1182
        %v1267 = vpack.c.bf16 %v1187, %v1183
        %v1268 = vpack.c.bf16 %v1188, %v1184
        %v1269 = vpack.c.bf16 %v1189, %v1185
        %v1270 = vpack.c.bf16 %v1194, %v1190
        %v1271 = vpack.c.bf16 %v1195, %v1191
        %v1272 = vpack.c.bf16 %v1196, %v1192
        %v1273 = vpack.c.bf16 %v1197, %v1193
        %v1274 = vpack.c.bf16 %v1202, %v1198
        %v1275 = vpack.c.bf16 %v1203, %v1199
        %v1276 = vpack.c.bf16 %v1204, %v1200
        %v1277 = vpack.c.bf16 %v1205, %v1201
        %v1278 = vpack.c.bf16 %v1210, %v1206
        %v1279 = vpack.c.bf16 %v1211, %v1207
        %v1280 = vpack.c.bf16 %v1212, %v1208
        %v1281 = vpack.c.bf16 %v1213, %v1209
        %v1282 = vpack.c.bf16 %v1218, %v1214
        %v1283 = vpack.c.bf16 %v1219, %v1215
        %v1284 = vpack.c.bf16 %v1220, %v1216
        %v1285 = vpack.c.bf16 %v1221, %v1217
        %v1286 = vld [vmem:[%s3] sm:$0xf]
        %v1287 = vld [vmem:[%s3 + $0x4] sm:$0xf]
        %v1288 = vld [vmem:[%s3 + $0x8] sm:$0xf]
        %v1289 = vld [vmem:[%s3 + $0xc] sm:$0xf]
        %v1290 = vld [vmem:[%s3 + $0x10] sm:$0xf]
        %v1291 = vld [vmem:[%s3 + $0x14] sm:$0xf]
        %v1292 = vld [vmem:[%s3 + $0x18] sm:$0xf]
        %v1293 = vld [vmem:[%s3 + $0x1c] sm:$0xf]
        %v1294 = vld [vmem:[%s3 + $0x20] sm:$0xf]
        %v1295 = vld [vmem:[%s3 + $0x24] sm:$0xf]
        %v1296 = vld [vmem:[%s3 + $0x28] sm:$0xf]
        %v1297 = vld [vmem:[%s3 + $0x2c] sm:$0xf]
        %v1298 = vld [vmem:[%s3 + $0x30] sm:$0xf]
        %v1299 = vld [vmem:[%s3 + $0x34] sm:$0xf]
        %v1300 = vld [vmem:[%s3 + $0x38] sm:$0xf]
        %v1301 = vld [vmem:[%s3 + $0x3c] sm:$0xf]
        %v1302 = vld [vmem:[%s3 + $0x40] sm:$0xf]
        %v1303 = vld [vmem:[%s3 + $0x44] sm:$0xf]
        %v1304 = vld [vmem:[%s3 + $0x48] sm:$0xf]
        %v1305 = vld [vmem:[%s3 + $0x4c] sm:$0xf]
        %v1306 = vld [vmem:[%s3 + $0x50] sm:$0xf]
        %v1307 = vld [vmem:[%s3 + $0x54] sm:$0xf]
        %v1308 = vld [vmem:[%s3 + $0x58] sm:$0xf]
        %v1309 = vld [vmem:[%s3 + $0x5c] sm:$0xf]
        %v1310 = vld [vmem:[%s3 + $0x60] sm:$0xf]
        %v1311 = vld [vmem:[%s3 + $0x64] sm:$0xf]
        %v1312 = vld [vmem:[%s3 + $0x68] sm:$0xf]
        %v1313 = vld [vmem:[%s3 + $0x6c] sm:$0xf]
        %v1314 = vld [vmem:[%s3 + $0x70] sm:$0xf]
        %v1315 = vld [vmem:[%s3 + $0x74] sm:$0xf]
        %v1316 = vld [vmem:[%s3 + $0x78] sm:$0xf]
        %v1317 = vld [vmem:[%s3 + $0x7c] sm:$0xf]
        %v1318 = vld [vmem:[%s3 + $0x80] sm:$0xf]
        %v1319 = vld [vmem:[%s3 + $0x84] sm:$0xf]
        %v1320 = vld [vmem:[%s3 + $0x88] sm:$0xf]
        %v1321 = vld [vmem:[%s3 + $0x8c] sm:$0xf]
        %v1322 = vld [vmem:[%s3 + $0x90] sm:$0xf]
        %v1323 = vld [vmem:[%s3 + $0x94] sm:$0xf]
        %v1324 = vld [vmem:[%s3 + $0x98] sm:$0xf]
        %v1325 = vld [vmem:[%s3 + $0x9c] sm:$0xf]
        %v1326 = vld [vmem:[%s3 + $0xa0] sm:$0xf]
        %v1327 = vld [vmem:[%s3 + $0xa4] sm:$0xf]
        %v1328 = vld [vmem:[%s3 + $0xa8] sm:$0xf]
        %v1329 = vld [vmem:[%s3 + $0xac] sm:$0xf]
        %v1330 = vld [vmem:[%s3 + $0xb0] sm:$0xf]
        %v1331 = vld [vmem:[%s3 + $0xb4] sm:$0xf]
        %v1332 = vld [vmem:[%s3 + $0xb8] sm:$0xf]
        %v1333 = vld [vmem:[%s3 + $0xbc] sm:$0xf]
        %v1334 = vld [vmem:[%s3 + $0xc0] sm:$0xf]
        %v1335 = vld [vmem:[%s3 + $0xc4] sm:$0xf]
        %v1336 = vld [vmem:[%s3 + $0xc8] sm:$0xf]
        %v1337 = vld [vmem:[%s3 + $0xcc] sm:$0xf]
        %v1338 = vld [vmem:[%s3 + $0xd0] sm:$0xf]
        %v1339 = vld [vmem:[%s3 + $0xd4] sm:$0xf]
        %v1340 = vld [vmem:[%s3 + $0xd8] sm:$0xf]
        %v1341 = vld [vmem:[%s3 + $0xdc] sm:$0xf]
        %v1342 = vld [vmem:[%s3 + $0xe0] sm:$0xf]
        %v1343 = vld [vmem:[%s3 + $0xe4] sm:$0xf]
        %v1344 = vld [vmem:[%s3 + $0xe8] sm:$0xf]
        %v1345 = vld [vmem:[%s3 + $0xec] sm:$0xf]
        %v1346 = vld [vmem:[%s3 + $0xf0] sm:$0xf]
        %v1347 = vld [vmem:[%s3 + $0xf4] sm:$0xf]
        %v1348 = vld [vmem:[%s3 + $0xf8] sm:$0xf]
        %v1349 = vld [vmem:[%s3 + $0xfc] sm:$0xf]
        %v1350 = vld [vmem:[%s411] sm:$0xff]
        %v1351 = vld [vmem:[%s411 + $0x8] sm:$0xff]
        %v1352 = vld [vmem:[%s411 + $0x10] sm:$0xff]
        %v1353 = vld [vmem:[%s411 + $0x18] sm:$0xff]
        %v1354 = vld [vmem:[%s411 + $0x20] sm:$0xff]
        %v1355 = vld [vmem:[%s411 + $0x28] sm:$0xff]
        %v1356 = vld [vmem:[%s411 + $0x30] sm:$0xff]
        %v1357 = vld [vmem:[%s411 + $0x38] sm:$0xff]
        %v1358 = vld [vmem:[%s411 + $0x40] sm:$0xff]
        %v1359 = vld [vmem:[%s411 + $0x48] sm:$0xff]
        %v1360 = vld [vmem:[%s411 + $0x50] sm:$0xff]
        %v1361 = vld [vmem:[%s411 + $0x58] sm:$0xff]
        %v1362 = vld [vmem:[%s411 + $0x60] sm:$0xff]
        %v1363 = vld [vmem:[%s411 + $0x68] sm:$0xff]
        %v1364 = vld [vmem:[%s411 + $0x70] sm:$0xff]
        %v1365 = vld [vmem:[%s411 + $0x78] sm:$0xff]
        %v1366 = vld [vmem:[%s411 + $0x80] sm:$0xff]
        %v1367 = vld [vmem:[%s411 + $0x88] sm:$0xff]
        %v1368 = vld [vmem:[%s411 + $0x90] sm:$0xff]
        %v1369 = vld [vmem:[%s411 + $0x98] sm:$0xff]
        %v1370 = vld [vmem:[%s411 + $0xa0] sm:$0xff]
        %v1371 = vld [vmem:[%s411 + $0xa8] sm:$0xff]
        %v1372 = vld [vmem:[%s411 + $0xb0] sm:$0xff]
        %v1373 = vld [vmem:[%s411 + $0xb8] sm:$0xff]
        %v1374 = vld [vmem:[%s411 + $0xc0] sm:$0xff]
        %v1375 = vld [vmem:[%s411 + $0xc8] sm:$0xff]
        %v1376 = vld [vmem:[%s411 + $0xd0] sm:$0xff]
        %v1377 = vld [vmem:[%s411 + $0xd8] sm:$0xff]
        %v1378 = vld [vmem:[%s411 + $0xe0] sm:$0xff]
        %v1379 = vld [vmem:[%s411 + $0xe8] sm:$0xff]
        %v1380 = vld [vmem:[%s411 + $0xf0] sm:$0xff]
        %v1381 = vld [vmem:[%s411 + $0xf8] sm:$0xff]
        %v1382 = vld [vmem:[%s423] sm:$0xf]
        %v1383 = vld [vmem:[%s423 + $0x4] sm:$0xf]
        %v1384 = vld [vmem:[%s423 + $0x8] sm:$0xf]
        %v1385 = vld [vmem:[%s423 + $0xc] sm:$0xf]
        %v1386 = vld [vmem:[%s423 + $0x10] sm:$0xf]
        %v1387 = vld [vmem:[%s423 + $0x14] sm:$0xf]
        %v1388 = vld [vmem:[%s423 + $0x18] sm:$0xf]
        %v1389 = vld [vmem:[%s423 + $0x1c] sm:$0xf]
        %v1390 = vld [vmem:[%s423 + $0x20] sm:$0xf]
        %v1391 = vld [vmem:[%s423 + $0x24] sm:$0xf]
        %v1392 = vld [vmem:[%s423 + $0x28] sm:$0xf]
        %v1393 = vld [vmem:[%s423 + $0x2c] sm:$0xf]
        %v1394 = vld [vmem:[%s423 + $0x30] sm:$0xf]
        %v1395 = vld [vmem:[%s423 + $0x34] sm:$0xf]
        %v1396 = vld [vmem:[%s423 + $0x38] sm:$0xf]
        %v1397 = vld [vmem:[%s423 + $0x3c] sm:$0xf]
        %v1398 = vld [vmem:[%s423 + $0x40] sm:$0xf]
        %v1399 = vld [vmem:[%s423 + $0x44] sm:$0xf]
        %v1400 = vld [vmem:[%s423 + $0x48] sm:$0xf]
        %v1401 = vld [vmem:[%s423 + $0x4c] sm:$0xf]
        %v1402 = vld [vmem:[%s423 + $0x50] sm:$0xf]
        %v1403 = vld [vmem:[%s423 + $0x54] sm:$0xf]
        %v1404 = vld [vmem:[%s423 + $0x58] sm:$0xf]
        %v1405 = vld [vmem:[%s423 + $0x5c] sm:$0xf]
        %v1406 = vld [vmem:[%s423 + $0x60] sm:$0xf]
        %v1407 = vld [vmem:[%s423 + $0x64] sm:$0xf]
        %v1408 = vld [vmem:[%s423 + $0x68] sm:$0xf]
        %v1409 = vld [vmem:[%s423 + $0x6c] sm:$0xf]
        %v1410 = vld [vmem:[%s423 + $0x70] sm:$0xf]
        %v1411 = vld [vmem:[%s423 + $0x74] sm:$0xf]
        %v1412 = vld [vmem:[%s423 + $0x78] sm:$0xf]
        %v1413 = vld [vmem:[%s423 + $0x7c] sm:$0xf]
        %v1414 = vunpack.c.l.bf16 %v1382
        %v1415 = vunpack.c.l.bf16 %v1383
        %v1416 = vunpack.c.l.bf16 %v1384
        %v1417 = vunpack.c.l.bf16 %v1385
        %v1418 = vunpack.c.l.bf16 %v1386
        %v1419 = vunpack.c.l.bf16 %v1387
        %v1420 = vunpack.c.l.bf16 %v1388
        %v1421 = vunpack.c.l.bf16 %v1389
        %v1422 = vunpack.c.l.bf16 %v1390
        %v1423 = vunpack.c.l.bf16 %v1391
        %v1424 = vunpack.c.l.bf16 %v1392
        %v1425 = vunpack.c.l.bf16 %v1393
        %v1426 = vunpack.c.l.bf16 %v1394
        %v1427 = vunpack.c.l.bf16 %v1395
        %v1428 = vunpack.c.l.bf16 %v1396
        %v1429 = vunpack.c.l.bf16 %v1397
        %v1430 = vunpack.c.l.bf16 %v1398
        %v1431 = vunpack.c.l.bf16 %v1399
        %v1432 = vunpack.c.l.bf16 %v1400
        %v1433 = vunpack.c.l.bf16 %v1401
        %v1434 = vunpack.c.l.bf16 %v1402
        %v1435 = vunpack.c.l.bf16 %v1403
        %v1436 = vunpack.c.l.bf16 %v1404
        %v1437 = vunpack.c.l.bf16 %v1405
        %v1438 = vunpack.c.l.bf16 %v1406
        %v1439 = vunpack.c.l.bf16 %v1407
        %v1440 = vunpack.c.l.bf16 %v1408
        %v1441 = vunpack.c.l.bf16 %v1409
        %v1442 = vunpack.c.l.bf16 %v1410
        %v1443 = vunpack.c.l.bf16 %v1411
        %v1444 = vunpack.c.l.bf16 %v1412
        %v1445 = vunpack.c.l.bf16 %v1413
        %v1510 = vunpack.c.l.b16 %v518
        %v1511 = vunpack.c.h.b16 %v518
        %v1512 = vunpack.c.l.b16 %v519
        %v1513 = vunpack.c.h.b16 %v519
        %v1514 = vunpack.c.l.b16 %v520
        %v1515 = vunpack.c.h.b16 %v520
        %v1516 = vunpack.c.l.b16 %v521
        %v1517 = vunpack.c.h.b16 %v521
        %v1518 = vunpack.c.l.b16 %v522
        %v1519 = vunpack.c.h.b16 %v522
        %v1520 = vunpack.c.l.b16 %v523
        %v1521 = vunpack.c.h.b16 %v523
        %v1522 = vunpack.c.l.b16 %v524
        %v1523 = vunpack.c.h.b16 %v524
        %v1524 = vunpack.c.l.b16 %v525
        %v1525 = vunpack.c.h.b16 %v525
        %v1526 = vunpack.c.l.b16 %v526
        %v1527 = vunpack.c.h.b16 %v526
        %v1528 = vunpack.c.l.b16 %v527
        %v1529 = vunpack.c.h.b16 %v527
        %v1530 = vunpack.c.l.b16 %v528
        %v1531 = vunpack.c.h.b16 %v528
        %v1532 = vunpack.c.l.b16 %v529
        %v1533 = vunpack.c.h.b16 %v529
        %v1534 = vunpack.c.l.b16 %v530
        %v1535 = vunpack.c.h.b16 %v530
        %v1536 = vunpack.c.l.b16 %v531
        %v1537 = vunpack.c.h.b16 %v531
        %v1538 = vunpack.c.l.b16 %v532
        %v1539 = vunpack.c.h.b16 %v532
        %v1540 = vunpack.c.l.b16 %v533
        %v1541 = vunpack.c.h.b16 %v533
        %v1542 = vunpack.c.l.b16 %v534
        %v1543 = vunpack.c.h.b16 %v534
        %v1544 = vunpack.c.l.b16 %v535
        %v1545 = vunpack.c.h.b16 %v535
        %v1546 = vunpack.c.l.b16 %v536
        %v1547 = vunpack.c.h.b16 %v536
        %v1548 = vunpack.c.l.b16 %v537
        %v1549 = vunpack.c.h.b16 %v537
        %v1550 = vunpack.c.l.b16 %v538
        %v1551 = vunpack.c.h.b16 %v538
        %v1552 = vunpack.c.l.b16 %v539
        %v1553 = vunpack.c.h.b16 %v539
        %v1554 = vunpack.c.l.b16 %v540
        %v1555 = vunpack.c.h.b16 %v540
        %v1556 = vunpack.c.l.b16 %v541
        %v1557 = vunpack.c.h.b16 %v541
        %v1558 = vunpack.c.l.b16 %v542
        %v1559 = vunpack.c.h.b16 %v542
        %v1560 = vunpack.c.l.b16 %v543
        %v1561 = vunpack.c.h.b16 %v543
        %v1562 = vunpack.c.l.b16 %v544
        %v1563 = vunpack.c.h.b16 %v544
        %v1564 = vunpack.c.l.b16 %v545
        %v1565 = vunpack.c.h.b16 %v545
        %v1566 = vunpack.c.l.b16 %v546
        %v1567 = vunpack.c.h.b16 %v546
        %v1568 = vunpack.c.l.b16 %v547
        %v1569 = vunpack.c.h.b16 %v547
        %v1570 = vunpack.c.l.b16 %v548
        %v1571 = vunpack.c.h.b16 %v548
        %v1572 = vunpack.c.l.b16 %v549
        %v1573 = vunpack.c.h.b16 %v549
        %v1574 = vunpack.c.l.b16 %v550
        %v1575 = vunpack.c.h.b16 %v550
        %v1576 = vunpack.c.l.b16 %v551
        %v1577 = vunpack.c.h.b16 %v551
        %v1578 = vunpack.c.l.b16 %v552
        %v1579 = vunpack.c.h.b16 %v552
        %v1580 = vunpack.c.l.b16 %v553
        %v1581 = vunpack.c.h.b16 %v553
        %v1582 = vunpack.c.l.b16 %v554
        %v1583 = vunpack.c.h.b16 %v554
        %v1584 = vunpack.c.l.b16 %v555
        %v1585 = vunpack.c.h.b16 %v555
        %v1586 = vunpack.c.l.b16 %v556
        %v1587 = vunpack.c.h.b16 %v556
        %v1588 = vunpack.c.l.b16 %v557
        %v1589 = vunpack.c.h.b16 %v557
        %v1590 = vunpack.c.l.b16 %v558
        %v1591 = vunpack.c.h.b16 %v558
        %v1592 = vunpack.c.l.b16 %v559
        %v1593 = vunpack.c.h.b16 %v559
        %v1594 = vunpack.c.l.b16 %v560
        %v1595 = vunpack.c.h.b16 %v560
        %v1596 = vunpack.c.l.b16 %v561
        %v1597 = vunpack.c.h.b16 %v561
        %v1598 = vunpack.c.l.b16 %v562
        %v1599 = vunpack.c.h.b16 %v562
        %v1600 = vunpack.c.l.b16 %v563
        %v1601 = vunpack.c.h.b16 %v563
        %v1602 = vunpack.c.l.b16 %v564
        %v1603 = vunpack.c.h.b16 %v564
        %v1604 = vunpack.c.l.b16 %v565
        %v1605 = vunpack.c.h.b16 %v565
        %v1606 = vunpack.c.l.b16 %v566
        %v1607 = vunpack.c.h.b16 %v566
        %v1608 = vunpack.c.l.b16 %v567
        %v1609 = vunpack.c.h.b16 %v567
        %v1610 = vunpack.c.l.b16 %v568
        %v1611 = vunpack.c.h.b16 %v568
        %v1612 = vunpack.c.l.b16 %v569
        %v1613 = vunpack.c.h.b16 %v569
        %v1614 = vunpack.c.l.b16 %v570
        %v1615 = vunpack.c.h.b16 %v570
        %v1616 = vunpack.c.l.b16 %v571
        %v1617 = vunpack.c.h.b16 %v571
        %v1618 = vunpack.c.l.b16 %v572
        %v1619 = vunpack.c.h.b16 %v572
        %v1620 = vunpack.c.l.b16 %v573
        %v1621 = vunpack.c.h.b16 %v573
        %v1622 = vunpack.c.l.b16 %v574
        %v1623 = vunpack.c.h.b16 %v574
        %v1624 = vunpack.c.l.b16 %v575
        %v1625 = vunpack.c.h.b16 %v575
        %v1626 = vunpack.c.l.b16 %v576
        %v1627 = vunpack.c.h.b16 %v576
        %v1628 = vunpack.c.l.b16 %v577
        %v1629 = vunpack.c.h.b16 %v577
        %v1630 = vunpack.c.l.b16 %v578
        %v1631 = vunpack.c.h.b16 %v578
        %v1632 = vunpack.c.l.b16 %v579
        %v1633 = vunpack.c.h.b16 %v579
        %v1634 = vunpack.c.l.b16 %v580
        %v1635 = vunpack.c.h.b16 %v580
        %v1636 = vunpack.c.l.b16 %v581
        %v1637 = vunpack.c.h.b16 %v581
        %v1638 = vpack.c.b16 %v1514, %v1510
        %v1639 = vpack.c.b16 %v1515, %v1511
        %v1640 = vpack.c.b16 %v1516, %v1512
        %v1641 = vpack.c.b16 %v1517, %v1513
        %v1642 = vpack.c.b16 %v1522, %v1518
        %v1643 = vpack.c.b16 %v1523, %v1519
        %v1644 = vpack.c.b16 %v1524, %v1520
        %v1645 = vpack.c.b16 %v1525, %v1521
        %v1646 = vpack.c.b16 %v1530, %v1526
        %v1647 = vpack.c.b16 %v1531, %v1527
        %v1648 = vpack.c.b16 %v1532, %v1528
        %v1649 = vpack.c.b16 %v1533, %v1529
        %v1650 = vpack.c.b16 %v1538, %v1534
        %v1651 = vpack.c.b16 %v1539, %v1535
        %v1652 = vpack.c.b16 %v1540, %v1536
        %v1653 = vpack.c.b16 %v1541, %v1537
        %v1654 = vpack.c.b16 %v1546, %v1542
        %v1655 = vpack.c.b16 %v1547, %v1543
        %v1656 = vpack.c.b16 %v1548, %v1544
        %v1657 = vpack.c.b16 %v1549, %v1545
        %v1658 = vpack.c.b16 %v1554, %v1550
        %v1659 = vpack.c.b16 %v1555, %v1551
        %v1660 = vpack.c.b16 %v1556, %v1552
        %v1661 = vpack.c.b16 %v1557, %v1553
        %v1662 = vpack.c.b16 %v1562, %v1558
        %v1663 = vpack.c.b16 %v1563, %v1559
        %v1664 = vpack.c.b16 %v1564, %v1560
        %v1665 = vpack.c.b16 %v1565, %v1561
        %v1666 = vpack.c.b16 %v1570, %v1566
        %v1667 = vpack.c.b16 %v1571, %v1567
        %v1668 = vpack.c.b16 %v1572, %v1568
        %v1669 = vpack.c.b16 %v1573, %v1569
        %v1670 = vpack.c.b16 %v1578, %v1574
        %v1671 = vpack.c.b16 %v1579, %v1575
        %v1672 = vpack.c.b16 %v1580, %v1576
        %v1673 = vpack.c.b16 %v1581, %v1577
        %v1674 = vpack.c.b16 %v1586, %v1582
        %v1675 = vpack.c.b16 %v1587, %v1583
        %v1676 = vpack.c.b16 %v1588, %v1584
        %v1677 = vpack.c.b16 %v1589, %v1585
        %v1678 = vpack.c.b16 %v1594, %v1590
        %v1679 = vpack.c.b16 %v1595, %v1591
        %v1680 = vpack.c.b16 %v1596, %v1592
        %v1681 = vpack.c.b16 %v1597, %v1593
        %v1682 = vpack.c.b16 %v1602, %v1598
        %v1683 = vpack.c.b16 %v1603, %v1599
        %v1684 = vpack.c.b16 %v1604, %v1600
        %v1685 = vpack.c.b16 %v1605, %v1601
        %v1686 = vpack.c.b16 %v1610, %v1606
        %v1687 = vpack.c.b16 %v1611, %v1607
        %v1688 = vpack.c.b16 %v1612, %v1608
        %v1689 = vpack.c.b16 %v1613, %v1609
        %v1690 = vpack.c.b16 %v1618, %v1614
        %v1691 = vpack.c.b16 %v1619, %v1615
        %v1692 = vpack.c.b16 %v1620, %v1616
        %v1693 = vpack.c.b16 %v1621, %v1617
        %v1694 = vpack.c.b16 %v1626, %v1622
        %v1695 = vpack.c.b16 %v1627, %v1623
        %v1696 = vpack.c.b16 %v1628, %v1624
        %v1697 = vpack.c.b16 %v1629, %v1625
        %v1698 = vpack.c.b16 %v1634, %v1630
        %v1699 = vpack.c.b16 %v1635, %v1631
        %v1700 = vpack.c.b16 %v1636, %v1632
        %v1701 = vpack.c.b16 %v1637, %v1633
        %v1830 = vunpack.c.l.b16 %v1286
        %v1831 = vunpack.c.l.b16 %v1287
        %v1832 = vunpack.c.l.b16 %v1288
        %v1833 = vunpack.c.l.b16 %v1289
        %v1834 = vunpack.c.l.b16 %v1290
        %v1835 = vunpack.c.l.b16 %v1291
        %v1836 = vunpack.c.l.b16 %v1292
        %v1837 = vunpack.c.l.b16 %v1293
        %v1838 = vunpack.c.l.b16 %v1294
        %v1839 = vunpack.c.l.b16 %v1295
        %v1840 = vunpack.c.l.b16 %v1296
        %v1841 = vunpack.c.l.b16 %v1297
        %v1842 = vunpack.c.l.b16 %v1298
        %v1843 = vunpack.c.l.b16 %v1299
        %v1844 = vunpack.c.l.b16 %v1300
        %v1845 = vunpack.c.l.b16 %v1301
        %v1846 = vunpack.c.l.b16 %v1302
        %v1847 = vunpack.c.l.b16 %v1303
        %v1848 = vunpack.c.l.b16 %v1304
        %v1849 = vunpack.c.l.b16 %v1305
        %v1850 = vunpack.c.l.b16 %v1306
        %v1851 = vunpack.c.l.b16 %v1307
        %v1852 = vunpack.c.l.b16 %v1308
        %v1853 = vunpack.c.l.b16 %v1309
        %v1854 = vunpack.c.l.b16 %v1310
        %v1855 = vunpack.c.l.b16 %v1311
        %v1856 = vunpack.c.l.b16 %v1312
        %v1857 = vunpack.c.l.b16 %v1313
        %v1858 = vunpack.c.l.b16 %v1314
        %v1859 = vunpack.c.l.b16 %v1315
        %v1860 = vunpack.c.l.b16 %v1316
        %v1861 = vunpack.c.l.b16 %v1317
        %v1862 = vunpack.c.l.b16 %v1318
        %v1863 = vunpack.c.l.b16 %v1319
        %v1864 = vunpack.c.l.b16 %v1320
        %v1865 = vunpack.c.l.b16 %v1321
        %v1866 = vunpack.c.l.b16 %v1322
        %v1867 = vunpack.c.l.b16 %v1323
        %v1868 = vunpack.c.l.b16 %v1324
        %v1869 = vunpack.c.l.b16 %v1325
        %v1870 = vunpack.c.l.b16 %v1326
        %v1871 = vunpack.c.l.b16 %v1327
        %v1872 = vunpack.c.l.b16 %v1328
        %v1873 = vunpack.c.l.b16 %v1329
        %v1874 = vunpack.c.l.b16 %v1330
        %v1875 = vunpack.c.l.b16 %v1331
        %v1876 = vunpack.c.l.b16 %v1332
        %v1877 = vunpack.c.l.b16 %v1333
        %v1878 = vunpack.c.l.b16 %v1334
        %v1879 = vunpack.c.l.b16 %v1335
        %v1880 = vunpack.c.l.b16 %v1336
        %v1881 = vunpack.c.l.b16 %v1337
        %v1882 = vunpack.c.l.b16 %v1338
        %v1883 = vunpack.c.l.b16 %v1339
        %v1884 = vunpack.c.l.b16 %v1340
        %v1885 = vunpack.c.l.b16 %v1341
        %v1886 = vunpack.c.l.b16 %v1342
        %v1887 = vunpack.c.l.b16 %v1343
        %v1888 = vunpack.c.l.b16 %v1344
        %v1889 = vunpack.c.l.b16 %v1345
        %v1890 = vunpack.c.l.b16 %v1346
        %v1891 = vunpack.c.l.b16 %v1347
        %v1892 = vunpack.c.l.b16 %v1348
        %v1893 = vunpack.c.l.b16 %v1349
        %v1894 = vpack.c.b16 %v1831, %v1830
        %v1895 = vpack.c.b16 %v1833, %v1832
        %v1896 = vpack.c.b16 %v1835, %v1834
        %v1897 = vpack.c.b16 %v1837, %v1836
        %v1898 = vpack.c.b16 %v1839, %v1838
        %v1899 = vpack.c.b16 %v1841, %v1840
        %v1900 = vpack.c.b16 %v1843, %v1842
        %v1901 = vpack.c.b16 %v1845, %v1844
        %v1902 = vpack.c.b16 %v1847, %v1846
        %v1903 = vpack.c.b16 %v1849, %v1848
        %v1904 = vpack.c.b16 %v1851, %v1850
        %v1905 = vpack.c.b16 %v1853, %v1852
        %v1906 = vpack.c.b16 %v1855, %v1854
        %v1907 = vpack.c.b16 %v1857, %v1856
        %v1908 = vpack.c.b16 %v1859, %v1858
        %v1909 = vpack.c.b16 %v1861, %v1860
        %v1910 = vpack.c.b16 %v1863, %v1862
        %v1911 = vpack.c.b16 %v1865, %v1864
        %v1912 = vpack.c.b16 %v1867, %v1866
        %v1913 = vpack.c.b16 %v1869, %v1868
        %v1914 = vpack.c.b16 %v1871, %v1870
        %v1915 = vpack.c.b16 %v1873, %v1872
        %v1916 = vpack.c.b16 %v1875, %v1874
        %v1917 = vpack.c.b16 %v1877, %v1876
        %v1918 = vpack.c.b16 %v1879, %v1878
        %v1919 = vpack.c.b16 %v1881, %v1880
        %v1920 = vpack.c.b16 %v1883, %v1882
        %v1921 = vpack.c.b16 %v1885, %v1884
        %v1922 = vpack.c.b16 %v1887, %v1886
        %v1923 = vpack.c.b16 %v1889, %v1888
        %v1924 = vpack.c.b16 %v1891, %v1890
        %v1925 = vpack.c.b16 %v1893, %v1892
        %1958 = vmatprep.subr.bf16.mxu0 0
        %1959 = vmatpush1.bf16.msra.mxu0 %v1894
        %1960 = vmatprep.subr.bf16.mxu0 0
        %1961 = vmatpush1.bf16.msra.mxu0 %v1895
        %1962 = vmatprep.subr.bf16.mxu0 0
        %1963 = vmatpush1.bf16.msra.mxu0 %v1896
        %1964 = vmatprep.subr.bf16.mxu0 0
        %1965 = vmatpush1.bf16.msra.mxu0 %v1897
        %1966 = vmatprep.subr.bf16.mxu0 0
        %1967 = vmatpush1.bf16.msra.mxu0 %v1898
        %1968 = vmatprep.subr.bf16.mxu0 0
        %1969 = vmatpush1.bf16.msra.mxu0 %v1899
        %1970 = vmatprep.subr.bf16.mxu0 0
        %1971 = vmatpush1.bf16.msra.mxu0 %v1900
        %1972 = vmatprep.subr.bf16.mxu0 0
        %1973 = vmatpush1.bf16.msra.mxu0 %v1901
        %1974 = vmatprep.subr.bf16.mxu0 0
        %1975 = vmatpush1.bf16.msra.mxu0 %v1902
        %1976 = vmatprep.subr.bf16.mxu0 0
        %1977 = vmatpush1.bf16.msra.mxu0 %v1903
        %1978 = vmatprep.subr.bf16.mxu0 0
        %1979 = vmatpush1.bf16.msra.mxu0 %v1904
        %1980 = vmatprep.subr.bf16.mxu0 0
        %1981 = vmatpush1.bf16.msra.mxu0 %v1905
        %1982 = vmatprep.subr.bf16.mxu0 0
        %1983 = vmatpush1.bf16.msra.mxu0 %v1906
        %1984 = vmatprep.subr.bf16.mxu0 0
        %1985 = vmatpush1.bf16.msra.mxu0 %v1907
        %1986 = vmatprep.subr.bf16.mxu0 0
        %1987 = vmatpush1.bf16.msra.mxu0 %v1908
        %1988 = vmatprep.subr.bf16.mxu0 0
        %1989 = vmatpush1.bf16.msra.mxu0 %v1909
        %1990 = vmatprep.mubr.bf16.mxu0 %v1639
        %1991 = vmatmul.mubr.bf16.gmra.mrb[0].mxu0 %v1638
        %v1992 = vpop.f32.mrb[0].mxu0
        %v1993 = vadd.f32 %v1414, %v1992
        %v1994 = vpop.f32.mrb[0].mxu0
        %v1995 = vpop.f32.mrb[0].mxu0
        %v1996 = vadd.f32 %v1415, %v1995
        %v1997 = vpop.f32.mrb[0].mxu0
        %1998 = vmatprep.mubr.bf16.mxu0 %v1643
        %1999 = vmatmul.mubr.bf16.gmra.mrb[0].mxu0 %v1642
        %v2000 = vpop.f32.mrb[0].mxu0
        %v2001 = vadd.f32 %v1416, %v2000
        %v2002 = vpop.f32.mrb[0].mxu0
        %v2003 = vpop.f32.mrb[0].mxu0
        %v2004 = vadd.f32 %v1417, %v2003
        %v2005 = vpop.f32.mrb[0].mxu0
        %2006 = vmatprep.mubr.bf16.mxu0 %v1647
        %2007 = vmatmul.mubr.bf16.gmra.mrb[0].mxu0 %v1646
        %v2008 = vpop.f32.mrb[0].mxu0
        %v2009 = vadd.f32 %v1418, %v2008
        %v2010 = vpop.f32.mrb[0].mxu0
        %v2011 = vpop.f32.mrb[0].mxu0
        %v2012 = vadd.f32 %v1419, %v2011
        %v2013 = vpop.f32.mrb[0].mxu0
        %2014 = vmatprep.mubr.bf16.mxu0 %v1651
        %2015 = vmatmul.mubr.bf16.gmra.mrb[0].mxu0 %v1650
        %v2016 = vpop.f32.mrb[0].mxu0
        %v2017 = vadd.f32 %v1420, %v2016
        %v2018 = vpop.f32.mrb[0].mxu0
        %v2019 = vpop.f32.mrb[0].mxu0
        %v2020 = vadd.f32 %v1421, %v2019
        %v2021 = vpop.f32.mrb[0].mxu0
        %2022 = vmatprep.mubr.bf16.mxu0 %v1655
        %2023 = vmatmul.mubr.bf16.gmra.mrb[0].mxu0 %v1654
        %v2024 = vpop.f32.mrb[0].mxu0
        %v2025 = vadd.f32 %v1422, %v2024
        %v2026 = vpop.f32.mrb[0].mxu0
        %v2027 = vpop.f32.mrb[0].mxu0
        %v2028 = vadd.f32 %v1423, %v2027
        %v2029 = vpop.f32.mrb[0].mxu0
        %2030 = vmatprep.mubr.bf16.mxu0 %v1659
        %2031 = vmatmul.mubr.bf16.gmra.mrb[0].mxu0 %v1658
        %v2032 = vpop.f32.mrb[0].mxu0
        %v2033 = vadd.f32 %v1424, %v2032
        %v2034 = vpop.f32.mrb[0].mxu0
        %v2035 = vpop.f32.mrb[0].mxu0
        %v2036 = vadd.f32 %v1425, %v2035
        %v2037 = vpop.f32.mrb[0].mxu0
        %2038 = vmatprep.mubr.bf16.mxu0 %v1663
        %2039 = vmatmul.mubr.bf16.gmra.mrb[0].mxu0 %v1662
        %v2040 = vpop.f32.mrb[0].mxu0
        %v2041 = vadd.f32 %v1426, %v2040
        %v2042 = vpop.f32.mrb[0].mxu0
        %v2043 = vpop.f32.mrb[0].mxu0
        %v2044 = vadd.f32 %v1427, %v2043
        %v2045 = vpop.f32.mrb[0].mxu0
        %2046 = vmatprep.mubr.bf16.mxu0 %v1667
        %2047 = vmatmul.mubr.bf16.gmra.mrb[0].mxu0 %v1666
        %v2048 = vpop.f32.mrb[0].mxu0
        %v2049 = vadd.f32 %v1428, %v2048
        %v2050 = vpop.f32.mrb[0].mxu0
        %v2051 = vpop.f32.mrb[0].mxu0
        %v2052 = vadd.f32 %v1429, %v2051
        %v2053 = vpop.f32.mrb[0].mxu0
        %2054 = vmatprep.mubr.bf16.mxu0 %v1671
        %2055 = vmatmul.mubr.bf16.gmra.mrb[0].mxu0 %v1670
        %v2056 = vpop.f32.mrb[0].mxu0
        %v2057 = vadd.f32 %v1430, %v2056
        %v2058 = vpop.f32.mrb[0].mxu0
        %v2059 = vpop.f32.mrb[0].mxu0
        %v2060 = vadd.f32 %v1431, %v2059
        %v2061 = vpop.f32.mrb[0].mxu0
        %2062 = vmatprep.mubr.bf16.mxu0 %v1675
        %2063 = vmatmul.mubr.bf16.gmra.mrb[0].mxu0 %v1674
        %v2064 = vpop.f32.mrb[0].mxu0
        %v2065 = vadd.f32 %v1432, %v2064
        %v2066 = vpop.f32.mrb[0].mxu0
        %v2067 = vpop.f32.mrb[0].mxu0
        %v2068 = vadd.f32 %v1433, %v2067
        %v2069 = vpop.f32.mrb[0].mxu0
        %2070 = vmatprep.mubr.bf16.mxu0 %v1679
        %2071 = vmatmul.mubr.bf16.gmra.mrb[0].mxu0 %v1678
        %v2072 = vpop.f32.mrb[0].mxu0
        %v2073 = vadd.f32 %v1434, %v2072
        %v2074 = vpop.f32.mrb[0].mxu0
        %v2075 = vpop.f32.mrb[0].mxu0
        %v2076 = vadd.f32 %v1435, %v2075
        %v2077 = vpop.f32.mrb[0].mxu0
        %2078 = vmatprep.mubr.bf16.mxu0 %v1683
        %2079 = vmatmul.mubr.bf16.gmra.mrb[0].mxu0 %v1682
        %v2080 = vpop.f32.mrb[0].mxu0
        %v2081 = vadd.f32 %v1436, %v2080
        %v2082 = vpop.f32.mrb[0].mxu0
        %v2083 = vpop.f32.mrb[0].mxu0
        %v2084 = vadd.f32 %v1437, %v2083
        %v2085 = vpop.f32.mrb[0].mxu0
        %2086 = vmatprep.mubr.bf16.mxu0 %v1687
        %2087 = vmatmul.mubr.bf16.gmra.mrb[0].mxu0 %v1686
        %v2088 = vpop.f32.mrb[0].mxu0
        %v2089 = vadd.f32 %v1438, %v2088
        %v2090 = vpop.f32.mrb[0].mxu0
        %v2091 = vpop.f32.mrb[0].mxu0
        %v2092 = vadd.f32 %v1439, %v2091
        %v2093 = vpop.f32.mrb[0].mxu0
        %2094 = vmatprep.mubr.bf16.mxu0 %v1691
        %2095 = vmatmul.mubr.bf16.gmra.mrb[0].mxu0 %v1690
        %v2096 = vpop.f32.mrb[0].mxu0
        %v2097 = vadd.f32 %v1440, %v2096
        %v2098 = vpop.f32.mrb[0].mxu0
        %v2099 = vpop.f32.mrb[0].mxu0
        %v2100 = vadd.f32 %v1441, %v2099
        %v2101 = vpop.f32.mrb[0].mxu0
        %2102 = vmatprep.mubr.bf16.mxu0 %v1695
        %2103 = vmatmul.mubr.bf16.gmra.mrb[0].mxu0 %v1694
        %v2104 = vpop.f32.mrb[0].mxu0
        %v2105 = vadd.f32 %v1442, %v2104
        %v2106 = vpop.f32.mrb[0].mxu0
        %v2107 = vpop.f32.mrb[0].mxu0
        %v2108 = vadd.f32 %v1443, %v2107
        %v2109 = vpop.f32.mrb[0].mxu0
        %2110 = vmatprep.mubr.bf16.mxu0 %v1699
        %2111 = vmatmul.mubr.bf16.gmra.mrb[0].mxu0 %v1698
        %v2112 = vpop.f32.mrb[0].mxu0
        %v2113 = vadd.f32 %v1444, %v2112
        %v2114 = vpop.f32.mrb[0].mxu0
        %v2115 = vpop.f32.mrb[0].mxu0
        %v2116 = vadd.f32 %v1445, %v2115
        %v2117 = vpop.f32.mrb[0].mxu0
        %2118 = vdwg.mxu0
        %2119 = vmatprep.subr.bf16.mxu0 0
        %2120 = vmatpush1.bf16.msra.mxu0 %v1910
        %2121 = vmatprep.subr.bf16.mxu0 0
        %2122 = vmatpush1.bf16.msra.mxu0 %v1911
        %2123 = vmatprep.subr.bf16.mxu0 0
        %2124 = vmatpush1.bf16.msra.mxu0 %v1912
        %2125 = vmatprep.subr.bf16.mxu0 0
        %2126 = vmatpush1.bf16.msra.mxu0 %v1913
        %2127 = vmatprep.subr.bf16.mxu0 0
        %2128 = vmatpush1.bf16.msra.mxu0 %v1914
        %2129 = vmatprep.subr.bf16.mxu0 0
        %2130 = vmatpush1.bf16.msra.mxu0 %v1915
        %2131 = vmatprep.subr.bf16.mxu0 0
        %2132 = vmatpush1.bf16.msra.mxu0 %v1916
        %2133 = vmatprep.subr.bf16.mxu0 0
        %2134 = vmatpush1.bf16.msra.mxu0 %v1917
        %2135 = vmatprep.subr.bf16.mxu0 0
        %2136 = vmatpush1.bf16.msra.mxu0 %v1918
        %2137 = vmatprep.subr.bf16.mxu0 0
        %2138 = vmatpush1.bf16.msra.mxu0 %v1919
        %2139 = vmatprep.subr.bf16.mxu0 0
        %2140 = vmatpush1.bf16.msra.mxu0 %v1920
        %2141 = vmatprep.subr.bf16.mxu0 0
        %2142 = vmatpush1.bf16.msra.mxu0 %v1921
        %2143 = vmatprep.subr.bf16.mxu0 0
        %2144 = vmatpush1.bf16.msra.mxu0 %v1922
        %2145 = vmatprep.subr.bf16.mxu0 0
        %2146 = vmatpush1.bf16.msra.mxu0 %v1923
        %2147 = vmatprep.subr.bf16.mxu0 0
        %2148 = vmatpush1.bf16.msra.mxu0 %v1924
        %2149 = vmatprep.subr.bf16.mxu0 0
        %2150 = vmatpush1.bf16.msra.mxu0 %v1925
        %2151 = vmatprep.mubr.bf16.mxu0 %v1641
        %2152 = vmatmul.mubr.bf16.gmra.mrb[0].mxu0 %v1640
        %v2153 = vpop.f32.mrb[0].mxu0
        %v2154 = vadd.f32 %v1993, %v2153
        %v2155 = vpop.f32.mrb[0].mxu0
        %v2156 = vpop.f32.mrb[0].mxu0
        %v2157 = vadd.f32 %v1996, %v2156
        %v2158 = vpop.f32.mrb[0].mxu0
        %2159 = vmatprep.mubr.bf16.mxu0 %v1645
        %2160 = vmatmul.mubr.bf16.gmra.mrb[0].mxu0 %v1644
        %v2161 = vpop.f32.mrb[0].mxu0
        %v2162 = vadd.f32 %v2001, %v2161
        %v2163 = vpop.f32.mrb[0].mxu0
        %v2164 = vpop.f32.mrb[0].mxu0
        %v2165 = vadd.f32 %v2004, %v2164
        %v2166 = vpop.f32.mrb[0].mxu0
        %2167 = vmatprep.mubr.bf16.mxu0 %v1649
        %2168 = vmatmul.mubr.bf16.gmra.mrb[0].mxu0 %v1648
        %v2169 = vpop.f32.mrb[0].mxu0
        %v2170 = vadd.f32 %v2009, %v2169
        %v2171 = vpop.f32.mrb[0].mxu0
        %v2172 = vpop.f32.mrb[0].mxu0
        %v2173 = vadd.f32 %v2012, %v2172
        %v2174 = vpop.f32.mrb[0].mxu0
        %2175 = vmatprep.mubr.bf16.mxu0 %v1653
        %2176 = vmatmul.mubr.bf16.gmra.mrb[0].mxu0 %v1652
        %v2177 = vpop.f32.mrb[0].mxu0
        %v2178 = vadd.f32 %v2017, %v2177
        %v2179 = vpop.f32.mrb[0].mxu0
        %v2180 = vpop.f32.mrb[0].mxu0
        %v2181 = vadd.f32 %v2020, %v2180
        %v2182 = vpop.f32.mrb[0].mxu0
        %2183 = vmatprep.mubr.bf16.mxu0 %v1657
        %2184 = vmatmul.mubr.bf16.gmra.mrb[0].mxu0 %v1656
        %v2185 = vpop.f32.mrb[0].mxu0
        %v2186 = vadd.f32 %v2025, %v2185
        %v2187 = vpop.f32.mrb[0].mxu0
        %v2188 = vpop.f32.mrb[0].mxu0
        %v2189 = vadd.f32 %v2028, %v2188
        %v2190 = vpop.f32.mrb[0].mxu0
        %2191 = vmatprep.mubr.bf16.mxu0 %v1661
        %2192 = vmatmul.mubr.bf16.gmra.mrb[0].mxu0 %v1660
        %v2193 = vpop.f32.mrb[0].mxu0
        %v2194 = vadd.f32 %v2033, %v2193
        %v2195 = vpop.f32.mrb[0].mxu0
        %v2196 = vpop.f32.mrb[0].mxu0
        %v2197 = vadd.f32 %v2036, %v2196
        %v2198 = vpop.f32.mrb[0].mxu0
        %2199 = vmatprep.mubr.bf16.mxu0 %v1665
        %2200 = vmatmul.mubr.bf16.gmra.mrb[0].mxu0 %v1664
        %v2201 = vpop.f32.mrb[0].mxu0
        %v2202 = vadd.f32 %v2041, %v2201
        %v2203 = vpop.f32.mrb[0].mxu0
        %v2204 = vpop.f32.mrb[0].mxu0
        %v2205 = vadd.f32 %v2044, %v2204
        %v2206 = vpop.f32.mrb[0].mxu0
        %2207 = vmatprep.mubr.bf16.mxu0 %v1669
        %2208 = vmatmul.mubr.bf16.gmra.mrb[0].mxu0 %v1668
        %v2209 = vpop.f32.mrb[0].mxu0
        %v2210 = vadd.f32 %v2049, %v2209
        %v2211 = vpop.f32.mrb[0].mxu0
        %v2212 = vpop.f32.mrb[0].mxu0
        %v2213 = vadd.f32 %v2052, %v2212
        %v2214 = vpop.f32.mrb[0].mxu0
        %2215 = vmatprep.mubr.bf16.mxu0 %v1673
        %2216 = vmatmul.mubr.bf16.gmra.mrb[0].mxu0 %v1672
        %v2217 = vpop.f32.mrb[0].mxu0
        %v2218 = vadd.f32 %v2057, %v2217
        %v2219 = vpop.f32.mrb[0].mxu0
        %v2220 = vpop.f32.mrb[0].mxu0
        %v2221 = vadd.f32 %v2060, %v2220
        %v2222 = vpop.f32.mrb[0].mxu0
        %2223 = vmatprep.mubr.bf16.mxu0 %v1677
        %2224 = vmatmul.mubr.bf16.gmra.mrb[0].mxu0 %v1676
        %v2225 = vpop.f32.mrb[0].mxu0
        %v2226 = vadd.f32 %v2065, %v2225
        %v2227 = vpop.f32.mrb[0].mxu0
        %v2228 = vpop.f32.mrb[0].mxu0
        %v2229 = vadd.f32 %v2068, %v2228
        %v2230 = vpop.f32.mrb[0].mxu0
        %2231 = vmatprep.mubr.bf16.mxu0 %v1681
        %2232 = vmatmul.mubr.bf16.gmra.mrb[0].mxu0 %v1680
        %v2233 = vpop.f32.mrb[0].mxu0
        %v2234 = vadd.f32 %v2073, %v2233
        %v2235 = vpop.f32.mrb[0].mxu0
        %v2236 = vpop.f32.mrb[0].mxu0
        %v2237 = vadd.f32 %v2076, %v2236
        %v2238 = vpop.f32.mrb[0].mxu0
        %2239 = vmatprep.mubr.bf16.mxu0 %v1685
        %2240 = vmatmul.mubr.bf16.gmra.mrb[0].mxu0 %v1684
        %v2241 = vpop.f32.mrb[0].mxu0
        %v2242 = vadd.f32 %v2081, %v2241
        %v2243 = vpop.f32.mrb[0].mxu0
        %v2244 = vpop.f32.mrb[0].mxu0
        %v2245 = vadd.f32 %v2084, %v2244
        %v2246 = vpop.f32.mrb[0].mxu0
        %2247 = vmatprep.mubr.bf16.mxu0 %v1689
        %2248 = vmatmul.mubr.bf16.gmra.mrb[0].mxu0 %v1688
        %v2249 = vpop.f32.mrb[0].mxu0
        %v2250 = vadd.f32 %v2089, %v2249
        %v2251 = vpop.f32.mrb[0].mxu0
        %v2252 = vpop.f32.mrb[0].mxu0
        %v2253 = vadd.f32 %v2092, %v2252
        %v2254 = vpop.f32.mrb[0].mxu0
        %2255 = vmatprep.mubr.bf16.mxu0 %v1693
        %2256 = vmatmul.mubr.bf16.gmra.mrb[0].mxu0 %v1692
        %v2257 = vpop.f32.mrb[0].mxu0
        %v2258 = vadd.f32 %v2097, %v2257
        %v2259 = vpop.f32.mrb[0].mxu0
        %v2260 = vpop.f32.mrb[0].mxu0
        %v2261 = vadd.f32 %v2100, %v2260
        %v2262 = vpop.f32.mrb[0].mxu0
        %2263 = vmatprep.mubr.bf16.mxu0 %v1697
        %2264 = vmatmul.mubr.bf16.gmra.mrb[0].mxu0 %v1696
        %v2265 = vpop.f32.mrb[0].mxu0
        %v2266 = vadd.f32 %v2105, %v2265
        %v2267 = vpop.f32.mrb[0].mxu0
        %v2268 = vpop.f32.mrb[0].mxu0
        %v2269 = vadd.f32 %v2108, %v2268
        %v2270 = vpop.f32.mrb[0].mxu0
        %2271 = vmatprep.mubr.bf16.mxu0 %v1701
        %2272 = vmatmul.mubr.bf16.gmra.mrb[0].mxu0 %v1700
        %v2273 = vpop.f32.mrb[0].mxu0
        %v2274 = vadd.f32 %v2113, %v2273
        %v2275 = vpop.f32.mrb[0].mxu0
        %v2276 = vpop.f32.mrb[0].mxu0
        %v2277 = vadd.f32 %v2116, %v2276
        %v2278 = vpop.f32.mrb[0].mxu0
        %2279 = vdwg.mxu0
        %2281 = vset.pattern.permute.xlu0 0
        %2282 = vperm.xlu0 %2281, %v1350
        %v2283 = vpop.permute.xlu0 %2282
        %2286 = vset.pattern.permute.xlu0 0
        %2287 = vperm.xlu0 %2286, %v1351
        %v2288 = vpop.permute.xlu0 %2287
        %2291 = vset.pattern.permute.xlu0 0
        %2292 = vperm.xlu0 %2291, %v1352
        %v2293 = vpop.permute.xlu0 %2292
        %2296 = vset.pattern.permute.xlu0 0
        %2297 = vperm.xlu0 %2296, %v1353
        %v2298 = vpop.permute.xlu0 %2297
        %2301 = vset.pattern.permute.xlu0 0
        %2302 = vperm.xlu0 %2301, %v1354
        %v2303 = vpop.permute.xlu0 %2302
        %2306 = vset.pattern.permute.xlu0 0
        %2307 = vperm.xlu0 %2306, %v1355
        %v2308 = vpop.permute.xlu0 %2307
        %2311 = vset.pattern.permute.xlu0 0
        %2312 = vperm.xlu0 %2311, %v1356
        %v2313 = vpop.permute.xlu0 %2312
        %2316 = vset.pattern.permute.xlu0 0
        %2317 = vperm.xlu0 %2316, %v1357
        %v2318 = vpop.permute.xlu0 %2317
        %2321 = vset.pattern.permute.xlu0 0
        %2322 = vperm.xlu0 %2321, %v1358
        %v2323 = vpop.permute.xlu0 %2322
        %2326 = vset.pattern.permute.xlu0 0
        %2327 = vperm.xlu0 %2326, %v1359
        %v2328 = vpop.permute.xlu0 %2327
        %2331 = vset.pattern.permute.xlu0 0
        %2332 = vperm.xlu0 %2331, %v1360
        %v2333 = vpop.permute.xlu0 %2332
        %2336 = vset.pattern.permute.xlu0 0
        %2337 = vperm.xlu0 %2336, %v1361
        %v2338 = vpop.permute.xlu0 %2337
        %2341 = vset.pattern.permute.xlu0 0
        %2342 = vperm.xlu0 %2341, %v1362
        %v2343 = vpop.permute.xlu0 %2342
        %2346 = vset.pattern.permute.xlu0 0
        %2347 = vperm.xlu0 %2346, %v1363
        %v2348 = vpop.permute.xlu0 %2347
        %2351 = vset.pattern.permute.xlu0 0
        %2352 = vperm.xlu0 %2351, %v1364
        %v2353 = vpop.permute.xlu0 %2352
        %2356 = vset.pattern.permute.xlu0 0
        %2357 = vperm.xlu0 %2356, %v1365
        %v2358 = vpop.permute.xlu0 %2357
        %2361 = vset.pattern.permute.xlu0 0
        %2362 = vperm.xlu0 %2361, %v1366
        %v2363 = vpop.permute.xlu0 %2362
        %2366 = vset.pattern.permute.xlu0 0
        %2367 = vperm.xlu0 %2366, %v1367
        %v2368 = vpop.permute.xlu0 %2367
        %2371 = vset.pattern.permute.xlu0 0
        %2372 = vperm.xlu0 %2371, %v1368
        %v2373 = vpop.permute.xlu0 %2372
        %2376 = vset.pattern.permute.xlu0 0
        %2377 = vperm.xlu0 %2376, %v1369
        %v2378 = vpop.permute.xlu0 %2377
        %2381 = vset.pattern.permute.xlu0 0
        %2382 = vperm.xlu0 %2381, %v1370
        %v2383 = vpop.permute.xlu0 %2382
        %2386 = vset.pattern.permute.xlu0 0
        %2387 = vperm.xlu0 %2386, %v1371
        %v2388 = vpop.permute.xlu0 %2387
        %2391 = vset.pattern.permute.xlu0 0
        %2392 = vperm.xlu0 %2391, %v1372
        %v2393 = vpop.permute.xlu0 %2392
        %2396 = vset.pattern.permute.xlu0 0
        %2397 = vperm.xlu0 %2396, %v1373
        %v2398 = vpop.permute.xlu0 %2397
        %2401 = vset.pattern.permute.xlu0 0
        %2402 = vperm.xlu0 %2401, %v1374
        %v2403 = vpop.permute.xlu0 %2402
        %2406 = vset.pattern.permute.xlu0 0
        %2407 = vperm.xlu0 %2406, %v1375
        %v2408 = vpop.permute.xlu0 %2407
        %2411 = vset.pattern.permute.xlu0 0
        %2412 = vperm.xlu0 %2411, %v1376
        %v2413 = vpop.permute.xlu0 %2412
        %2416 = vset.pattern.permute.xlu0 0
        %2417 = vperm.xlu0 %2416, %v1377
        %v2418 = vpop.permute.xlu0 %2417
        %2421 = vset.pattern.permute.xlu0 0
        %2422 = vperm.xlu0 %2421, %v1378
        %v2423 = vpop.permute.xlu0 %2422
        %2426 = vset.pattern.permute.xlu0 0
        %2427 = vperm.xlu0 %2426, %v1379
        %v2428 = vpop.permute.xlu0 %2427
        %2431 = vset.pattern.permute.xlu0 0
        %2432 = vperm.xlu0 %2431, %v1380
        %v2433 = vpop.permute.xlu0 %2432
        %2436 = vset.pattern.permute.xlu0 0
        %2437 = vperm.xlu0 %2436, %v1381
        %v2438 = vpop.permute.xlu0 %2437
        %v2440 = vmul.f32 %v2283, %v2154
        %v2441 = vmul.f32 %v2288, %v2157
        %v2442 = vmul.f32 %v2293, %v2162
        %v2443 = vmul.f32 %v2298, %v2165
        %v2444 = vmul.f32 %v2303, %v2170
        %v2445 = vmul.f32 %v2308, %v2173
        %v2446 = vmul.f32 %v2313, %v2178
        %v2447 = vmul.f32 %v2318, %v2181
        %v2448 = vmul.f32 %v2323, %v2186
        %v2449 = vmul.f32 %v2328, %v2189
        %v2450 = vmul.f32 %v2333, %v2194
        %v2451 = vmul.f32 %v2338, %v2197
        %v2452 = vmul.f32 %v2343, %v2202
        %v2453 = vmul.f32 %v2348, %v2205
        %v2454 = vmul.f32 %v2353, %v2210
        %v2455 = vmul.f32 %v2358, %v2213
        %v2456 = vmul.f32 %v2363, %v2218
        %v2457 = vmul.f32 %v2368, %v2221
        %v2458 = vmul.f32 %v2373, %v2226
        %v2459 = vmul.f32 %v2378, %v2229
        %v2460 = vmul.f32 %v2383, %v2234
        %v2461 = vmul.f32 %v2388, %v2237
        %v2462 = vmul.f32 %v2393, %v2242
        %v2463 = vmul.f32 %v2398, %v2245
        %v2464 = vmul.f32 %v2403, %v2250
        %v2465 = vmul.f32 %v2408, %v2253
        %v2466 = vmul.f32 %v2413, %v2258
        %v2467 = vmul.f32 %v2418, %v2261
        %v2468 = vmul.f32 %v2423, %v2266
        %v2469 = vmul.f32 %v2428, %v2269
        %v2470 = vmul.f32 %v2433, %v2274
        %v2471 = vmul.f32 %v2438, %v2277
        %v2472 = vld [vmem:[%s5] sm:$0x1]
        %v2474 = vlaneseq
        %v2475 = vshrl.u32 %v2474, 7
        %v2476 = vsub.s32 0, %v2475
        %v2477 = vrot.slane %v2472, %v2476
        %v2479 = vadd.f32 %v2440, %v2477
        %v2480 = vadd.f32 %v2441, %v2477
        %v2481 = vadd.f32 %v2442, %v2477
        %v2482 = vadd.f32 %v2443, %v2477
        %v2483 = vadd.f32 %v2444, %v2477
        %v2484 = vadd.f32 %v2445, %v2477
        %v2485 = vadd.f32 %v2446, %v2477
        %v2486 = vadd.f32 %v2447, %v2477
        %v2487 = vadd.f32 %v2448, %v2477
        %v2488 = vadd.f32 %v2449, %v2477
        %v2489 = vadd.f32 %v2450, %v2477
        %v2490 = vadd.f32 %v2451, %v2477
        %v2491 = vadd.f32 %v2452, %v2477
        %v2492 = vadd.f32 %v2453, %v2477
        %v2493 = vadd.f32 %v2454, %v2477
        %v2494 = vadd.f32 %v2455, %v2477
        %v2495 = vadd.f32 %v2456, %v2477
        %v2496 = vadd.f32 %v2457, %v2477
        %v2497 = vadd.f32 %v2458, %v2477
        %v2498 = vadd.f32 %v2459, %v2477
        %v2499 = vadd.f32 %v2460, %v2477
        %v2500 = vadd.f32 %v2461, %v2477
        %v2501 = vadd.f32 %v2462, %v2477
        %v2502 = vadd.f32 %v2463, %v2477
        %v2503 = vadd.f32 %v2464, %v2477
        %v2504 = vadd.f32 %v2465, %v2477
        %v2505 = vadd.f32 %v2466, %v2477
        %v2506 = vadd.f32 %v2467, %v2477
        %v2507 = vadd.f32 %v2468, %v2477
        %v2508 = vadd.f32 %v2469, %v2477
        %v2509 = vadd.f32 %v2470, %v2477
        %v2510 = vadd.f32 %v2471, %v2477
        %v2511 = vmax.f32 %v2479, 0.0
        %v2512 = vmax.f32 %v2480, 0.0
        %v2513 = vmax.f32 %v2481, 0.0
        %v2514 = vmax.f32 %v2482, 0.0
        %v2515 = vmax.f32 %v2483, 0.0
        %v2516 = vmax.f32 %v2484, 0.0
        %v2517 = vmax.f32 %v2485, 0.0
        %v2518 = vmax.f32 %v2486, 0.0
        %v2519 = vmax.f32 %v2487, 0.0
        %v2520 = vmax.f32 %v2488, 0.0
        %v2521 = vmax.f32 %v2489, 0.0
        %v2522 = vmax.f32 %v2490, 0.0
        %v2523 = vmax.f32 %v2491, 0.0
        %v2524 = vmax.f32 %v2492, 0.0
        %v2525 = vmax.f32 %v2493, 0.0
        %v2526 = vmax.f32 %v2494, 0.0
        %v2527 = vmax.f32 %v2495, 0.0
        %v2528 = vmax.f32 %v2496, 0.0
        %v2529 = vmax.f32 %v2497, 0.0
        %v2530 = vmax.f32 %v2498, 0.0
        %v2531 = vmax.f32 %v2499, 0.0
        %v2532 = vmax.f32 %v2500, 0.0
        %v2533 = vmax.f32 %v2501, 0.0
        %v2534 = vmax.f32 %v2502, 0.0
        %v2535 = vmax.f32 %v2503, 0.0
        %v2536 = vmax.f32 %v2504, 0.0
        %v2537 = vmax.f32 %v2505, 0.0
        %v2538 = vmax.f32 %v2506, 0.0
        %v2539 = vmax.f32 %v2507, 0.0
        %v2540 = vmax.f32 %v2508, 0.0
        %v2541 = vmax.f32 %v2509, 0.0
        %v2542 = vmax.f32 %v2510, 0.0
        %v2543 = vpack.c.bf16 %v2512, %v2511
        %v2544 = vpack.c.bf16 %v2514, %v2513
        %v2545 = vpack.c.bf16 %v2516, %v2515
        %v2546 = vpack.c.bf16 %v2518, %v2517
        %v2547 = vpack.c.bf16 %v2520, %v2519
        %v2548 = vpack.c.bf16 %v2522, %v2521
        %v2549 = vpack.c.bf16 %v2524, %v2523
        %v2550 = vpack.c.bf16 %v2526, %v2525
        %v2551 = vpack.c.bf16 %v2528, %v2527
        %v2552 = vpack.c.bf16 %v2530, %v2529
        %v2553 = vpack.c.bf16 %v2532, %v2531
        %v2554 = vpack.c.bf16 %v2534, %v2533
        %v2555 = vpack.c.bf16 %v2536, %v2535
        %v2556 = vpack.c.bf16 %v2538, %v2537
        %v2557 = vpack.c.bf16 %v2540, %v2539
        %v2558 = vpack.c.bf16 %v2542, %v2541
        %v2559 = vld [vmem:[%s6] sm:$0xf]
        %v2560 = vld [vmem:[%s6 + $0x4] sm:$0xf]
        %v2561 = vld [vmem:[%s6 + $0x8] sm:$0xf]
        %v2562 = vld [vmem:[%s6 + $0xc] sm:$0xf]
        %v2563 = vld [vmem:[%s6 + $0x10] sm:$0xf]
        %v2564 = vld [vmem:[%s6 + $0x14] sm:$0xf]
        %v2565 = vld [vmem:[%s6 + $0x18] sm:$0xf]
        %v2566 = vld [vmem:[%s6 + $0x1c] sm:$0xf]
        %v2567 = vld [vmem:[%s7] sm:$0x1]
        %v2569 = vlaneseq
        %v2570 = vshrl.u32 %v2569, 7
        %v2571 = vsub.s32 0, %v2570
        %v2572 = vrot.slane %v2567, %v2571
        %v2582 = vunpack.c.l.b16 %v2559
        %v2583 = vunpack.c.l.b16 %v2560
        %v2584 = vunpack.c.l.b16 %v2561
        %v2585 = vunpack.c.l.b16 %v2562
        %v2586 = vunpack.c.l.b16 %v2563
        %v2587 = vunpack.c.l.b16 %v2564
        %v2588 = vunpack.c.l.b16 %v2565
        %v2589 = vunpack.c.l.b16 %v2566
        %v2590 = vpack.c.b16 %v2583, %v2582
        %v2591 = vpack.c.b16 %v2585, %v2584
        %v2592 = vpack.c.b16 %v2587, %v2586
        %v2593 = vpack.c.b16 %v2589, %v2588
        %vm2598 = vcmask 523264
        %v2600 = vsel %vm2598, %v2543, 0
        %v2603 = vsel %vm2598, %v2544, 0
        %v2606 = vsel %vm2598, %v2545, 0
        %v2609 = vsel %vm2598, %v2546, 0
        %v2612 = vsel %vm2598, %v2547, 0
        %v2615 = vsel %vm2598, %v2548, 0
        %v2618 = vsel %vm2598, %v2549, 0
        %v2621 = vsel %vm2598, %v2550, 0
        %v2624 = vsel %vm2598, %v2551, 0
        %v2627 = vsel %vm2598, %v2552, 0
        %v2630 = vsel %vm2598, %v2553, 0
        %v2633 = vsel %vm2598, %v2554, 0
        %v2636 = vsel %vm2598, %v2555, 0
        %v2639 = vsel %vm2598, %v2556, 0
        %v2642 = vsel %vm2598, %v2557, 0
        %v2645 = vsel %vm2598, %v2558, 0
        %2647 = vmatprep.subr.bf16.mxu0 0
        %2648 = vmatpush1.bf16.msra.mxu0 %v2590
        %2649 = vmatprep.subr.bf16.mxu0 0
        %2650 = vmatpush1.bf16.msra.mxu0 %v2591
        %2651 = vmatprep.subr.bf16.mxu0 0
        %2652 = vmatpush1.bf16.msra.mxu0 %v2592
        %2653 = vmatprep.subr.bf16.mxu0 0
        %2654 = vmatpush1.bf16.msra.mxu0 %v2593
        %2655 = vmatprep.subr.bf16.mxu0 0
        %2656 = vmatpush1.bf16.msra.mxu0 0
        %2657 = vmatprep.subr.bf16.mxu0 0
        %2658 = vmatpush1.bf16.msra.mxu0 0
        %2659 = vmatprep.subr.bf16.mxu0 0
        %2660 = vmatpush1.bf16.msra.mxu0 0
        %2661 = vmatprep.subr.bf16.mxu0 0
        %2662 = vmatpush1.bf16.msra.mxu0 0
        %2663 = vmatprep.subr.bf16.mxu0 0
        %2664 = vmatpush1.bf16.msra.mxu0 0
        %2665 = vmatprep.subr.bf16.mxu0 0
        %2666 = vmatpush1.bf16.msra.mxu0 0
        %2667 = vmatprep.subr.bf16.mxu0 0
        %2668 = vmatpush1.bf16.msra.mxu0 0
        %2669 = vmatprep.subr.bf16.mxu0 0
        %2670 = vmatpush1.bf16.msra.mxu0 0
        %2671 = vmatprep.subr.bf16.mxu0 0
        %2672 = vmatpush1.bf16.msra.mxu0 0
        %2673 = vmatprep.subr.bf16.mxu0 0
        %2674 = vmatpush1.bf16.msra.mxu0 0
        %2675 = vmatprep.subr.bf16.mxu0 0
        %2676 = vmatpush1.bf16.msra.mxu0 0
        %2677 = vmatprep.subr.bf16.mxu0 0
        %2678 = vmatpush1.bf16.msra.mxu0 0
        %2679 = vmatprep.mubr.bf16.mxu0 0
        %2680 = vmatmul.mubr.bf16.gmra.mrb[0].mxu0 %v2600
        %v2681 = vpop.f32.mrb[0].mxu0
        %v2682 = vadd.f32 %v2572, %v2681
        %v2683 = vpop.f32.mrb[0].mxu0
        %v2684 = vpop.f32.mrb[0].mxu0
        %v2685 = vadd.f32 %v2572, %v2684
        %v2686 = vpop.f32.mrb[0].mxu0
        %2687 = vmatprep.mubr.bf16.mxu0 0
        %2688 = vmatmul.mubr.bf16.gmra.mrb[0].mxu0 %v2603
        %v2689 = vpop.f32.mrb[0].mxu0
        %v2690 = vadd.f32 %v2572, %v2689
        %v2691 = vpop.f32.mrb[0].mxu0
        %v2692 = vpop.f32.mrb[0].mxu0
        %v2693 = vadd.f32 %v2572, %v2692
        %v2694 = vpop.f32.mrb[0].mxu0
        %2695 = vmatprep.mubr.bf16.mxu0 0
        %2696 = vmatmul.mubr.bf16.gmra.mrb[0].mxu0 %v2606
        %v2697 = vpop.f32.mrb[0].mxu0
        %v2698 = vadd.f32 %v2572, %v2697
        %v2699 = vpop.f32.mrb[0].mxu0
        %v2700 = vpop.f32.mrb[0].mxu0
        %v2701 = vadd.f32 %v2572, %v2700
        %v2702 = vpop.f32.mrb[0].mxu0
        %2703 = vmatprep.mubr.bf16.mxu0 0
        %2704 = vmatmul.mubr.bf16.gmra.mrb[0].mxu0 %v2609
        %v2705 = vpop.f32.mrb[0].mxu0
        %v2706 = vadd.f32 %v2572, %v2705
        %v2707 = vpop.f32.mrb[0].mxu0
        %v2708 = vpop.f32.mrb[0].mxu0
        %v2709 = vadd.f32 %v2572, %v2708
        %v2710 = vpop.f32.mrb[0].mxu0
        %2711 = vmatprep.mubr.bf16.mxu0 0
        %2712 = vmatmul.mubr.bf16.gmra.mrb[0].mxu0 %v2612
        %v2713 = vpop.f32.mrb[0].mxu0
        %v2714 = vadd.f32 %v2572, %v2713
        %v2715 = vpop.f32.mrb[0].mxu0
        %v2716 = vpop.f32.mrb[0].mxu0
        %v2717 = vadd.f32 %v2572, %v2716
        %v2718 = vpop.f32.mrb[0].mxu0
        %2719 = vmatprep.mubr.bf16.mxu0 0
        %2720 = vmatmul.mubr.bf16.gmra.mrb[0].mxu0 %v2615
        %v2721 = vpop.f32.mrb[0].mxu0
        %v2722 = vadd.f32 %v2572, %v2721
        %v2723 = vpop.f32.mrb[0].mxu0
        %v2724 = vpop.f32.mrb[0].mxu0
        %v2725 = vadd.f32 %v2572, %v2724
        %v2726 = vpop.f32.mrb[0].mxu0
        %2727 = vmatprep.mubr.bf16.mxu0 0
        %2728 = vmatmul.mubr.bf16.gmra.mrb[0].mxu0 %v2618
        %v2729 = vpop.f32.mrb[0].mxu0
        %v2730 = vadd.f32 %v2572, %v2729
        %v2731 = vpop.f32.mrb[0].mxu0
        %v2732 = vpop.f32.mrb[0].mxu0
        %v2733 = vadd.f32 %v2572, %v2732
        %v2734 = vpop.f32.mrb[0].mxu0
        %2735 = vmatprep.mubr.bf16.mxu0 0
        %2736 = vmatmul.mubr.bf16.gmra.mrb[0].mxu0 %v2621
        %v2737 = vpop.f32.mrb[0].mxu0
        %v2738 = vadd.f32 %v2572, %v2737
        %v2739 = vpop.f32.mrb[0].mxu0
        %v2740 = vpop.f32.mrb[0].mxu0
        %v2741 = vadd.f32 %v2572, %v2740
        %v2742 = vpop.f32.mrb[0].mxu0
        %2743 = vmatprep.mubr.bf16.mxu0 0
        %2744 = vmatmul.mubr.bf16.gmra.mrb[0].mxu0 %v2624
        %v2745 = vpop.f32.mrb[0].mxu0
        %v2746 = vadd.f32 %v2572, %v2745
        %v2747 = vpop.f32.mrb[0].mxu0
        %v2748 = vpop.f32.mrb[0].mxu0
        %v2749 = vadd.f32 %v2572, %v2748
        %v2750 = vpop.f32.mrb[0].mxu0
        %2751 = vmatprep.mubr.bf16.mxu0 0
        %2752 = vmatmul.mubr.bf16.gmra.mrb[0].mxu0 %v2627
        %v2753 = vpop.f32.mrb[0].mxu0
        %v2754 = vadd.f32 %v2572, %v2753
        %v2755 = vpop.f32.mrb[0].mxu0
        %v2756 = vpop.f32.mrb[0].mxu0
        %v2757 = vadd.f32 %v2572, %v2756
        %v2758 = vpop.f32.mrb[0].mxu0
        %2759 = vmatprep.mubr.bf16.mxu0 0
        %2760 = vmatmul.mubr.bf16.gmra.mrb[0].mxu0 %v2630
        %v2761 = vpop.f32.mrb[0].mxu0
        %v2762 = vadd.f32 %v2572, %v2761
        %v2763 = vpop.f32.mrb[0].mxu0
        %v2764 = vpop.f32.mrb[0].mxu0
        %v2765 = vadd.f32 %v2572, %v2764
        %v2766 = vpop.f32.mrb[0].mxu0
        %2767 = vmatprep.mubr.bf16.mxu0 0
        %2768 = vmatmul.mubr.bf16.gmra.mrb[0].mxu0 %v2633
        %v2769 = vpop.f32.mrb[0].mxu0
        %v2770 = vadd.f32 %v2572, %v2769
        %v2771 = vpop.f32.mrb[0].mxu0
        %v2772 = vpop.f32.mrb[0].mxu0
        %v2773 = vadd.f32 %v2572, %v2772
        %v2774 = vpop.f32.mrb[0].mxu0
        %2775 = vmatprep.mubr.bf16.mxu0 0
        %2776 = vmatmul.mubr.bf16.gmra.mrb[0].mxu0 %v2636
        %v2777 = vpop.f32.mrb[0].mxu0
        %v2778 = vadd.f32 %v2572, %v2777
        %v2779 = vpop.f32.mrb[0].mxu0
        %v2780 = vpop.f32.mrb[0].mxu0
        %v2781 = vadd.f32 %v2572, %v2780
        %v2782 = vpop.f32.mrb[0].mxu0
        %2783 = vmatprep.mubr.bf16.mxu0 0
        %2784 = vmatmul.mubr.bf16.gmra.mrb[0].mxu0 %v2639
        %v2785 = vpop.f32.mrb[0].mxu0
        %v2786 = vadd.f32 %v2572, %v2785
        %v2787 = vpop.f32.mrb[0].mxu0
        %v2788 = vpop.f32.mrb[0].mxu0
        %v2789 = vadd.f32 %v2572, %v2788
        %v2790 = vpop.f32.mrb[0].mxu0
        %2791 = vmatprep.mubr.bf16.mxu0 0
        %2792 = vmatmul.mubr.bf16.gmra.mrb[0].mxu0 %v2642
        %v2793 = vpop.f32.mrb[0].mxu0
        %v2794 = vadd.f32 %v2572, %v2793
        %v2795 = vpop.f32.mrb[0].mxu0
        %v2796 = vpop.f32.mrb[0].mxu0
        %v2797 = vadd.f32 %v2572, %v2796
        %v2798 = vpop.f32.mrb[0].mxu0
        %2799 = vmatprep.mubr.bf16.mxu0 0
        %2800 = vmatmul.mubr.bf16.gmra.mrb[0].mxu0 %v2645
        %v2801 = vpop.f32.mrb[0].mxu0
        %v2802 = vadd.f32 %v2572, %v2801
        %v2803 = vpop.f32.mrb[0].mxu0
        %v2804 = vpop.f32.mrb[0].mxu0
        %v2805 = vadd.f32 %v2572, %v2804
        %v2806 = vpop.f32.mrb[0].mxu0
        %2807 = vdwg.mxu0
        %2808 = vmax.xlane.f32.xlu0 %v2682
        %v2809 = vpop.xlane.xlu0 %2808
        %2810 = vmax.xlane.f32.xlu0 %v2685
        %v2811 = vpop.xlane.xlu0 %2810
        %2812 = vmax.xlane.f32.xlu0 %v2690
        %v2813 = vpop.xlane.xlu0 %2812
        %2814 = vmax.xlane.f32.xlu0 %v2693
        %v2815 = vpop.xlane.xlu0 %2814
        %2816 = vmax.xlane.f32.xlu0 %v2698
        %v2817 = vpop.xlane.xlu0 %2816
        %2818 = vmax.xlane.f32.xlu0 %v2701
        %v2819 = vpop.xlane.xlu0 %2818
        %2820 = vmax.xlane.f32.xlu0 %v2706
        %v2821 = vpop.xlane.xlu0 %2820
        %2822 = vmax.xlane.f32.xlu0 %v2709
        %v2823 = vpop.xlane.xlu0 %2822
        %2824 = vmax.xlane.f32.xlu0 %v2714
        %v2825 = vpop.xlane.xlu0 %2824
        %2826 = vmax.xlane.f32.xlu0 %v2717
        %v2827 = vpop.xlane.xlu0 %2826
        %2828 = vmax.xlane.f32.xlu0 %v2722
        %v2829 = vpop.xlane.xlu0 %2828
        %2830 = vmax.xlane.f32.xlu0 %v2725
        %v2831 = vpop.xlane.xlu0 %2830
        %2832 = vmax.xlane.f32.xlu0 %v2730
        %v2833 = vpop.xlane.xlu0 %2832
        %2834 = vmax.xlane.f32.xlu0 %v2733
        %v2835 = vpop.xlane.xlu0 %2834
        %2836 = vmax.xlane.f32.xlu0 %v2738
        %v2837 = vpop.xlane.xlu0 %2836
        %2838 = vmax.xlane.f32.xlu0 %v2741
        %v2839 = vpop.xlane.xlu0 %2838
        %2840 = vmax.xlane.f32.xlu0 %v2746
        %v2841 = vpop.xlane.xlu0 %2840
        %2842 = vmax.xlane.f32.xlu0 %v2749
        %v2843 = vpop.xlane.xlu0 %2842
        %2844 = vmax.xlane.f32.xlu0 %v2754
        %v2845 = vpop.xlane.xlu0 %2844
        %2846 = vmax.xlane.f32.xlu0 %v2757
        %v2847 = vpop.xlane.xlu0 %2846
        %2848 = vmax.xlane.f32.xlu0 %v2762
        %v2849 = vpop.xlane.xlu0 %2848
        %2850 = vmax.xlane.f32.xlu0 %v2765
        %v2851 = vpop.xlane.xlu0 %2850
        %2852 = vmax.xlane.f32.xlu0 %v2770
        %v2853 = vpop.xlane.xlu0 %2852
        %2854 = vmax.xlane.f32.xlu0 %v2773
        %v2855 = vpop.xlane.xlu0 %2854
        %2856 = vmax.xlane.f32.xlu0 %v2778
        %v2857 = vpop.xlane.xlu0 %2856
        %2858 = vmax.xlane.f32.xlu0 %v2781
        %v2859 = vpop.xlane.xlu0 %2858
        %2860 = vmax.xlane.f32.xlu0 %v2786
        %v2861 = vpop.xlane.xlu0 %2860
        %2862 = vmax.xlane.f32.xlu0 %v2789
        %v2863 = vpop.xlane.xlu0 %2862
        %2864 = vmax.xlane.f32.xlu0 %v2794
        %v2865 = vpop.xlane.xlu0 %2864
        %2866 = vmax.xlane.f32.xlu0 %v2797
        %v2867 = vpop.xlane.xlu0 %2866
        %2868 = vmax.xlane.f32.xlu0 %v2802
        %v2869 = vpop.xlane.xlu0 %2868
        %2870 = vmax.xlane.f32.xlu0 %v2805
        %v2871 = vpop.xlane.xlu0 %2870
        %v2872 = vsub.f32 %v2682, %v2809
        %v2873 = vsub.f32 %v2685, %v2811
        %v2874 = vsub.f32 %v2690, %v2813
        %v2875 = vsub.f32 %v2693, %v2815
        %v2876 = vsub.f32 %v2698, %v2817
        %v2877 = vsub.f32 %v2701, %v2819
        %v2878 = vsub.f32 %v2706, %v2821
        %v2879 = vsub.f32 %v2709, %v2823
        %v2880 = vsub.f32 %v2714, %v2825
        %v2881 = vsub.f32 %v2717, %v2827
        %v2882 = vsub.f32 %v2722, %v2829
        %v2883 = vsub.f32 %v2725, %v2831
        %v2884 = vsub.f32 %v2730, %v2833
        %v2885 = vsub.f32 %v2733, %v2835
        %v2886 = vsub.f32 %v2738, %v2837
        %v2887 = vsub.f32 %v2741, %v2839
        %v2888 = vsub.f32 %v2746, %v2841
        %v2889 = vsub.f32 %v2749, %v2843
        %v2890 = vsub.f32 %v2754, %v2845
        %v2891 = vsub.f32 %v2757, %v2847
        %v2892 = vsub.f32 %v2762, %v2849
        %v2893 = vsub.f32 %v2765, %v2851
        %v2894 = vsub.f32 %v2770, %v2853
        %v2895 = vsub.f32 %v2773, %v2855
        %v2896 = vsub.f32 %v2778, %v2857
        %v2897 = vsub.f32 %v2781, %v2859
        %v2898 = vsub.f32 %v2786, %v2861
        %v2899 = vsub.f32 %v2789, %v2863
        %v2900 = vsub.f32 %v2794, %v2865
        %v2901 = vsub.f32 %v2797, %v2867
        %v2902 = vsub.f32 %v2802, %v2869
        %v2903 = vsub.f32 %v2805, %v2871
        %v2904 = vmul.f32 %v2872, 1.442695
        %v2905 = vpow.pop %v2904
        %v2906 = vmul.f32 %v2873, 1.442695
        %v2907 = vpow.pop %v2906
        %v2908 = vmul.f32 %v2874, 1.442695
        %v2909 = vpow.pop %v2908
        %v2910 = vmul.f32 %v2875, 1.442695
        %v2911 = vpow.pop %v2910
        %v2912 = vmul.f32 %v2876, 1.442695
        %v2913 = vpow.pop %v2912
        %v2914 = vmul.f32 %v2877, 1.442695
        %v2915 = vpow.pop %v2914
        %v2916 = vmul.f32 %v2878, 1.442695
        %v2917 = vpow.pop %v2916
        %v2918 = vmul.f32 %v2879, 1.442695
        %v2919 = vpow.pop %v2918
        %v2920 = vmul.f32 %v2880, 1.442695
        %v2921 = vpow.pop %v2920
        %v2922 = vmul.f32 %v2881, 1.442695
        %v2923 = vpow.pop %v2922
        %v2924 = vmul.f32 %v2882, 1.442695
        %v2925 = vpow.pop %v2924
        %v2926 = vmul.f32 %v2883, 1.442695
        %v2927 = vpow.pop %v2926
        %v2928 = vmul.f32 %v2884, 1.442695
        %v2929 = vpow.pop %v2928
        %v2930 = vmul.f32 %v2885, 1.442695
        %v2931 = vpow.pop %v2930
        %v2932 = vmul.f32 %v2886, 1.442695
        %v2933 = vpow.pop %v2932
        %v2934 = vmul.f32 %v2887, 1.442695
        %v2935 = vpow.pop %v2934
        %v2936 = vmul.f32 %v2888, 1.442695
        %v2937 = vpow.pop %v2936
        %v2938 = vmul.f32 %v2889, 1.442695
        %v2939 = vpow.pop %v2938
        %v2940 = vmul.f32 %v2890, 1.442695
        %v2941 = vpow.pop %v2940
        %v2942 = vmul.f32 %v2891, 1.442695
        %v2943 = vpow.pop %v2942
        %v2944 = vmul.f32 %v2892, 1.442695
        %v2945 = vpow.pop %v2944
        %v2946 = vmul.f32 %v2893, 1.442695
        %v2947 = vpow.pop %v2946
        %v2948 = vmul.f32 %v2894, 1.442695
        %v2949 = vpow.pop %v2948
        %v2950 = vmul.f32 %v2895, 1.442695
        %v2951 = vpow.pop %v2950
        %v2952 = vmul.f32 %v2896, 1.442695
        %v2953 = vpow.pop %v2952
        %v2954 = vmul.f32 %v2897, 1.442695
        %v2955 = vpow.pop %v2954
        %v2956 = vmul.f32 %v2898, 1.442695
        %v2957 = vpow.pop %v2956
        %v2958 = vmul.f32 %v2899, 1.442695
        %v2959 = vpow.pop %v2958
        %v2960 = vmul.f32 %v2900, 1.442695
        %v2961 = vpow.pop %v2960
        %v2962 = vmul.f32 %v2901, 1.442695
        %v2963 = vpow.pop %v2962
        %v2964 = vmul.f32 %v2902, 1.442695
        %v2965 = vpow.pop %v2964
        %v2966 = vmul.f32 %v2903, 1.442695
        %v2967 = vpow.pop %v2966
        %2968 = vadd.xlane.f32.xlu0 %v2905
        %v2969 = vpop.xlane.xlu0 %2968
        %2970 = vadd.xlane.f32.xlu0 %v2907
        %v2971 = vpop.xlane.xlu0 %2970
        %2972 = vadd.xlane.f32.xlu0 %v2909
        %v2973 = vpop.xlane.xlu0 %2972
        %2974 = vadd.xlane.f32.xlu0 %v2911
        %v2975 = vpop.xlane.xlu0 %2974
        %2976 = vadd.xlane.f32.xlu0 %v2913
        %v2977 = vpop.xlane.xlu0 %2976
        %2978 = vadd.xlane.f32.xlu0 %v2915
        %v2979 = vpop.xlane.xlu0 %2978
        %2980 = vadd.xlane.f32.xlu0 %v2917
        %v2981 = vpop.xlane.xlu0 %2980
        %2982 = vadd.xlane.f32.xlu0 %v2919
        %v2983 = vpop.xlane.xlu0 %2982
        %2984 = vadd.xlane.f32.xlu0 %v2921
        %v2985 = vpop.xlane.xlu0 %2984
        %2986 = vadd.xlane.f32.xlu0 %v2923
        %v2987 = vpop.xlane.xlu0 %2986
        %2988 = vadd.xlane.f32.xlu0 %v2925
        %v2989 = vpop.xlane.xlu0 %2988
        %2990 = vadd.xlane.f32.xlu0 %v2927
        %v2991 = vpop.xlane.xlu0 %2990
        %2992 = vadd.xlane.f32.xlu0 %v2929
        %v2993 = vpop.xlane.xlu0 %2992
        %2994 = vadd.xlane.f32.xlu0 %v2931
        %v2995 = vpop.xlane.xlu0 %2994
        %2996 = vadd.xlane.f32.xlu0 %v2933
        %v2997 = vpop.xlane.xlu0 %2996
        %2998 = vadd.xlane.f32.xlu0 %v2935
        %v2999 = vpop.xlane.xlu0 %2998
        %3000 = vadd.xlane.f32.xlu0 %v2937
        %v3001 = vpop.xlane.xlu0 %3000
        %3002 = vadd.xlane.f32.xlu0 %v2939
        %v3003 = vpop.xlane.xlu0 %3002
        %3004 = vadd.xlane.f32.xlu0 %v2941
        %v3005 = vpop.xlane.xlu0 %3004
        %3006 = vadd.xlane.f32.xlu0 %v2943
        %v3007 = vpop.xlane.xlu0 %3006
        %3008 = vadd.xlane.f32.xlu0 %v2945
        %v3009 = vpop.xlane.xlu0 %3008
        %3010 = vadd.xlane.f32.xlu0 %v2947
        %v3011 = vpop.xlane.xlu0 %3010
        %3012 = vadd.xlane.f32.xlu0 %v2949
        %v3013 = vpop.xlane.xlu0 %3012
        %3014 = vadd.xlane.f32.xlu0 %v2951
        %v3015 = vpop.xlane.xlu0 %3014
        %3016 = vadd.xlane.f32.xlu0 %v2953
        %v3017 = vpop.xlane.xlu0 %3016
        %3018 = vadd.xlane.f32.xlu0 %v2955
        %v3019 = vpop.xlane.xlu0 %3018
        %3020 = vadd.xlane.f32.xlu0 %v2957
        %v3021 = vpop.xlane.xlu0 %3020
        %3022 = vadd.xlane.f32.xlu0 %v2959
        %v3023 = vpop.xlane.xlu0 %3022
        %3024 = vadd.xlane.f32.xlu0 %v2961
        %v3025 = vpop.xlane.xlu0 %3024
        %3026 = vadd.xlane.f32.xlu0 %v2963
        %v3027 = vpop.xlane.xlu0 %3026
        %3028 = vadd.xlane.f32.xlu0 %v2965
        %v3029 = vpop.xlane.xlu0 %3028
        %3030 = vadd.xlane.f32.xlu0 %v2967
        %v3031 = vpop.xlane.xlu0 %3030
        %v3032 = vrcp.pop %v2969
        %v3033 = vrcp.pop %v2971
        %v3034 = vrcp.pop %v2973
        %v3035 = vrcp.pop %v2975
        %v3036 = vrcp.pop %v2977
        %v3037 = vrcp.pop %v2979
        %v3038 = vrcp.pop %v2981
        %v3039 = vrcp.pop %v2983
        %v3040 = vrcp.pop %v2985
        %v3041 = vrcp.pop %v2987
        %v3042 = vrcp.pop %v2989
        %v3043 = vrcp.pop %v2991
        %v3044 = vrcp.pop %v2993
        %v3045 = vrcp.pop %v2995
        %v3046 = vrcp.pop %v2997
        %v3047 = vrcp.pop %v2999
        %v3048 = vrcp.pop %v3001
        %v3049 = vrcp.pop %v3003
        %v3050 = vrcp.pop %v3005
        %v3051 = vrcp.pop %v3007
        %v3052 = vrcp.pop %v3009
        %v3053 = vrcp.pop %v3011
        %v3054 = vrcp.pop %v3013
        %v3055 = vrcp.pop %v3015
        %v3056 = vrcp.pop %v3017
        %v3057 = vrcp.pop %v3019
        %v3058 = vrcp.pop %v3021
        %v3059 = vrcp.pop %v3023
        %v3060 = vrcp.pop %v3025
        %v3061 = vrcp.pop %v3027
        %v3062 = vrcp.pop %v3029
        %v3063 = vrcp.pop %v3031
        %v3064 = vmul.f32 %v2905, %v3032
        %v3065 = vmul.f32 %v2907, %v3033
        %v3066 = vmul.f32 %v2909, %v3034
        %v3067 = vmul.f32 %v2911, %v3035
        %v3068 = vmul.f32 %v2913, %v3036
        %v3069 = vmul.f32 %v2915, %v3037
        %v3070 = vmul.f32 %v2917, %v3038
        %v3071 = vmul.f32 %v2919, %v3039
        %v3072 = vmul.f32 %v2921, %v3040
        %v3073 = vmul.f32 %v2923, %v3041
        %v3074 = vmul.f32 %v2925, %v3042
        %v3075 = vmul.f32 %v2927, %v3043
        %v3076 = vmul.f32 %v2929, %v3044
        %v3077 = vmul.f32 %v2931, %v3045
        %v3078 = vmul.f32 %v2933, %v3046
        %v3079 = vmul.f32 %v2935, %v3047
        %v3080 = vmul.f32 %v2937, %v3048
        %v3081 = vmul.f32 %v2939, %v3049
        %v3082 = vmul.f32 %v2941, %v3050
        %v3083 = vmul.f32 %v2943, %v3051
        %v3084 = vmul.f32 %v2945, %v3052
        %v3085 = vmul.f32 %v2947, %v3053
        %v3086 = vmul.f32 %v2949, %v3054
        %v3087 = vmul.f32 %v2951, %v3055
        %v3088 = vmul.f32 %v2953, %v3056
        %v3089 = vmul.f32 %v2955, %v3057
        %v3090 = vmul.f32 %v2957, %v3058
        %v3091 = vmul.f32 %v2959, %v3059
        %v3092 = vmul.f32 %v2961, %v3060
        %v3093 = vmul.f32 %v2963, %v3061
        %v3094 = vmul.f32 %v2965, %v3062
        %v3095 = vmul.f32 %v2967, %v3063
        %s3096 = smul.u32 %s26, 256
        %v3097 = vlaneseq
        %v3098 = vshrl.u32 %v3097, 7
        %v3099 = vadd.s32 %v3098, 8
        %v3100 = vadd.s32 %v3098, 16
        %v3101 = vadd.s32 %v3098, 24
        %v3102 = vadd.s32 %v3098, 32
        %v3103 = vadd.s32 %v3098, 40
        %v3104 = vadd.s32 %v3098, 48
        %v3105 = vadd.s32 %v3098, 56
        %v3106 = vadd.s32 %v3098, 64
        %v3107 = vadd.s32 %v3098, 72
        %v3108 = vadd.s32 %v3098, 80
        %v3109 = vadd.s32 %v3098, 88
        %v3110 = vadd.s32 %v3098, 96
        %v3111 = vadd.s32 %v3098, 104
        %v3112 = vadd.s32 %v3098, 112
        %v3113 = vadd.s32 %v3098, 120
        %v3114 = vadd.s32 %v3098, 128
        %v3115 = vadd.s32 %v3098, 136
        %v3116 = vadd.s32 %v3098, 144
        %v3117 = vadd.s32 %v3098, 152
        %v3118 = vadd.s32 %v3098, 160
        %v3119 = vadd.s32 %v3098, 168
        %v3120 = vadd.s32 %v3098, 176
        %v3121 = vadd.s32 %v3098, 184
        %v3122 = vadd.s32 %v3098, 192
        %v3123 = vadd.s32 %v3098, 200
        %v3124 = vadd.s32 %v3098, 208
        %v3125 = vadd.s32 %v3098, 216
        %v3126 = vadd.s32 %v3098, 224
        %v3127 = vadd.s32 %v3098, 232
        %v3128 = vadd.s32 %v3098, 240
        %v3129 = vadd.s32 %v3098, 248
        %v3130 = vstv %s3096
        %v3131 = vadd.s32 %v3130, %v3098
        %v3132 = vadd.s32 %v3130, %v3099
        %v3133 = vadd.s32 %v3130, %v3100
        %v3134 = vadd.s32 %v3130, %v3101
        %v3135 = vadd.s32 %v3130, %v3102
        %v3136 = vadd.s32 %v3130, %v3103
        %v3137 = vadd.s32 %v3130, %v3104
        %v3138 = vadd.s32 %v3130, %v3105
        %v3139 = vadd.s32 %v3130, %v3106
        %v3140 = vadd.s32 %v3130, %v3107
        %v3141 = vadd.s32 %v3130, %v3108
        %v3142 = vadd.s32 %v3130, %v3109
        %v3143 = vadd.s32 %v3130, %v3110
        %v3144 = vadd.s32 %v3130, %v3111
        %v3145 = vadd.s32 %v3130, %v3112
        %v3146 = vadd.s32 %v3130, %v3113
        %v3147 = vadd.s32 %v3130, %v3114
        %v3148 = vadd.s32 %v3130, %v3115
        %v3149 = vadd.s32 %v3130, %v3116
        %v3150 = vadd.s32 %v3130, %v3117
        %v3151 = vadd.s32 %v3130, %v3118
        %v3152 = vadd.s32 %v3130, %v3119
        %v3153 = vadd.s32 %v3130, %v3120
        %v3154 = vadd.s32 %v3130, %v3121
        %v3155 = vadd.s32 %v3130, %v3122
        %v3156 = vadd.s32 %v3130, %v3123
        %v3157 = vadd.s32 %v3130, %v3124
        %v3158 = vadd.s32 %v3130, %v3125
        %v3159 = vadd.s32 %v3130, %v3126
        %v3160 = vadd.s32 %v3130, %v3127
        %v3161 = vadd.s32 %v3130, %v3128
        %v3162 = vadd.s32 %v3130, %v3129
        %vm3163 = vcmp.lt.s32.totalorder %v3131, 384
        %vm3164 = vcmp.lt.s32.totalorder %v3132, 384
        %vm3165 = vcmp.lt.s32.totalorder %v3133, 384
        %vm3166 = vcmp.lt.s32.totalorder %v3134, 384
        %vm3167 = vcmp.lt.s32.totalorder %v3135, 384
        %vm3168 = vcmp.lt.s32.totalorder %v3136, 384
        %vm3169 = vcmp.lt.s32.totalorder %v3137, 384
        %vm3170 = vcmp.lt.s32.totalorder %v3138, 384
        %vm3171 = vcmp.lt.s32.totalorder %v3139, 384
        %vm3172 = vcmp.lt.s32.totalorder %v3140, 384
        %vm3173 = vcmp.lt.s32.totalorder %v3141, 384
        %vm3174 = vcmp.lt.s32.totalorder %v3142, 384
        %vm3175 = vcmp.lt.s32.totalorder %v3143, 384
        %vm3176 = vcmp.lt.s32.totalorder %v3144, 384
        %vm3177 = vcmp.lt.s32.totalorder %v3145, 384
        %vm3178 = vcmp.lt.s32.totalorder %v3146, 384
        %vm3179 = vcmp.lt.s32.totalorder %v3147, 384
        %vm3180 = vcmp.lt.s32.totalorder %v3148, 384
        %vm3181 = vcmp.lt.s32.totalorder %v3149, 384
        %vm3182 = vcmp.lt.s32.totalorder %v3150, 384
        %vm3183 = vcmp.lt.s32.totalorder %v3151, 384
        %vm3184 = vcmp.lt.s32.totalorder %v3152, 384
        %vm3185 = vcmp.lt.s32.totalorder %v3153, 384
        %vm3186 = vcmp.lt.s32.totalorder %v3154, 384
        %vm3187 = vcmp.lt.s32.totalorder %v3155, 384
        %vm3188 = vcmp.lt.s32.totalorder %v3156, 384
        %vm3189 = vcmp.lt.s32.totalorder %v3157, 384
        %vm3190 = vcmp.lt.s32.totalorder %v3158, 384
        %vm3191 = vcmp.lt.s32.totalorder %v3159, 384
        %vm3192 = vcmp.lt.s32.totalorder %v3160, 384
        %vm3193 = vcmp.lt.s32.totalorder %v3161, 384
        %vm3194 = vcmp.lt.s32.totalorder %v3162, 384
        %v3195 = vsel %vm3163, 1, 0
        %v3196 = vsel %vm3164, 1, 0
        %v3197 = vsel %vm3165, 1, 0
        %v3198 = vsel %vm3166, 1, 0
        %v3199 = vsel %vm3167, 1, 0
        %v3200 = vsel %vm3168, 1, 0
        %v3201 = vsel %vm3169, 1, 0
        %v3202 = vsel %vm3170, 1, 0
        %v3203 = vsel %vm3171, 1, 0
        %v3204 = vsel %vm3172, 1, 0
        %v3205 = vsel %vm3173, 1, 0
        %v3206 = vsel %vm3174, 1, 0
        %v3207 = vsel %vm3175, 1, 0
        %v3208 = vsel %vm3176, 1, 0
        %v3209 = vsel %vm3177, 1, 0
        %v3210 = vsel %vm3178, 1, 0
        %v3211 = vsel %vm3179, 1, 0
        %v3212 = vsel %vm3180, 1, 0
        %v3213 = vsel %vm3181, 1, 0
        %v3214 = vsel %vm3182, 1, 0
        %v3215 = vsel %vm3183, 1, 0
        %v3216 = vsel %vm3184, 1, 0
        %v3217 = vsel %vm3185, 1, 0
        %v3218 = vsel %vm3186, 1, 0
        %v3219 = vsel %vm3187, 1, 0
        %v3220 = vsel %vm3188, 1, 0
        %v3221 = vsel %vm3189, 1, 0
        %v3222 = vsel %vm3190, 1, 0
        %v3223 = vsel %vm3191, 1, 0
        %v3224 = vsel %vm3192, 1, 0
        %v3225 = vsel %vm3193, 1, 0
        %v3226 = vsel %vm3194, 1, 0
        %vm3227 = vcmp.eq.s32.totalorder %v3195, 1
        %vm3228 = vcmp.eq.s32.totalorder %v3196, 1
        %vm3229 = vcmp.eq.s32.totalorder %v3197, 1
        %vm3230 = vcmp.eq.s32.totalorder %v3198, 1
        %vm3231 = vcmp.eq.s32.totalorder %v3199, 1
        %vm3232 = vcmp.eq.s32.totalorder %v3200, 1
        %vm3233 = vcmp.eq.s32.totalorder %v3201, 1
        %vm3234 = vcmp.eq.s32.totalorder %v3202, 1
        %vm3235 = vcmp.eq.s32.totalorder %v3203, 1
        %vm3236 = vcmp.eq.s32.totalorder %v3204, 1
        %vm3237 = vcmp.eq.s32.totalorder %v3205, 1
        %vm3238 = vcmp.eq.s32.totalorder %v3206, 1
        %vm3239 = vcmp.eq.s32.totalorder %v3207, 1
        %vm3240 = vcmp.eq.s32.totalorder %v3208, 1
        %vm3241 = vcmp.eq.s32.totalorder %v3209, 1
        %vm3242 = vcmp.eq.s32.totalorder %v3210, 1
        %vm3243 = vcmp.eq.s32.totalorder %v3211, 1
        %vm3244 = vcmp.eq.s32.totalorder %v3212, 1
        %vm3245 = vcmp.eq.s32.totalorder %v3213, 1
        %vm3246 = vcmp.eq.s32.totalorder %v3214, 1
        %vm3247 = vcmp.eq.s32.totalorder %v3215, 1
        %vm3248 = vcmp.eq.s32.totalorder %v3216, 1
        %vm3249 = vcmp.eq.s32.totalorder %v3217, 1
        %vm3250 = vcmp.eq.s32.totalorder %v3218, 1
        %vm3251 = vcmp.eq.s32.totalorder %v3219, 1
        %vm3252 = vcmp.eq.s32.totalorder %v3220, 1
        %vm3253 = vcmp.eq.s32.totalorder %v3221, 1
        %vm3254 = vcmp.eq.s32.totalorder %v3222, 1
        %vm3255 = vcmp.eq.s32.totalorder %v3223, 1
        %vm3256 = vcmp.eq.s32.totalorder %v3224, 1
        %vm3257 = vcmp.eq.s32.totalorder %v3225, 1
        %vm3258 = vcmp.eq.s32.totalorder %v3226, 1
        %v3259 = vsel %vm3227, %v3064, 0.0
        %v3260 = vsel %vm3228, %v3065, 0.0
        %v3261 = vsel %vm3229, %v3066, 0.0
        %v3262 = vsel %vm3230, %v3067, 0.0
        %v3263 = vsel %vm3231, %v3068, 0.0
        %v3264 = vsel %vm3232, %v3069, 0.0
        %v3265 = vsel %vm3233, %v3070, 0.0
        %v3266 = vsel %vm3234, %v3071, 0.0
        %v3267 = vsel %vm3235, %v3072, 0.0
        %v3268 = vsel %vm3236, %v3073, 0.0
        %v3269 = vsel %vm3237, %v3074, 0.0
        %v3270 = vsel %vm3238, %v3075, 0.0
        %v3271 = vsel %vm3239, %v3076, 0.0
        %v3272 = vsel %vm3240, %v3077, 0.0
        %v3273 = vsel %vm3241, %v3078, 0.0
        %v3274 = vsel %vm3242, %v3079, 0.0
        %v3275 = vsel %vm3243, %v3080, 0.0
        %v3276 = vsel %vm3244, %v3081, 0.0
        %v3277 = vsel %vm3245, %v3082, 0.0
        %v3278 = vsel %vm3246, %v3083, 0.0
        %v3279 = vsel %vm3247, %v3084, 0.0
        %v3280 = vsel %vm3248, %v3085, 0.0
        %v3281 = vsel %vm3249, %v3086, 0.0
        %v3282 = vsel %vm3250, %v3087, 0.0
        %v3283 = vsel %vm3251, %v3088, 0.0
        %v3284 = vsel %vm3252, %v3089, 0.0
        %v3285 = vsel %vm3253, %v3090, 0.0
        %v3286 = vsel %vm3254, %v3091, 0.0
        %v3287 = vsel %vm3255, %v3092, 0.0
        %v3288 = vsel %vm3256, %v3093, 0.0
        %v3289 = vsel %vm3257, %v3094, 0.0
        %v3290 = vsel %vm3258, %v3095, 0.0
        %v3291 = vpack.c.bf16 %v3260, %v3259
        %v3292 = vpack.c.bf16 %v3262, %v3261
        %v3293 = vpack.c.bf16 %v3264, %v3263
        %v3294 = vpack.c.bf16 %v3266, %v3265
        %v3295 = vpack.c.bf16 %v3268, %v3267
        %v3296 = vpack.c.bf16 %v3270, %v3269
        %v3297 = vpack.c.bf16 %v3272, %v3271
        %v3298 = vpack.c.bf16 %v3274, %v3273
        %v3299 = vpack.c.bf16 %v3276, %v3275
        %v3300 = vpack.c.bf16 %v3278, %v3277
        %v3301 = vpack.c.bf16 %v3280, %v3279
        %v3302 = vpack.c.bf16 %v3282, %v3281
        %v3303 = vpack.c.bf16 %v3284, %v3283
        %v3304 = vpack.c.bf16 %v3286, %v3285
        %v3305 = vpack.c.bf16 %v3288, %v3287
        %v3306 = vpack.c.bf16 %v3290, %v3289
        %v3323 = vunpack.c.l.b16 %v3291
        %v3324 = vunpack.c.h.b16 %v3291
        %v3325 = vunpack.c.l.b16 %v3292
        %v3326 = vunpack.c.h.b16 %v3292
        %v3327 = vunpack.c.l.b16 %v3293
        %v3328 = vunpack.c.h.b16 %v3293
        %v3329 = vunpack.c.l.b16 %v3294
        %v3330 = vunpack.c.h.b16 %v3294
        %v3331 = vunpack.c.l.b16 %v3295
        %v3332 = vunpack.c.h.b16 %v3295
        %v3333 = vunpack.c.l.b16 %v3296
        %v3334 = vunpack.c.h.b16 %v3296
        %v3335 = vunpack.c.l.b16 %v3297
        %v3336 = vunpack.c.h.b16 %v3297
        %v3337 = vunpack.c.l.b16 %v3298
        %v3338 = vunpack.c.h.b16 %v3298
        %v3339 = vunpack.c.l.b16 %v3299
        %v3340 = vunpack.c.h.b16 %v3299
        %v3341 = vunpack.c.l.b16 %v3300
        %v3342 = vunpack.c.h.b16 %v3300
        %v3343 = vunpack.c.l.b16 %v3301
        %v3344 = vunpack.c.h.b16 %v3301
        %v3345 = vunpack.c.l.b16 %v3302
        %v3346 = vunpack.c.h.b16 %v3302
        %v3347 = vunpack.c.l.b16 %v3303
        %v3348 = vunpack.c.h.b16 %v3303
        %v3349 = vunpack.c.l.b16 %v3304
        %v3350 = vunpack.c.h.b16 %v3304
        %v3351 = vunpack.c.l.b16 %v3305
        %v3352 = vunpack.c.h.b16 %v3305
        %v3353 = vunpack.c.l.b16 %v3306
        %v3354 = vunpack.c.h.b16 %v3306
        %v3355 = vpack.c.b16 %v3323, %v3323
        %v3356 = vpack.c.b16 %v3324, %v3324
        %v3357 = vpack.c.b16 %v3325, %v3325
        %v3358 = vpack.c.b16 %v3326, %v3326
        %v3359 = vpack.c.b16 %v3327, %v3327
        %v3360 = vpack.c.b16 %v3328, %v3328
        %v3361 = vpack.c.b16 %v3329, %v3329
        %v3362 = vpack.c.b16 %v3330, %v3330
        %v3363 = vpack.c.b16 %v3331, %v3331
        %v3364 = vpack.c.b16 %v3332, %v3332
        %v3365 = vpack.c.b16 %v3333, %v3333
        %v3366 = vpack.c.b16 %v3334, %v3334
        %v3367 = vpack.c.b16 %v3335, %v3335
        %v3368 = vpack.c.b16 %v3336, %v3336
        %v3369 = vpack.c.b16 %v3337, %v3337
        %v3370 = vpack.c.b16 %v3338, %v3338
        %v3371 = vpack.c.b16 %v3339, %v3339
        %v3372 = vpack.c.b16 %v3340, %v3340
        %v3373 = vpack.c.b16 %v3341, %v3341
        %v3374 = vpack.c.b16 %v3342, %v3342
        %v3375 = vpack.c.b16 %v3343, %v3343
        %v3376 = vpack.c.b16 %v3344, %v3344
        %v3377 = vpack.c.b16 %v3345, %v3345
        %v3378 = vpack.c.b16 %v3346, %v3346
        %v3379 = vpack.c.b16 %v3347, %v3347
        %v3380 = vpack.c.b16 %v3348, %v3348
        %v3381 = vpack.c.b16 %v3349, %v3349
        %v3382 = vpack.c.b16 %v3350, %v3350
        %v3383 = vpack.c.b16 %v3351, %v3351
        %v3384 = vpack.c.b16 %v3352, %v3352
        %v3385 = vpack.c.b16 %v3353, %v3353
        %v3386 = vpack.c.b16 %v3354, %v3354
        %3419 = vst [vmem:[%s395] sm:$0xf] %v3355
        %3420 = vst [vmem:[%s395 + $0x4] sm:$0xf] %v3356
        %3421 = vst [vmem:[%s395 + $0x8] sm:$0xf] %v3357
        %3422 = vst [vmem:[%s395 + $0xc] sm:$0xf] %v3358
        %3423 = vst [vmem:[%s395 + $0x10] sm:$0xf] %v3359
        %3424 = vst [vmem:[%s395 + $0x14] sm:$0xf] %v3360
        %3425 = vst [vmem:[%s395 + $0x18] sm:$0xf] %v3361
        %3426 = vst [vmem:[%s395 + $0x1c] sm:$0xf] %v3362
        %3427 = vst [vmem:[%s395 + $0x20] sm:$0xf] %v3363
        %3428 = vst [vmem:[%s395 + $0x24] sm:$0xf] %v3364
        %3429 = vst [vmem:[%s395 + $0x28] sm:$0xf] %v3365
        %3430 = vst [vmem:[%s395 + $0x2c] sm:$0xf] %v3366
        %3431 = vst [vmem:[%s395 + $0x30] sm:$0xf] %v3367
        %3432 = vst [vmem:[%s395 + $0x34] sm:$0xf] %v3368
        %3433 = vst [vmem:[%s395 + $0x38] sm:$0xf] %v3369
        %3434 = vst [vmem:[%s395 + $0x3c] sm:$0xf] %v3370
        %3435 = vst [vmem:[%s395 + $0x40] sm:$0xf] %v3371
        %3436 = vst [vmem:[%s395 + $0x44] sm:$0xf] %v3372
        %3437 = vst [vmem:[%s395 + $0x48] sm:$0xf] %v3373
        %3438 = vst [vmem:[%s395 + $0x4c] sm:$0xf] %v3374
        %3439 = vst [vmem:[%s395 + $0x50] sm:$0xf] %v3375
        %3440 = vst [vmem:[%s395 + $0x54] sm:$0xf] %v3376
        %3441 = vst [vmem:[%s395 + $0x58] sm:$0xf] %v3377
        %3442 = vst [vmem:[%s395 + $0x5c] sm:$0xf] %v3378
        %3443 = vst [vmem:[%s395 + $0x60] sm:$0xf] %v3379
        %3444 = vst [vmem:[%s395 + $0x64] sm:$0xf] %v3380
        %3445 = vst [vmem:[%s395 + $0x68] sm:$0xf] %v3381
        %3446 = vst [vmem:[%s395 + $0x6c] sm:$0xf] %v3382
        %3447 = vst [vmem:[%s395 + $0x70] sm:$0xf] %v3383
        %3448 = vst [vmem:[%s395 + $0x74] sm:$0xf] %v3384
        %3449 = vst [vmem:[%s395 + $0x78] sm:$0xf] %v3385
        %3450 = vst [vmem:[%s395 + $0x7c] sm:$0xf] %v3386
        %v3451 = vld [vmem:[%s417] sm:$0xff]
        %v3452 = vld [vmem:[%s417 + $0x8] sm:$0xff]
        %v3453 = vld [vmem:[%s417 + $0x10] sm:$0xff]
        %v3454 = vld [vmem:[%s417 + $0x18] sm:$0xff]
        %v3455 = vld [vmem:[%s417 + $0x20] sm:$0xff]
        %v3456 = vld [vmem:[%s417 + $0x28] sm:$0xff]
        %v3457 = vld [vmem:[%s417 + $0x30] sm:$0xff]
        %v3458 = vld [vmem:[%s417 + $0x38] sm:$0xff]
        %v3459 = vld [vmem:[%s417 + $0x40] sm:$0xff]
        %v3460 = vld [vmem:[%s417 + $0x48] sm:$0xff]
        %v3461 = vld [vmem:[%s417 + $0x50] sm:$0xff]
        %v3462 = vld [vmem:[%s417 + $0x58] sm:$0xff]
        %v3463 = vld [vmem:[%s417 + $0x60] sm:$0xff]
        %v3464 = vld [vmem:[%s417 + $0x68] sm:$0xff]
        %v3465 = vld [vmem:[%s417 + $0x70] sm:$0xff]
        %v3466 = vld [vmem:[%s417 + $0x78] sm:$0xff]
        %v3467 = vld [vmem:[%s417 + $0x80] sm:$0xff]
        %v3468 = vld [vmem:[%s417 + $0x88] sm:$0xff]
        %v3469 = vld [vmem:[%s417 + $0x90] sm:$0xff]
        %v3470 = vld [vmem:[%s417 + $0x98] sm:$0xff]
        %v3471 = vld [vmem:[%s417 + $0xa0] sm:$0xff]
        %v3472 = vld [vmem:[%s417 + $0xa8] sm:$0xff]
        %v3473 = vld [vmem:[%s417 + $0xb0] sm:$0xff]
        %v3474 = vld [vmem:[%s417 + $0xb8] sm:$0xff]
        %v3475 = vld [vmem:[%s417 + $0xc0] sm:$0xff]
        %v3476 = vld [vmem:[%s417 + $0xc8] sm:$0xff]
        %v3477 = vld [vmem:[%s417 + $0xd0] sm:$0xff]
        %v3478 = vld [vmem:[%s417 + $0xd8] sm:$0xff]
        %v3479 = vld [vmem:[%s417 + $0xe0] sm:$0xff]
        %v3480 = vld [vmem:[%s417 + $0xe8] sm:$0xff]
        %v3481 = vld [vmem:[%s417 + $0xf0] sm:$0xff]
        %v3482 = vld [vmem:[%s417 + $0xf8] sm:$0xff]
        %v3483 = vld [vmem:[#allocation8] sm:$0xff]
        %v3484 = vld [vmem:[#allocation8 + $0x8] sm:$0xff]
        %v3485 = vld [vmem:[#allocation8 + $0x10] sm:$0xff]
        %v3486 = vld [vmem:[#allocation8 + $0x18] sm:$0xff]
        %v3487 = vld [vmem:[#allocation8 + $0x20] sm:$0xff]
        %v3488 = vld [vmem:[#allocation8 + $0x28] sm:$0xff]
        %v3489 = vld [vmem:[#allocation8 + $0x30] sm:$0xff]
        %v3490 = vld [vmem:[#allocation8 + $0x38] sm:$0xff]
        %v3491 = vld [vmem:[#allocation8 + $0x40] sm:$0xff]
        %v3492 = vld [vmem:[#allocation8 + $0x48] sm:$0xff]
        %v3493 = vld [vmem:[#allocation8 + $0x50] sm:$0xff]
        %v3494 = vld [vmem:[#allocation8 + $0x58] sm:$0xff]
        %v3495 = vld [vmem:[#allocation8 + $0x60] sm:$0xff]
        %v3496 = vld [vmem:[#allocation8 + $0x68] sm:$0xff]
        %v3497 = vld [vmem:[#allocation8 + $0x70] sm:$0xff]
        %v3498 = vld [vmem:[#allocation8 + $0x78] sm:$0xff]
        %v3499 = vld [vmem:[#allocation8 + $0x80] sm:$0xff]
        %v3500 = vld [vmem:[#allocation8 + $0x88] sm:$0xff]
        %v3501 = vld [vmem:[#allocation8 + $0x90] sm:$0xff]
        %v3502 = vld [vmem:[#allocation8 + $0x98] sm:$0xff]
        %v3503 = vld [vmem:[#allocation8 + $0xa0] sm:$0xff]
        %v3504 = vld [vmem:[#allocation8 + $0xa8] sm:$0xff]
        %v3505 = vld [vmem:[#allocation8 + $0xb0] sm:$0xff]
        %v3506 = vld [vmem:[#allocation8 + $0xb8] sm:$0xff]
        %v3507 = vld [vmem:[#allocation8 + $0xc0] sm:$0xff]
        %v3508 = vld [vmem:[#allocation8 + $0xc8] sm:$0xff]
        %v3509 = vld [vmem:[#allocation8 + $0xd0] sm:$0xff]
        %v3510 = vld [vmem:[#allocation8 + $0xd8] sm:$0xff]
        %v3511 = vld [vmem:[#allocation8 + $0xe0] sm:$0xff]
        %v3512 = vld [vmem:[#allocation8 + $0xe8] sm:$0xff]
        %v3513 = vld [vmem:[#allocation8 + $0xf0] sm:$0xff]
        %v3514 = vld [vmem:[#allocation8 + $0xf8] sm:$0xff]
        %v3515 = vld [vmem:[#allocation8 + $0x100] sm:$0xff]
        %v3516 = vld [vmem:[#allocation8 + $0x108] sm:$0xff]
        %v3517 = vld [vmem:[#allocation8 + $0x110] sm:$0xff]
        %v3518 = vld [vmem:[#allocation8 + $0x118] sm:$0xff]
        %v3519 = vld [vmem:[#allocation8 + $0x120] sm:$0xff]
        %v3520 = vld [vmem:[#allocation8 + $0x128] sm:$0xff]
        %v3521 = vld [vmem:[#allocation8 + $0x130] sm:$0xff]
        %v3522 = vld [vmem:[#allocation8 + $0x138] sm:$0xff]
        %v3523 = vld [vmem:[#allocation8 + $0x140] sm:$0xff]
        %v3524 = vld [vmem:[#allocation8 + $0x148] sm:$0xff]
        %v3525 = vld [vmem:[#allocation8 + $0x150] sm:$0xff]
        %v3526 = vld [vmem:[#allocation8 + $0x158] sm:$0xff]
        %v3527 = vld [vmem:[#allocation8 + $0x160] sm:$0xff]
        %v3528 = vld [vmem:[#allocation8 + $0x168] sm:$0xff]
        %v3529 = vld [vmem:[#allocation8 + $0x170] sm:$0xff]
        %v3530 = vld [vmem:[#allocation8 + $0x178] sm:$0xff]
        %v3531 = vld [vmem:[#allocation8 + $0x180] sm:$0xff]
        %v3532 = vld [vmem:[#allocation8 + $0x188] sm:$0xff]
        %v3533 = vld [vmem:[#allocation8 + $0x190] sm:$0xff]
        %v3534 = vld [vmem:[#allocation8 + $0x198] sm:$0xff]
        %v3535 = vld [vmem:[#allocation8 + $0x1a0] sm:$0xff]
        %v3536 = vld [vmem:[#allocation8 + $0x1a8] sm:$0xff]
        %v3537 = vld [vmem:[#allocation8 + $0x1b0] sm:$0xff]
        %v3538 = vld [vmem:[#allocation8 + $0x1b8] sm:$0xff]
        %v3539 = vld [vmem:[#allocation8 + $0x1c0] sm:$0xff]
        %v3540 = vld [vmem:[#allocation8 + $0x1c8] sm:$0xff]
        %v3541 = vld [vmem:[#allocation8 + $0x1d0] sm:$0xff]
        %v3542 = vld [vmem:[#allocation8 + $0x1d8] sm:$0xff]
        %v3543 = vld [vmem:[#allocation8 + $0x1e0] sm:$0xff]
        %v3544 = vld [vmem:[#allocation8 + $0x1e8] sm:$0xff]
        %v3545 = vld [vmem:[#allocation8 + $0x1f0] sm:$0xff]
        %v3546 = vld [vmem:[#allocation8 + $0x1f8] sm:$0xff]
        %3547 = vxpose.xlu0.c.b16.start [1/8] %v3291, 128
        %3548 = vxpose.xlu0.c.b16.cont [2/8] %v3292, 128
        %3549 = vxpose.xlu0.c.b16.cont [3/8] %v3293, 128
        %3550 = vxpose.xlu0.c.b16.cont [4/8] %v3294, 128
        %3551 = vxpose.xlu0.c.b16.cont [5/8] %v3295, 128
        %3552 = vxpose.xlu0.c.b16.cont [6/8] %v3296, 128
        %3553 = vxpose.xlu0.c.b16.cont [7/8] %v3297, 128
        %3554 = vxpose.xlu0.c.b16.end [8/8] %v3298, 128
        %v3555 = vpop.trf.xlu0
        %v3556 = vpop.trf.xlu0
        %v3557 = vpop.trf.xlu0
        %v3558 = vpop.trf.xlu0
        %v3559 = vpop.trf.xlu0
        %v3560 = vpop.trf.xlu0
        %v3561 = vpop.trf.xlu0
        %v3562 = vpop.trf.xlu0
        %3563 = vxpose.xlu0.c.b16.start [1/8] %v3299, 128
        %3564 = vxpose.xlu0.c.b16.cont [2/8] %v3300, 128
        %3565 = vxpose.xlu0.c.b16.cont [3/8] %v3301, 128
        %3566 = vxpose.xlu0.c.b16.cont [4/8] %v3302, 128
        %3567 = vxpose.xlu0.c.b16.cont [5/8] %v3303, 128
        %3568 = vxpose.xlu0.c.b16.cont [6/8] %v3304, 128
        %3569 = vxpose.xlu0.c.b16.cont [7/8] %v3305, 128
        %3570 = vxpose.xlu0.c.b16.end [8/8] %v3306, 128
        %v3571 = vpop.trf.xlu0
        %v3572 = vpop.trf.xlu0
        %v3573 = vpop.trf.xlu0
        %v3574 = vpop.trf.xlu0
        %v3575 = vpop.trf.xlu0
        %v3576 = vpop.trf.xlu0
        %v3577 = vpop.trf.xlu0
        %v3578 = vpop.trf.xlu0
        %3579 = vmatprep.subr.bf16.mxu0 %v1223
        %3580 = vmatpush1.bf16.msra.mxu0 %v1222
        %3581 = vmatprep.subr.bf16.mxu0 %v1227
        %3582 = vmatpush1.bf16.msra.mxu0 %v1226
        %3583 = vmatprep.subr.bf16.mxu0 %v1231
        %3584 = vmatpush1.bf16.msra.mxu0 %v1230
        %3585 = vmatprep.subr.bf16.mxu0 %v1235
        %3586 = vmatpush1.bf16.msra.mxu0 %v1234
        %3587 = vmatprep.subr.bf16.mxu0 %v1239
        %3588 = vmatpush1.bf16.msra.mxu0 %v1238
        %3589 = vmatprep.subr.bf16.mxu0 %v1243
        %3590 = vmatpush1.bf16.msra.mxu0 %v1242
        %3591 = vmatprep.subr.bf16.mxu0 %v1247
        %3592 = vmatpush1.bf16.msra.mxu0 %v1246
        %3593 = vmatprep.subr.bf16.mxu0 %v1251
        %3594 = vmatpush1.bf16.msra.mxu0 %v1250
        %3595 = vmatprep.subr.bf16.mxu0 %v1255
        %3596 = vmatpush1.bf16.msra.mxu0 %v1254
        %3597 = vmatprep.subr.bf16.mxu0 %v1259
        %3598 = vmatpush1.bf16.msra.mxu0 %v1258
        %3599 = vmatprep.subr.bf16.mxu0 %v1263
        %3600 = vmatpush1.bf16.msra.mxu0 %v1262
        %3601 = vmatprep.subr.bf16.mxu0 %v1267
        %3602 = vmatpush1.bf16.msra.mxu0 %v1266
        %3603 = vmatprep.subr.bf16.mxu0 %v1271
        %3604 = vmatpush1.bf16.msra.mxu0 %v1270
        %3605 = vmatprep.subr.bf16.mxu0 %v1275
        %3606 = vmatpush1.bf16.msra.mxu0 %v1274
        %3607 = vmatprep.subr.bf16.mxu0 %v1279
        %3608 = vmatpush1.bf16.msra.mxu0 %v1278
        %3609 = vmatprep.subr.bf16.mxu0 %v1283
        %3610 = vmatpush1.bf16.msra.mxu0 %v1282
        %3611 = vmatprep.mubr.bf16.mxu0 %v3571
        %3612 = vmatmul.mubr.bf16.gmra.mrb[0].mxu0 %v3555
        %v3613 = vpop.f32.mrb[0].mxu0
        %v3614 = vadd.f32 0.0, %v3613
        %v3615 = vpop.f32.mrb[0].mxu0
        %v3616 = vadd.f32 0.0, %v3615
        %v3617 = vpop.f32.mrb[0].mxu0
        %v3618 = vadd.f32 0.0, %v3617
        %v3619 = vpop.f32.mrb[0].mxu0
        %v3620 = vadd.f32 0.0, %v3619
        %3621 = vmatprep.mubr.bf16.mxu0 %v3572
        %3622 = vmatmul.mubr.bf16.gmra.mrb[0].mxu0 %v3556
        %v3623 = vpop.f32.mrb[0].mxu0
        %v3624 = vadd.f32 0.0, %v3623
        %v3625 = vpop.f32.mrb[0].mxu0
        %v3626 = vadd.f32 0.0, %v3625
        %v3627 = vpop.f32.mrb[0].mxu0
        %v3628 = vadd.f32 0.0, %v3627
        %v3629 = vpop.f32.mrb[0].mxu0
        %v3630 = vadd.f32 0.0, %v3629
        %3631 = vmatprep.mubr.bf16.mxu0 %v3573
        %3632 = vmatmul.mubr.bf16.gmra.mrb[0].mxu0 %v3557
        %v3633 = vpop.f32.mrb[0].mxu0
        %v3634 = vadd.f32 0.0, %v3633
        %v3635 = vpop.f32.mrb[0].mxu0
        %v3636 = vadd.f32 0.0, %v3635
        %v3637 = vpop.f32.mrb[0].mxu0
        %v3638 = vadd.f32 0.0, %v3637
        %v3639 = vpop.f32.mrb[0].mxu0
        %v3640 = vadd.f32 0.0, %v3639
        %3641 = vmatprep.mubr.bf16.mxu0 %v3574
        %3642 = vmatmul.mubr.bf16.gmra.mrb[0].mxu0 %v3558
        %v3643 = vpop.f32.mrb[0].mxu0
        %v3644 = vadd.f32 0.0, %v3643
        %v3645 = vpop.f32.mrb[0].mxu0
        %v3646 = vadd.f32 0.0, %v3645
        %v3647 = vpop.f32.mrb[0].mxu0
        %v3648 = vadd.f32 0.0, %v3647
        %v3649 = vpop.f32.mrb[0].mxu0
        %v3650 = vadd.f32 0.0, %v3649
        %3651 = vmatprep.mubr.bf16.mxu0 %v3575
        %3652 = vmatmul.mubr.bf16.gmra.mrb[0].mxu0 %v3559
        %v3653 = vpop.f32.mrb[0].mxu0
        %v3654 = vadd.f32 0.0, %v3653
        %v3655 = vpop.f32.mrb[0].mxu0
        %v3656 = vadd.f32 0.0, %v3655
        %v3657 = vpop.f32.mrb[0].mxu0
        %v3658 = vadd.f32 0.0, %v3657
        %v3659 = vpop.f32.mrb[0].mxu0
        %v3660 = vadd.f32 0.0, %v3659
        %3661 = vmatprep.mubr.bf16.mxu0 %v3576
        %3662 = vmatmul.mubr.bf16.gmra.mrb[0].mxu0 %v3560
        %v3663 = vpop.f32.mrb[0].mxu0
        %v3664 = vadd.f32 0.0, %v3663
        %v3665 = vpop.f32.mrb[0].mxu0
        %v3666 = vadd.f32 0.0, %v3665
        %v3667 = vpop.f32.mrb[0].mxu0
        %v3668 = vadd.f32 0.0, %v3667
        %v3669 = vpop.f32.mrb[0].mxu0
        %v3670 = vadd.f32 0.0, %v3669
        %3671 = vmatprep.mubr.bf16.mxu0 %v3577
        %3672 = vmatmul.mubr.bf16.gmra.mrb[0].mxu0 %v3561
        %v3673 = vpop.f32.mrb[0].mxu0
        %v3674 = vadd.f32 0.0, %v3673
        %v3675 = vpop.f32.mrb[0].mxu0
        %v3676 = vadd.f32 0.0, %v3675
        %v3677 = vpop.f32.mrb[0].mxu0
        %v3678 = vadd.f32 0.0, %v3677
        %v3679 = vpop.f32.mrb[0].mxu0
        %v3680 = vadd.f32 0.0, %v3679
        %3681 = vmatprep.mubr.bf16.mxu0 %v3578
        %3682 = vmatmul.mubr.bf16.gmra.mrb[0].mxu0 %v3562
        %v3683 = vpop.f32.mrb[0].mxu0
        %v3684 = vadd.f32 0.0, %v3683
        %v3685 = vpop.f32.mrb[0].mxu0
        %v3686 = vadd.f32 0.0, %v3685
        %v3687 = vpop.f32.mrb[0].mxu0
        %v3688 = vadd.f32 0.0, %v3687
        %v3689 = vpop.f32.mrb[0].mxu0
        %v3690 = vadd.f32 0.0, %v3689
        %3691 = vdwg.mxu0
        %3692 = vmatprep.subr.bf16.mxu0 %v1225
        %3693 = vmatpush1.bf16.msra.mxu0 %v1224
        %3694 = vmatprep.subr.bf16.mxu0 %v1229
        %3695 = vmatpush1.bf16.msra.mxu0 %v1228
        %3696 = vmatprep.subr.bf16.mxu0 %v1233
        %3697 = vmatpush1.bf16.msra.mxu0 %v1232
        %3698 = vmatprep.subr.bf16.mxu0 %v1237
        %3699 = vmatpush1.bf16.msra.mxu0 %v1236
        %3700 = vmatprep.subr.bf16.mxu0 %v1241
        %3701 = vmatpush1.bf16.msra.mxu0 %v1240
        %3702 = vmatprep.subr.bf16.mxu0 %v1245
        %3703 = vmatpush1.bf16.msra.mxu0 %v1244
        %3704 = vmatprep.subr.bf16.mxu0 %v1249
        %3705 = vmatpush1.bf16.msra.mxu0 %v1248
        %3706 = vmatprep.subr.bf16.mxu0 %v1253
        %3707 = vmatpush1.bf16.msra.mxu0 %v1252
        %3708 = vmatprep.subr.bf16.mxu0 %v1257
        %3709 = vmatpush1.bf16.msra.mxu0 %v1256
        %3710 = vmatprep.subr.bf16.mxu0 %v1261
        %3711 = vmatpush1.bf16.msra.mxu0 %v1260
        %3712 = vmatprep.subr.bf16.mxu0 %v1265
        %3713 = vmatpush1.bf16.msra.mxu0 %v1264
        %3714 = vmatprep.subr.bf16.mxu0 %v1269
        %3715 = vmatpush1.bf16.msra.mxu0 %v1268
        %3716 = vmatprep.subr.bf16.mxu0 %v1273
        %3717 = vmatpush1.bf16.msra.mxu0 %v1272
        %3718 = vmatprep.subr.bf16.mxu0 %v1277
        %3719 = vmatpush1.bf16.msra.mxu0 %v1276
        %3720 = vmatprep.subr.bf16.mxu0 %v1281
        %3721 = vmatpush1.bf16.msra.mxu0 %v1280
        %3722 = vmatprep.subr.bf16.mxu0 %v1285
        %3723 = vmatpush1.bf16.msra.mxu0 %v1284
        %3724 = vmatprep.mubr.bf16.mxu0 %v3571
        %3725 = vmatmul.mubr.bf16.gmra.mrb[0].mxu0 %v3555
        %v3726 = vpop.f32.mrb[0].mxu0
        %v3727 = vadd.f32 0.0, %v3726
        %v3728 = vpop.f32.mrb[0].mxu0
        %v3729 = vadd.f32 0.0, %v3728
        %v3730 = vpop.f32.mrb[0].mxu0
        %v3731 = vadd.f32 0.0, %v3730
        %v3732 = vpop.f32.mrb[0].mxu0
        %v3733 = vadd.f32 0.0, %v3732
        %3734 = vmatprep.mubr.bf16.mxu0 %v3572
        %3735 = vmatmul.mubr.bf16.gmra.mrb[0].mxu0 %v3556
        %v3736 = vpop.f32.mrb[0].mxu0
        %v3737 = vadd.f32 0.0, %v3736
        %v3738 = vpop.f32.mrb[0].mxu0
        %v3739 = vadd.f32 0.0, %v3738
        %v3740 = vpop.f32.mrb[0].mxu0
        %v3741 = vadd.f32 0.0, %v3740
        %v3742 = vpop.f32.mrb[0].mxu0
        %v3743 = vadd.f32 0.0, %v3742
        %3744 = vmatprep.mubr.bf16.mxu0 %v3573
        %3745 = vmatmul.mubr.bf16.gmra.mrb[0].mxu0 %v3557
        %v3746 = vpop.f32.mrb[0].mxu0
        %v3747 = vadd.f32 0.0, %v3746
        %v3748 = vpop.f32.mrb[0].mxu0
        %v3749 = vadd.f32 0.0, %v3748
        %v3750 = vpop.f32.mrb[0].mxu0
        %v3751 = vadd.f32 0.0, %v3750
        %v3752 = vpop.f32.mrb[0].mxu0
        %v3753 = vadd.f32 0.0, %v3752
        %3754 = vmatprep.mubr.bf16.mxu0 %v3574
        %3755 = vmatmul.mubr.bf16.gmra.mrb[0].mxu0 %v3558
        %v3756 = vpop.f32.mrb[0].mxu0
        %v3757 = vadd.f32 0.0, %v3756
        %v3758 = vpop.f32.mrb[0].mxu0
        %v3759 = vadd.f32 0.0, %v3758
        %v3760 = vpop.f32.mrb[0].mxu0
        %v3761 = vadd.f32 0.0, %v3760
        %v3762 = vpop.f32.mrb[0].mxu0
        %v3763 = vadd.f32 0.0, %v3762
        %3764 = vmatprep.mubr.bf16.mxu0 %v3575
        %3765 = vmatmul.mubr.bf16.gmra.mrb[0].mxu0 %v3559
        %v3766 = vpop.f32.mrb[0].mxu0
        %v3767 = vadd.f32 0.0, %v3766
        %v3768 = vpop.f32.mrb[0].mxu0
        %v3769 = vadd.f32 0.0, %v3768
        %v3770 = vpop.f32.mrb[0].mxu0
        %v3771 = vadd.f32 0.0, %v3770
        %v3772 = vpop.f32.mrb[0].mxu0
        %v3773 = vadd.f32 0.0, %v3772
        %3774 = vmatprep.mubr.bf16.mxu0 %v3576
        %3775 = vmatmul.mubr.bf16.gmra.mrb[0].mxu0 %v3560
        %v3776 = vpop.f32.mrb[0].mxu0
        %v3777 = vadd.f32 0.0, %v3776
        %v3778 = vpop.f32.mrb[0].mxu0
        %v3779 = vadd.f32 0.0, %v3778
        %v3780 = vpop.f32.mrb[0].mxu0
        %v3781 = vadd.f32 0.0, %v3780
        %v3782 = vpop.f32.mrb[0].mxu0
        %v3783 = vadd.f32 0.0, %v3782
        %3784 = vmatprep.mubr.bf16.mxu0 %v3577
        %3785 = vmatmul.mubr.bf16.gmra.mrb[0].mxu0 %v3561
        %v3786 = vpop.f32.mrb[0].mxu0
        %v3787 = vadd.f32 0.0, %v3786
        %v3788 = vpop.f32.mrb[0].mxu0
        %v3789 = vadd.f32 0.0, %v3788
        %v3790 = vpop.f32.mrb[0].mxu0
        %v3791 = vadd.f32 0.0, %v3790
        %v3792 = vpop.f32.mrb[0].mxu0
        %v3793 = vadd.f32 0.0, %v3792
        %3794 = vmatprep.mubr.bf16.mxu0 %v3578
        %3795 = vmatmul.mubr.bf16.gmra.mrb[0].mxu0 %v3562
        %v3796 = vpop.f32.mrb[0].mxu0
        %v3797 = vadd.f32 0.0, %v3796
        %v3798 = vpop.f32.mrb[0].mxu0
        %v3799 = vadd.f32 0.0, %v3798
        %v3800 = vpop.f32.mrb[0].mxu0
        %v3801 = vadd.f32 0.0, %v3800
        %v3802 = vpop.f32.mrb[0].mxu0
        %v3803 = vadd.f32 0.0, %v3802
        %3804 = vdwg.mxu0
        %v3805 = vadd.f32 %v3483, %v3614
        %v3806 = vadd.f32 %v3484, %v3616
        %v3807 = vadd.f32 %v3485, %v3727
        %v3808 = vadd.f32 %v3486, %v3729
        %v3809 = vadd.f32 %v3487, %v3618
        %v3810 = vadd.f32 %v3488, %v3620
        %v3811 = vadd.f32 %v3489, %v3731
        %v3812 = vadd.f32 %v3490, %v3733
        %v3813 = vadd.f32 %v3491, %v3624
        %v3814 = vadd.f32 %v3492, %v3626
        %v3815 = vadd.f32 %v3493, %v3737
        %v3816 = vadd.f32 %v3494, %v3739
        %v3817 = vadd.f32 %v3495, %v3628
        %v3818 = vadd.f32 %v3496, %v3630
        %v3819 = vadd.f32 %v3497, %v3741
        %v3820 = vadd.f32 %v3498, %v3743
        %v3821 = vadd.f32 %v3499, %v3634
        %v3822 = vadd.f32 %v3500, %v3636
        %v3823 = vadd.f32 %v3501, %v3747
        %v3824 = vadd.f32 %v3502, %v3749
        %v3825 = vadd.f32 %v3503, %v3638
        %v3826 = vadd.f32 %v3504, %v3640
        %v3827 = vadd.f32 %v3505, %v3751
        %v3828 = vadd.f32 %v3506, %v3753
        %v3829 = vadd.f32 %v3507, %v3644
        %v3830 = vadd.f32 %v3508, %v3646
        %v3831 = vadd.f32 %v3509, %v3757
        %v3832 = vadd.f32 %v3510, %v3759
        %v3833 = vadd.f32 %v3511, %v3648
        %v3834 = vadd.f32 %v3512, %v3650
        %v3835 = vadd.f32 %v3513, %v3761
        %v3836 = vadd.f32 %v3514, %v3763
        %v3837 = vadd.f32 %v3515, %v3654
        %v3838 = vadd.f32 %v3516, %v3656
        %v3839 = vadd.f32 %v3517, %v3767
        %v3840 = vadd.f32 %v3518, %v3769
        %v3841 = vadd.f32 %v3519, %v3658
        %v3842 = vadd.f32 %v3520, %v3660
        %v3843 = vadd.f32 %v3521, %v3771
        %v3844 = vadd.f32 %v3522, %v3773
        %v3845 = vadd.f32 %v3523, %v3664
        %v3846 = vadd.f32 %v3524, %v3666
        %v3847 = vadd.f32 %v3525, %v3777
        %v3848 = vadd.f32 %v3526, %v3779
        %v3849 = vadd.f32 %v3527, %v3668
        %v3850 = vadd.f32 %v3528, %v3670
        %v3851 = vadd.f32 %v3529, %v3781
        %v3852 = vadd.f32 %v3530, %v3783
        %v3853 = vadd.f32 %v3531, %v3674
        %v3854 = vadd.f32 %v3532, %v3676
        %v3855 = vadd.f32 %v3533, %v3787
        %v3856 = vadd.f32 %v3534, %v3789
        %v3857 = vadd.f32 %v3535, %v3678
        %v3858 = vadd.f32 %v3536, %v3680
        %v3859 = vadd.f32 %v3537, %v3791
        %v3860 = vadd.f32 %v3538, %v3793
        %v3861 = vadd.f32 %v3539, %v3684
        %v3862 = vadd.f32 %v3540, %v3686
        %v3863 = vadd.f32 %v3541, %v3797
        %v3864 = vadd.f32 %v3542, %v3799
        %v3865 = vadd.f32 %v3543, %v3688
        %v3866 = vadd.f32 %v3544, %v3690
        %v3867 = vadd.f32 %v3545, %v3801
        %v3868 = vadd.f32 %v3546, %v3803
        %3869 = vst [vmem:[#allocation8] sm:$0xff] %v3805
        %3870 = vst [vmem:[#allocation8 + $0x8] sm:$0xff] %v3806
        %3871 = vst [vmem:[#allocation8 + $0x10] sm:$0xff] %v3807
        %3872 = vst [vmem:[#allocation8 + $0x18] sm:$0xff] %v3808
        %3873 = vst [vmem:[#allocation8 + $0x20] sm:$0xff] %v3809
        %3874 = vst [vmem:[#allocation8 + $0x28] sm:$0xff] %v3810
        %3875 = vst [vmem:[#allocation8 + $0x30] sm:$0xff] %v3811
        %3876 = vst [vmem:[#allocation8 + $0x38] sm:$0xff] %v3812
        %3877 = vst [vmem:[#allocation8 + $0x40] sm:$0xff] %v3813
        %3878 = vst [vmem:[#allocation8 + $0x48] sm:$0xff] %v3814
        %3879 = vst [vmem:[#allocation8 + $0x50] sm:$0xff] %v3815
        %3880 = vst [vmem:[#allocation8 + $0x58] sm:$0xff] %v3816
        %3881 = vst [vmem:[#allocation8 + $0x60] sm:$0xff] %v3817
        %3882 = vst [vmem:[#allocation8 + $0x68] sm:$0xff] %v3818
        %3883 = vst [vmem:[#allocation8 + $0x70] sm:$0xff] %v3819
        %3884 = vst [vmem:[#allocation8 + $0x78] sm:$0xff] %v3820
        %3885 = vst [vmem:[#allocation8 + $0x80] sm:$0xff] %v3821
        %3886 = vst [vmem:[#allocation8 + $0x88] sm:$0xff] %v3822
        %3887 = vst [vmem:[#allocation8 + $0x90] sm:$0xff] %v3823
        %3888 = vst [vmem:[#allocation8 + $0x98] sm:$0xff] %v3824
        %3889 = vst [vmem:[#allocation8 + $0xa0] sm:$0xff] %v3825
        %3890 = vst [vmem:[#allocation8 + $0xa8] sm:$0xff] %v3826
        %3891 = vst [vmem:[#allocation8 + $0xb0] sm:$0xff] %v3827
        %3892 = vst [vmem:[#allocation8 + $0xb8] sm:$0xff] %v3828
        %3893 = vst [vmem:[#allocation8 + $0xc0] sm:$0xff] %v3829
        %3894 = vst [vmem:[#allocation8 + $0xc8] sm:$0xff] %v3830
        %3895 = vst [vmem:[#allocation8 + $0xd0] sm:$0xff] %v3831
        %3896 = vst [vmem:[#allocation8 + $0xd8] sm:$0xff] %v3832
        %3897 = vst [vmem:[#allocation8 + $0xe0] sm:$0xff] %v3833
        %3898 = vst [vmem:[#allocation8 + $0xe8] sm:$0xff] %v3834
        %3899 = vst [vmem:[#allocation8 + $0xf0] sm:$0xff] %v3835
        %3900 = vst [vmem:[#allocation8 + $0xf8] sm:$0xff] %v3836
        %3901 = vst [vmem:[#allocation8 + $0x100] sm:$0xff] %v3837
        %3902 = vst [vmem:[#allocation8 + $0x108] sm:$0xff] %v3838
        %3903 = vst [vmem:[#allocation8 + $0x110] sm:$0xff] %v3839
        %3904 = vst [vmem:[#allocation8 + $0x118] sm:$0xff] %v3840
        %3905 = vst [vmem:[#allocation8 + $0x120] sm:$0xff] %v3841
        %3906 = vst [vmem:[#allocation8 + $0x128] sm:$0xff] %v3842
        %3907 = vst [vmem:[#allocation8 + $0x130] sm:$0xff] %v3843
        %3908 = vst [vmem:[#allocation8 + $0x138] sm:$0xff] %v3844
        %3909 = vst [vmem:[#allocation8 + $0x140] sm:$0xff] %v3845
        %3910 = vst [vmem:[#allocation8 + $0x148] sm:$0xff] %v3846
        %3911 = vst [vmem:[#allocation8 + $0x150] sm:$0xff] %v3847
        %3912 = vst [vmem:[#allocation8 + $0x158] sm:$0xff] %v3848
        %3913 = vst [vmem:[#allocation8 + $0x160] sm:$0xff] %v3849
        %3914 = vst [vmem:[#allocation8 + $0x168] sm:$0xff] %v3850
        %3915 = vst [vmem:[#allocation8 + $0x170] sm:$0xff] %v3851
        %3916 = vst [vmem:[#allocation8 + $0x178] sm:$0xff] %v3852
        %3917 = vst [vmem:[#allocation8 + $0x180] sm:$0xff] %v3853
        %3918 = vst [vmem:[#allocation8 + $0x188] sm:$0xff] %v3854
        %3919 = vst [vmem:[#allocation8 + $0x190] sm:$0xff] %v3855
        %3920 = vst [vmem:[#allocation8 + $0x198] sm:$0xff] %v3856
        %3921 = vst [vmem:[#allocation8 + $0x1a0] sm:$0xff] %v3857
        %3922 = vst [vmem:[#allocation8 + $0x1a8] sm:$0xff] %v3858
        %3923 = vst [vmem:[#allocation8 + $0x1b0] sm:$0xff] %v3859
        %3924 = vst [vmem:[#allocation8 + $0x1b8] sm:$0xff] %v3860
        %3925 = vst [vmem:[#allocation8 + $0x1c0] sm:$0xff] %v3861
        %3926 = vst [vmem:[#allocation8 + $0x1c8] sm:$0xff] %v3862
        %3927 = vst [vmem:[#allocation8 + $0x1d0] sm:$0xff] %v3863
        %3928 = vst [vmem:[#allocation8 + $0x1d8] sm:$0xff] %v3864
        %3929 = vst [vmem:[#allocation8 + $0x1e0] sm:$0xff] %v3865
        %3930 = vst [vmem:[#allocation8 + $0x1e8] sm:$0xff] %v3866
        %3931 = vst [vmem:[#allocation8 + $0x1f0] sm:$0xff] %v3867
        %3932 = vst [vmem:[#allocation8 + $0x1f8] sm:$0xff] %v3868
        %v3933 = vld [vmem:[#allocation2] sm:$0xff]
        %v3934 = vld [vmem:[#allocation2 + $0x8] sm:$0xff]
        %v3935 = vld [vmem:[#allocation2 + $0x10] sm:$0xff]
        %v3936 = vld [vmem:[#allocation2 + $0x18] sm:$0xff]
        %v3937 = vld [vmem:[#allocation2 + $0x20] sm:$0xff]
        %v3938 = vld [vmem:[#allocation2 + $0x28] sm:$0xff]
        %v3939 = vld [vmem:[#allocation2 + $0x30] sm:$0xff]
        %v3940 = vld [vmem:[#allocation2 + $0x38] sm:$0xff]
        %v3941 = vld [vmem:[#allocation2 + $0x40] sm:$0xff]
        %v3942 = vld [vmem:[#allocation2 + $0x48] sm:$0xff]
        %v3943 = vld [vmem:[#allocation2 + $0x50] sm:$0xff]
        %v3944 = vld [vmem:[#allocation2 + $0x58] sm:$0xff]
        %v3945 = vld [vmem:[#allocation2 + $0x60] sm:$0xff]
        %v3946 = vld [vmem:[#allocation2 + $0x68] sm:$0xff]
        %v3947 = vld [vmem:[#allocation2 + $0x70] sm:$0xff]
        %v3948 = vld [vmem:[#allocation2 + $0x78] sm:$0xff]
        %3949 = vxpose.xlu0.b32.start [1/16] %v3259, 128
        %3950 = vxpose.xlu0.b32.cont [2/16] %v3260, 128
        %3951 = vxpose.xlu0.b32.cont [3/16] %v3261, 128
        %3952 = vxpose.xlu0.b32.cont [4/16] %v3262, 128
        %3953 = vxpose.xlu0.b32.cont [5/16] %v3263, 128
        %3954 = vxpose.xlu0.b32.cont [6/16] %v3264, 128
        %3955 = vxpose.xlu0.b32.cont [7/16] %v3265, 128
        %3956 = vxpose.xlu0.b32.cont [8/16] %v3266, 128
        %3957 = vxpose.xlu0.b32.cont [9/16] %v3267, 128
        %3958 = vxpose.xlu0.b32.cont [10/16] %v3268, 128
        %3959 = vxpose.xlu0.b32.cont [11/16] %v3269, 128
        %3960 = vxpose.xlu0.b32.cont [12/16] %v3270, 128
        %3961 = vxpose.xlu0.b32.cont [13/16] %v3271, 128
        %3962 = vxpose.xlu0.b32.cont [14/16] %v3272, 128
        %3963 = vxpose.xlu0.b32.cont [15/16] %v3273, 128
        %3964 = vxpose.xlu0.b32.end [16/16] %v3274, 128
        %v3965 = vpop.trf.xlu0
        %v3966 = vpop.trf.xlu0
        %v3967 = vpop.trf.xlu0
        %v3968 = vpop.trf.xlu0
        %v3969 = vpop.trf.xlu0
        %v3970 = vpop.trf.xlu0
        %v3971 = vpop.trf.xlu0
        %v3972 = vpop.trf.xlu0
        %v3973 = vpop.trf.xlu0
        %v3974 = vpop.trf.xlu0
        %v3975 = vpop.trf.xlu0
        %v3976 = vpop.trf.xlu0
        %v3977 = vpop.trf.xlu0
        %v3978 = vpop.trf.xlu0
        %v3979 = vpop.trf.xlu0
        %v3980 = vpop.trf.xlu0
        %3981 = vxpose.xlu0.b32.start [1/16] %v3275, 128
        %3982 = vxpose.xlu0.b32.cont [2/16] %v3276, 128
        %3983 = vxpose.xlu0.b32.cont [3/16] %v3277, 128
        %3984 = vxpose.xlu0.b32.cont [4/16] %v3278, 128
        %3985 = vxpose.xlu0.b32.cont [5/16] %v3279, 128
        %3986 = vxpose.xlu0.b32.cont [6/16] %v3280, 128
        %3987 = vxpose.xlu0.b32.cont [7/16] %v3281, 128
        %3988 = vxpose.xlu0.b32.cont [8/16] %v3282, 128
        %3989 = vxpose.xlu0.b32.cont [9/16] %v3283, 128
        %3990 = vxpose.xlu0.b32.cont [10/16] %v3284, 128
        %3991 = vxpose.xlu0.b32.cont [11/16] %v3285, 128
        %3992 = vxpose.xlu0.b32.cont [12/16] %v3286, 128
        %3993 = vxpose.xlu0.b32.cont [13/16] %v3287, 128
        %3994 = vxpose.xlu0.b32.cont [14/16] %v3288, 128
        %3995 = vxpose.xlu0.b32.cont [15/16] %v3289, 128
        %3996 = vxpose.xlu0.b32.end [16/16] %v3290, 128
        %v3997 = vpop.trf.xlu0
        %v3998 = vpop.trf.xlu0
        %v3999 = vpop.trf.xlu0
        %v4000 = vpop.trf.xlu0
        %v4001 = vpop.trf.xlu0
        %v4002 = vpop.trf.xlu0
        %v4003 = vpop.trf.xlu0
        %v4004 = vpop.trf.xlu0
        %v4005 = vpop.trf.xlu0
        %v4006 = vpop.trf.xlu0
        %v4007 = vpop.trf.xlu0
        %v4008 = vpop.trf.xlu0
        %v4009 = vpop.trf.xlu0
        %v4010 = vpop.trf.xlu0
        %v4011 = vpop.trf.xlu0
        %v4012 = vpop.trf.xlu0
        %4013 = vmatprep.subr.mxu0 0.0
        %4014 = vmatpush1.msra.mxu0 %v3259
        %4015 = vmatprep.subr.mxu0 0.0
        %4016 = vmatpush1.msra.mxu0 %v3260
        %4017 = vmatprep.subr.mxu0 0.0
        %4018 = vmatpush1.msra.mxu0 %v3261
        %4019 = vmatprep.subr.mxu0 0.0
        %4020 = vmatpush1.msra.mxu0 %v3262
        %4021 = vmatprep.subr.mxu0 0.0
        %4022 = vmatpush1.msra.mxu0 %v3263
        %4023 = vmatprep.subr.mxu0 0.0
        %4024 = vmatpush1.msra.mxu0 %v3264
        %4025 = vmatprep.subr.mxu0 0.0
        %4026 = vmatpush1.msra.mxu0 %v3265
        %4027 = vmatprep.subr.mxu0 0.0
        %4028 = vmatpush1.msra.mxu0 %v3266
        %4029 = vmatprep.subr.mxu0 0.0
        %4030 = vmatpush1.msra.mxu0 %v3267
        %4031 = vmatprep.subr.mxu0 0.0
        %4032 = vmatpush1.msra.mxu0 %v3268
        %4033 = vmatprep.subr.mxu0 0.0
        %4034 = vmatpush1.msra.mxu0 %v3269
        %4035 = vmatprep.subr.mxu0 0.0
        %4036 = vmatpush1.msra.mxu0 %v3270
        %4037 = vmatprep.subr.mxu0 0.0
        %4038 = vmatpush1.msra.mxu0 %v3271
        %4039 = vmatprep.subr.mxu0 0.0
        %4040 = vmatpush1.msra.mxu0 %v3272
        %4041 = vmatprep.subr.mxu0 0.0
        %4042 = vmatpush1.msra.mxu0 %v3273
        %4043 = vmatprep.subr.mxu0 0.0
        %4044 = vmatpush1.msra.mxu0 %v3274
        %4045 = vmatprep.subr.mxu0 0.0
        %4046 = vmatpush1.msra.mxu0 %v3275
        %4047 = vmatprep.subr.mxu0 0.0
        %4048 = vmatpush1.msra.mxu0 %v3276
        %4049 = vmatprep.subr.mxu0 0.0
        %4050 = vmatpush1.msra.mxu0 %v3277
        %4051 = vmatprep.subr.mxu0 0.0
        %4052 = vmatpush1.msra.mxu0 %v3278
        %4053 = vmatprep.subr.mxu0 0.0
        %4054 = vmatpush1.msra.mxu0 %v3279
        %4055 = vmatprep.subr.mxu0 0.0
        %4056 = vmatpush1.msra.mxu0 %v3280
        %4057 = vmatprep.subr.mxu0 0.0
        %4058 = vmatpush1.msra.mxu0 %v3281
        %4059 = vmatprep.subr.mxu0 0.0
        %4060 = vmatpush1.msra.mxu0 %v3282
        %4061 = vmatprep.subr.mxu0 0.0
        %4062 = vmatpush1.msra.mxu0 %v3283
        %4063 = vmatprep.subr.mxu0 0.0
        %4064 = vmatpush1.msra.mxu0 %v3284
        %4065 = vmatprep.subr.mxu0 0.0
        %4066 = vmatpush1.msra.mxu0 %v3285
        %4067 = vmatprep.subr.mxu0 0.0
        %4068 = vmatpush1.msra.mxu0 %v3286
        %4069 = vmatprep.subr.mxu0 0.0
        %4070 = vmatpush1.msra.mxu0 %v3287
        %4071 = vmatprep.subr.mxu0 0.0
        %4072 = vmatpush1.msra.mxu0 %v3288
        %4073 = vmatprep.subr.mxu0 0.0
        %4074 = vmatpush1.msra.mxu0 %v3289
        %4075 = vmatprep.subr.mxu0 0.0
        %4076 = vmatpush1.msra.mxu0 %v3290
        %4077 = vmatprep.mubr.f32.mxu0 %v3997
        %4078 = vmatmul.mubr.f32.gmra.mrb[0].mxu0 %v3965
        %v4079 = vpop.f32.mrb[0].mxu0
        %v4080 = vadd.f32 0.0, %v4079
        %v4081 = vpop.f32.mrb[0].mxu0
        %4082 = vmatprep.mubr.f32.mxu0 %v3998
        %4083 = vmatmul.mubr.f32.gmra.mrb[0].mxu0 %v3966
        %v4084 = vpop.f32.mrb[0].mxu0
        %v4085 = vadd.f32 0.0, %v4084
        %v4086 = vpop.f32.mrb[0].mxu0
        %4087 = vmatprep.mubr.f32.mxu0 %v3999
        %4088 = vmatmul.mubr.f32.gmra.mrb[0].mxu0 %v3967
        %v4089 = vpop.f32.mrb[0].mxu0
        %v4090 = vadd.f32 0.0, %v4089
        %v4091 = vpop.f32.mrb[0].mxu0
        %4092 = vmatprep.mubr.f32.mxu0 %v4000
        %4093 = vmatmul.mubr.f32.gmra.mrb[0].mxu0 %v3968
        %v4094 = vpop.f32.mrb[0].mxu0
        %v4095 = vadd.f32 0.0, %v4094
        %v4096 = vpop.f32.mrb[0].mxu0
        %4097 = vmatprep.mubr.f32.mxu0 %v4001
        %4098 = vmatmul.mubr.f32.gmra.mrb[0].mxu0 %v3969
        %v4099 = vpop.f32.mrb[0].mxu0
        %v4100 = vadd.f32 0.0, %v4099
        %v4101 = vpop.f32.mrb[0].mxu0
        %4102 = vmatprep.mubr.f32.mxu0 %v4002
        %4103 = vmatmul.mubr.f32.gmra.mrb[0].mxu0 %v3970
        %v4104 = vpop.f32.mrb[0].mxu0
        %v4105 = vadd.f32 0.0, %v4104
        %v4106 = vpop.f32.mrb[0].mxu0
        %4107 = vmatprep.mubr.f32.mxu0 %v4003
        %4108 = vmatmul.mubr.f32.gmra.mrb[0].mxu0 %v3971
        %v4109 = vpop.f32.mrb[0].mxu0
        %v4110 = vadd.f32 0.0, %v4109
        %v4111 = vpop.f32.mrb[0].mxu0
        %4112 = vmatprep.mubr.f32.mxu0 %v4004
        %4113 = vmatmul.mubr.f32.gmra.mrb[0].mxu0 %v3972
        %v4114 = vpop.f32.mrb[0].mxu0
        %v4115 = vadd.f32 0.0, %v4114
        %v4116 = vpop.f32.mrb[0].mxu0
        %4117 = vmatprep.mubr.f32.mxu0 %v4005
        %4118 = vmatmul.mubr.f32.gmra.mrb[0].mxu0 %v3973
        %v4119 = vpop.f32.mrb[0].mxu0
        %v4120 = vadd.f32 0.0, %v4119
        %v4121 = vpop.f32.mrb[0].mxu0
        %4122 = vmatprep.mubr.f32.mxu0 %v4006
        %4123 = vmatmul.mubr.f32.gmra.mrb[0].mxu0 %v3974
        %v4124 = vpop.f32.mrb[0].mxu0
        %v4125 = vadd.f32 0.0, %v4124
        %v4126 = vpop.f32.mrb[0].mxu0
        %4127 = vmatprep.mubr.f32.mxu0 %v4007
        %4128 = vmatmul.mubr.f32.gmra.mrb[0].mxu0 %v3975
        %v4129 = vpop.f32.mrb[0].mxu0
        %v4130 = vadd.f32 0.0, %v4129
        %v4131 = vpop.f32.mrb[0].mxu0
        %4132 = vmatprep.mubr.f32.mxu0 %v4008
        %4133 = vmatmul.mubr.f32.gmra.mrb[0].mxu0 %v3976
        %v4134 = vpop.f32.mrb[0].mxu0
        %v4135 = vadd.f32 0.0, %v4134
        %v4136 = vpop.f32.mrb[0].mxu0
        %4137 = vmatprep.mubr.f32.mxu0 %v4009
        %4138 = vmatmul.mubr.f32.gmra.mrb[0].mxu0 %v3977
        %v4139 = vpop.f32.mrb[0].mxu0
        %v4140 = vadd.f32 0.0, %v4139
        %v4141 = vpop.f32.mrb[0].mxu0
        %4142 = vmatprep.mubr.f32.mxu0 %v4010
        %4143 = vmatmul.mubr.f32.gmra.mrb[0].mxu0 %v3978
        %v4144 = vpop.f32.mrb[0].mxu0
        %v4145 = vadd.f32 0.0, %v4144
        %v4146 = vpop.f32.mrb[0].mxu0
        %4147 = vmatprep.mubr.f32.mxu0 %v4011
        %4148 = vmatmul.mubr.f32.gmra.mrb[0].mxu0 %v3979
        %v4149 = vpop.f32.mrb[0].mxu0
        %v4150 = vadd.f32 0.0, %v4149
        %v4151 = vpop.f32.mrb[0].mxu0
        %4152 = vmatprep.mubr.f32.mxu0 %v4012
        %4153 = vmatmul.mubr.f32.gmra.mrb[0].mxu0 %v3980
        %v4154 = vpop.f32.mrb[0].mxu0
        %v4155 = vadd.f32 0.0, %v4154
        %v4156 = vpop.f32.mrb[0].mxu0
        %4157 = vdwg.mxu0
        %v4158 = vadd.f32 %v3933, %v4080
        %v4159 = vadd.f32 %v3934, %v4085
        %v4160 = vadd.f32 %v3935, %v4090
        %v4161 = vadd.f32 %v3936, %v4095
        %v4162 = vadd.f32 %v3937, %v4100
        %v4163 = vadd.f32 %v3938, %v4105
        %v4164 = vadd.f32 %v3939, %v4110
        %v4165 = vadd.f32 %v3940, %v4115
        %v4166 = vadd.f32 %v3941, %v4120
        %v4167 = vadd.f32 %v3942, %v4125
        %v4168 = vadd.f32 %v3943, %v4130
        %v4169 = vadd.f32 %v3944, %v4135
        %v4170 = vadd.f32 %v3945, %v4140
        %v4171 = vadd.f32 %v3946, %v4145
        %v4172 = vadd.f32 %v3947, %v4150
        %v4173 = vadd.f32 %v3948, %v4155
        %4174 = vst [vmem:[#allocation2] sm:$0xff] %v4158
        %4175 = vst [vmem:[#allocation2 + $0x8] sm:$0xff] %v4159
        %4176 = vst [vmem:[#allocation2 + $0x10] sm:$0xff] %v4160
        %4177 = vst [vmem:[#allocation2 + $0x18] sm:$0xff] %v4161
        %4178 = vst [vmem:[#allocation2 + $0x20] sm:$0xff] %v4162
        %4179 = vst [vmem:[#allocation2 + $0x28] sm:$0xff] %v4163
        %4180 = vst [vmem:[#allocation2 + $0x30] sm:$0xff] %v4164
        %4181 = vst [vmem:[#allocation2 + $0x38] sm:$0xff] %v4165
        %4182 = vst [vmem:[#allocation2 + $0x40] sm:$0xff] %v4166
        %4183 = vst [vmem:[#allocation2 + $0x48] sm:$0xff] %v4167
        %4184 = vst [vmem:[#allocation2 + $0x50] sm:$0xff] %v4168
        %4185 = vst [vmem:[#allocation2 + $0x58] sm:$0xff] %v4169
        %4186 = vst [vmem:[#allocation2 + $0x60] sm:$0xff] %v4170
        %4187 = vst [vmem:[#allocation2 + $0x68] sm:$0xff] %v4171
        %4188 = vst [vmem:[#allocation2 + $0x70] sm:$0xff] %v4172
        %4189 = vst [vmem:[#allocation2 + $0x78] sm:$0xff] %v4173
        %v4190 = vld [vmem:[#allocation3] sm:$0x1]
        %4192 = vset.pattern.permute.xlu0 0
        %4193 = vperm.xlu0 %4192, %v3451
        %v4194 = vpop.permute.xlu0 %4193
        %4197 = vset.pattern.permute.xlu0 0
        %4198 = vperm.xlu0 %4197, %v3452
        %v4199 = vpop.permute.xlu0 %4198
        %4202 = vset.pattern.permute.xlu0 0
        %4203 = vperm.xlu0 %4202, %v3453
        %v4204 = vpop.permute.xlu0 %4203
        %4207 = vset.pattern.permute.xlu0 0
        %4208 = vperm.xlu0 %4207, %v3454
        %v4209 = vpop.permute.xlu0 %4208
        %4212 = vset.pattern.permute.xlu0 0
        %4213 = vperm.xlu0 %4212, %v3455
        %v4214 = vpop.permute.xlu0 %4213
        %4217 = vset.pattern.permute.xlu0 0
        %4218 = vperm.xlu0 %4217, %v3456
        %v4219 = vpop.permute.xlu0 %4218
        %4222 = vset.pattern.permute.xlu0 0
        %4223 = vperm.xlu0 %4222, %v3457
        %v4224 = vpop.permute.xlu0 %4223
        %4227 = vset.pattern.permute.xlu0 0
        %4228 = vperm.xlu0 %4227, %v3458
        %v4229 = vpop.permute.xlu0 %4228
        %4232 = vset.pattern.permute.xlu0 0
        %4233 = vperm.xlu0 %4232, %v3459
        %v4234 = vpop.permute.xlu0 %4233
        %4237 = vset.pattern.permute.xlu0 0
        %4238 = vperm.xlu0 %4237, %v3460
        %v4239 = vpop.permute.xlu0 %4238
        %4242 = vset.pattern.permute.xlu0 0
        %4243 = vperm.xlu0 %4242, %v3461
        %v4244 = vpop.permute.xlu0 %4243
        %4247 = vset.pattern.permute.xlu0 0
        %4248 = vperm.xlu0 %4247, %v3462
        %v4249 = vpop.permute.xlu0 %4248
        %4252 = vset.pattern.permute.xlu0 0
        %4253 = vperm.xlu0 %4252, %v3463
        %v4254 = vpop.permute.xlu0 %4253
        %4257 = vset.pattern.permute.xlu0 0
        %4258 = vperm.xlu0 %4257, %v3464
        %v4259 = vpop.permute.xlu0 %4258
        %4262 = vset.pattern.permute.xlu0 0
        %4263 = vperm.xlu0 %4262, %v3465
        %v4264 = vpop.permute.xlu0 %4263
        %4267 = vset.pattern.permute.xlu0 0
        %4268 = vperm.xlu0 %4267, %v3466
        %v4269 = vpop.permute.xlu0 %4268
        %4272 = vset.pattern.permute.xlu0 0
        %4273 = vperm.xlu0 %4272, %v3467
        %v4274 = vpop.permute.xlu0 %4273
        %4277 = vset.pattern.permute.xlu0 0
        %4278 = vperm.xlu0 %4277, %v3468
        %v4279 = vpop.permute.xlu0 %4278
        %4282 = vset.pattern.permute.xlu0 0
        %4283 = vperm.xlu0 %4282, %v3469
        %v4284 = vpop.permute.xlu0 %4283
        %4287 = vset.pattern.permute.xlu0 0
        %4288 = vperm.xlu0 %4287, %v3470
        %v4289 = vpop.permute.xlu0 %4288
        %4292 = vset.pattern.permute.xlu0 0
        %4293 = vperm.xlu0 %4292, %v3471
        %v4294 = vpop.permute.xlu0 %4293
        %4297 = vset.pattern.permute.xlu0 0
        %4298 = vperm.xlu0 %4297, %v3472
        %v4299 = vpop.permute.xlu0 %4298
        %4302 = vset.pattern.permute.xlu0 0
        %4303 = vperm.xlu0 %4302, %v3473
        %v4304 = vpop.permute.xlu0 %4303
        %4307 = vset.pattern.permute.xlu0 0
        %4308 = vperm.xlu0 %4307, %v3474
        %v4309 = vpop.permute.xlu0 %4308
        %4312 = vset.pattern.permute.xlu0 0
        %4313 = vperm.xlu0 %4312, %v3475
        %v4314 = vpop.permute.xlu0 %4313
        %4317 = vset.pattern.permute.xlu0 0
        %4318 = vperm.xlu0 %4317, %v3476
        %v4319 = vpop.permute.xlu0 %4318
        %4322 = vset.pattern.permute.xlu0 0
        %4323 = vperm.xlu0 %4322, %v3477
        %v4324 = vpop.permute.xlu0 %4323
        %4327 = vset.pattern.permute.xlu0 0
        %4328 = vperm.xlu0 %4327, %v3478
        %v4329 = vpop.permute.xlu0 %4328
        %4332 = vset.pattern.permute.xlu0 0
        %4333 = vperm.xlu0 %4332, %v3479
        %v4334 = vpop.permute.xlu0 %4333
        %4337 = vset.pattern.permute.xlu0 0
        %4338 = vperm.xlu0 %4337, %v3480
        %v4339 = vpop.permute.xlu0 %4338
        %4342 = vset.pattern.permute.xlu0 0
        %4343 = vperm.xlu0 %4342, %v3481
        %v4344 = vpop.permute.xlu0 %4343
        %4347 = vset.pattern.permute.xlu0 0
        %4348 = vperm.xlu0 %4347, %v3482
        %v4349 = vpop.permute.xlu0 %4348
        %v4351 = vmul.f32 %v4194, %v3259
        %v4352 = vmul.f32 %v4199, %v3260
        %v4353 = vmul.f32 %v4204, %v3261
        %v4354 = vmul.f32 %v4209, %v3262
        %v4355 = vmul.f32 %v4214, %v3263
        %v4356 = vmul.f32 %v4219, %v3264
        %v4357 = vmul.f32 %v4224, %v3265
        %v4358 = vmul.f32 %v4229, %v3266
        %v4359 = vmul.f32 %v4234, %v3267
        %v4360 = vmul.f32 %v4239, %v3268
        %v4361 = vmul.f32 %v4244, %v3269
        %v4362 = vmul.f32 %v4249, %v3270
        %v4363 = vmul.f32 %v4254, %v3271
        %v4364 = vmul.f32 %v4259, %v3272
        %v4365 = vmul.f32 %v4264, %v3273
        %v4366 = vmul.f32 %v4269, %v3274
        %v4367 = vmul.f32 %v4274, %v3275
        %v4368 = vmul.f32 %v4279, %v3276
        %v4369 = vmul.f32 %v4284, %v3277
        %v4370 = vmul.f32 %v4289, %v3278
        %v4371 = vmul.f32 %v4294, %v3279
        %v4372 = vmul.f32 %v4299, %v3280
        %v4373 = vmul.f32 %v4304, %v3281
        %v4374 = vmul.f32 %v4309, %v3282
        %v4375 = vmul.f32 %v4314, %v3283
        %v4376 = vmul.f32 %v4319, %v3284
        %v4377 = vmul.f32 %v4324, %v3285
        %v4378 = vmul.f32 %v4329, %v3286
        %v4379 = vmul.f32 %v4334, %v3287
        %v4380 = vmul.f32 %v4339, %v3288
        %v4381 = vmul.f32 %v4344, %v3289
        %v4382 = vmul.f32 %v4349, %v3290
        %v4383 = vadd.f32 %v4351, %v4352
        %v4384 = vadd.f32 %v4383, %v4353
        %v4385 = vadd.f32 %v4384, %v4354
        %v4386 = vadd.f32 %v4385, %v4355
        %v4387 = vadd.f32 %v4386, %v4356
        %v4388 = vadd.f32 %v4387, %v4357
        %v4389 = vadd.f32 %v4388, %v4358
        %v4390 = vadd.f32 %v4389, %v4359
        %v4391 = vadd.f32 %v4390, %v4360
        %v4392 = vadd.f32 %v4391, %v4361
        %v4393 = vadd.f32 %v4392, %v4362
        %v4394 = vadd.f32 %v4393, %v4363
        %v4395 = vadd.f32 %v4394, %v4364
        %v4396 = vadd.f32 %v4395, %v4365
        %v4397 = vadd.f32 %v4396, %v4366
        %v4398 = vadd.f32 %v4397, %v4367
        %v4399 = vadd.f32 %v4398, %v4368
        %v4400 = vadd.f32 %v4399, %v4369
        %v4401 = vadd.f32 %v4400, %v4370
        %v4402 = vadd.f32 %v4401, %v4371
        %v4403 = vadd.f32 %v4402, %v4372
        %v4404 = vadd.f32 %v4403, %v4373
        %v4405 = vadd.f32 %v4404, %v4374
        %v4406 = vadd.f32 %v4405, %v4375
        %v4407 = vadd.f32 %v4406, %v4376
        %v4408 = vadd.f32 %v4407, %v4377
        %v4409 = vadd.f32 %v4408, %v4378
        %v4410 = vadd.f32 %v4409, %v4379
        %v4411 = vadd.f32 %v4410, %v4380
        %v4412 = vadd.f32 %v4411, %v4381
        %v4413 = vadd.f32 %v4412, %v4382
        %v4414 = vrot.slane %v4413, 4
        %v4415 = vadd.f32 %v4413, %v4414
        %v4416 = vrot.slane %v4415, 2
        %v4417 = vadd.f32 %v4415, %v4416
        %v4418 = vrot.slane %v4417, 1
        %v4419 = vadd.f32 %v4417, %v4418
        %v4420 = vadd.f32 %v4190, %v4419
        %4421 = vst [vmem:[#allocation3] sm:$0x1] %v4420
        %v4422 = vld [vmem:[#allocation4] sm:$0x1]
        %v4423 = vadd.f32 %v3259, %v3260
        %v4424 = vadd.f32 %v4423, %v3261
        %v4425 = vadd.f32 %v4424, %v3262
        %v4426 = vadd.f32 %v4425, %v3263
        %v4427 = vadd.f32 %v4426, %v3264
        %v4428 = vadd.f32 %v4427, %v3265
        %v4429 = vadd.f32 %v4428, %v3266
        %v4430 = vadd.f32 %v4429, %v3267
        %v4431 = vadd.f32 %v4430, %v3268
        %v4432 = vadd.f32 %v4431, %v3269
        %v4433 = vadd.f32 %v4432, %v3270
        %v4434 = vadd.f32 %v4433, %v3271
        %v4435 = vadd.f32 %v4434, %v3272
        %v4436 = vadd.f32 %v4435, %v3273
        %v4437 = vadd.f32 %v4436, %v3274
        %v4438 = vadd.f32 %v4437, %v3275
        %v4439 = vadd.f32 %v4438, %v3276
        %v4440 = vadd.f32 %v4439, %v3277
        %v4441 = vadd.f32 %v4440, %v3278
        %v4442 = vadd.f32 %v4441, %v3279
        %v4443 = vadd.f32 %v4442, %v3280
        %v4444 = vadd.f32 %v4443, %v3281
        %v4445 = vadd.f32 %v4444, %v3282
        %v4446 = vadd.f32 %v4445, %v3283
        %v4447 = vadd.f32 %v4446, %v3284
        %v4448 = vadd.f32 %v4447, %v3285
        %v4449 = vadd.f32 %v4448, %v3286
        %v4450 = vadd.f32 %v4449, %v3287
        %v4451 = vadd.f32 %v4450, %v3288
        %v4452 = vadd.f32 %v4451, %v3289
        %v4453 = vadd.f32 %v4452, %v3290
        %v4454 = vrot.slane %v4453, 4
        %v4455 = vadd.f32 %v4453, %v4454
        %v4456 = vrot.slane %v4455, 2
        %v4457 = vadd.f32 %v4455, %v4456
        %v4458 = vrot.slane %v4457, 1
        %v4459 = vadd.f32 %v4457, %v4458
        %v4460 = vadd.f32 %v4422, %v4459
        %4461 = vst [vmem:[#allocation4] sm:$0x1] %v4460
        %v4462 = vld [vmem:[#allocation5] sm:$0x1]
        %vm4463 = vcmask 7168
        %v4464 = vsel %vm4463, %v3451, 0.0
        %v4465 = vsel %vm4463, %v3452, 0.0
        %v4466 = vadd.f32 %v4464, %v4465
        %v4467 = vsel %vm4463, %v3453, 0.0
        %v4468 = vadd.f32 %v4466, %v4467
        %v4469 = vsel %vm4463, %v3454, 0.0
        %v4470 = vadd.f32 %v4468, %v4469
        %v4471 = vsel %vm4463, %v3455, 0.0
        %v4472 = vadd.f32 %v4470, %v4471
        %v4473 = vsel %vm4463, %v3456, 0.0
        %v4474 = vadd.f32 %v4472, %v4473
        %v4475 = vsel %vm4463, %v3457, 0.0
        %v4476 = vadd.f32 %v4474, %v4475
        %v4477 = vsel %vm4463, %v3458, 0.0
        %v4478 = vadd.f32 %v4476, %v4477
        %v4479 = vsel %vm4463, %v3459, 0.0
        %v4480 = vadd.f32 %v4478, %v4479
        %v4481 = vsel %vm4463, %v3460, 0.0
        %v4482 = vadd.f32 %v4480, %v4481
        %v4483 = vsel %vm4463, %v3461, 0.0
        %v4484 = vadd.f32 %v4482, %v4483
        %v4485 = vsel %vm4463, %v3462, 0.0
        %v4486 = vadd.f32 %v4484, %v4485
        %v4487 = vsel %vm4463, %v3463, 0.0
        %v4488 = vadd.f32 %v4486, %v4487
        %v4489 = vsel %vm4463, %v3464, 0.0
        %v4490 = vadd.f32 %v4488, %v4489
        %v4491 = vsel %vm4463, %v3465, 0.0
        %v4492 = vadd.f32 %v4490, %v4491
        %v4493 = vsel %vm4463, %v3466, 0.0
        %v4494 = vadd.f32 %v4492, %v4493
        %v4495 = vsel %vm4463, %v3467, 0.0
        %v4496 = vadd.f32 %v4494, %v4495
        %v4497 = vsel %vm4463, %v3468, 0.0
        %v4498 = vadd.f32 %v4496, %v4497
        %v4499 = vsel %vm4463, %v3469, 0.0
        %v4500 = vadd.f32 %v4498, %v4499
        %v4501 = vsel %vm4463, %v3470, 0.0
        %v4502 = vadd.f32 %v4500, %v4501
        %v4503 = vsel %vm4463, %v3471, 0.0
        %v4504 = vadd.f32 %v4502, %v4503
        %v4505 = vsel %vm4463, %v3472, 0.0
        %v4506 = vadd.f32 %v4504, %v4505
        %v4507 = vsel %vm4463, %v3473, 0.0
        %v4508 = vadd.f32 %v4506, %v4507
        %v4509 = vsel %vm4463, %v3474, 0.0
        %v4510 = vadd.f32 %v4508, %v4509
        %v4511 = vsel %vm4463, %v3475, 0.0
        %v4512 = vadd.f32 %v4510, %v4511
        %v4513 = vsel %vm4463, %v3476, 0.0
        %v4514 = vadd.f32 %v4512, %v4513
        %v4515 = vsel %vm4463, %v3477, 0.0
        %v4516 = vadd.f32 %v4514, %v4515
        %v4517 = vsel %vm4463, %v3478, 0.0
        %v4518 = vadd.f32 %v4516, %v4517
        %v4519 = vsel %vm4463, %v3479, 0.0
        %v4520 = vadd.f32 %v4518, %v4519
        %v4521 = vsel %vm4463, %v3480, 0.0
        %v4522 = vadd.f32 %v4520, %v4521
        %v4523 = vsel %vm4463, %v3481, 0.0
        %v4524 = vadd.f32 %v4522, %v4523
        %v4525 = vsel %vm4463, %v3482, 0.0
        %v4526 = vadd.f32 %v4524, %v4525
        %4527 = vadd.xlane.f32.xlu0 %v4526
        %v4528 = vpop.xlane.xlu0 %4527
        %v4529 = vrot.slane %v4528, 4
        %v4530 = vadd.f32 %v4528, %v4529
        %v4531 = vrot.slane %v4530, 2
        %v4532 = vadd.f32 %v4530, %v4531
        %v4533 = vrot.slane %v4532, 1
        %v4534 = vadd.f32 %v4532, %v4533
        %s4535 = vtos %v4534
        %v4536 = vstv %s4535
        %v4537 = vadd.f32 %v4462, %v4536
        %vm4538 = vcmask 0
        %4539 = vst.msk [vmem:[#allocation5] sm:$0x1] %vm4538, %v4537
        %p4540 = scmp.eq.s32.totalorder %s26, 1
        // Predicated region
        $region57: #{tpu_custom_call.1} parent=51 // pred_check
          %p4541 = pneg %p4540
        $region58: #{tpu_custom_call.1} parent=51 // pred_check_branch
          %4543 = sbr.rel (%p4541) target = $region60
        $region59: #{tpu_custom_call.1} parent=51 // pred_region
          %v4544 = vlaneseq
          %v4545 = vand.u32 %v4544, 127
          %vm4546 = vcmp.eq.s32.totalorder %v3098, %v4545
          %vm4547 = vcmp.eq.s32.totalorder %v3099, %v4545
          %vm4548 = vcmp.eq.s32.totalorder %v3100, %v4545
          %vm4549 = vcmp.eq.s32.totalorder %v3101, %v4545
          %vm4550 = vcmp.eq.s32.totalorder %v3102, %v4545
          %vm4551 = vcmp.eq.s32.totalorder %v3103, %v4545
          %vm4552 = vcmp.eq.s32.totalorder %v3104, %v4545
          %vm4553 = vcmp.eq.s32.totalorder %v3105, %v4545
          %vm4554 = vcmp.eq.s32.totalorder %v3106, %v4545
          %vm4555 = vcmp.eq.s32.totalorder %v3107, %v4545
          %vm4556 = vcmp.eq.s32.totalorder %v3108, %v4545
          %vm4557 = vcmp.eq.s32.totalorder %v3109, %v4545
          %vm4558 = vcmp.eq.s32.totalorder %v3110, %v4545
          %vm4559 = vcmp.eq.s32.totalorder %v3111, %v4545
          %vm4560 = vcmp.eq.s32.totalorder %v3112, %v4545
          %vm4561 = vcmp.eq.s32.totalorder %v3113, %v4545
          %vm4562 = vcmp.lt.s32.totalorder %v3098, 16
          %vm4563 = vcmp.lt.s32.totalorder %v3099, 16
          %vm4564 = vcmp.lt.s32.totalorder %v3100, 16
          %vm4565 = vcmp.lt.s32.totalorder %v3101, 16
          %vm4566 = vcmp.lt.s32.totalorder %v3102, 16
          %vm4567 = vcmp.lt.s32.totalorder %v3103, 16
          %vm4568 = vcmp.lt.s32.totalorder %v3104, 16
          %vm4569 = vcmp.lt.s32.totalorder %v3105, 16
          %vm4570 = vcmp.lt.s32.totalorder %v3106, 16
          %vm4571 = vcmp.lt.s32.totalorder %v3107, 16
          %vm4572 = vcmp.lt.s32.totalorder %v3108, 16
          %vm4573 = vcmp.lt.s32.totalorder %v3109, 16
          %vm4574 = vcmp.lt.s32.totalorder %v3110, 16
          %vm4575 = vcmp.lt.s32.totalorder %v3111, 16
          %vm4576 = vcmp.lt.s32.totalorder %v3112, 16
          %vm4577 = vcmp.lt.s32.totalorder %v3113, 16
          %vm4578 = vmand %vm4546, %vm4562
          %vm4579 = vmand %vm4547, %vm4563
          %vm4580 = vmand %vm4548, %vm4564
          %vm4581 = vmand %vm4549, %vm4565
          %vm4582 = vmand %vm4550, %vm4566
          %vm4583 = vmand %vm4551, %vm4567
          %vm4584 = vmand %vm4552, %vm4568
          %vm4585 = vmand %vm4553, %vm4569
          %vm4586 = vmand %vm4554, %vm4570
          %vm4587 = vmand %vm4555, %vm4571
          %vm4588 = vmand %vm4556, %vm4572
          %vm4589 = vmand %vm4557, %vm4573
          %vm4590 = vmand %vm4558, %vm4574
          %vm4591 = vmand %vm4559, %vm4575
          %vm4592 = vmand %vm4560, %vm4576
          %vm4593 = vmand %vm4561, %vm4577
          %v4594 = vsel %vm4578, 1, 0
          %v4595 = vsel %vm4579, 1, 0
          %v4596 = vsel %vm4580, 1, 0
          %v4597 = vsel %vm4581, 1, 0
          %v4598 = vsel %vm4582, 1, 0
          %v4599 = vsel %vm4583, 1, 0
          %v4600 = vsel %vm4584, 1, 0
          %v4601 = vsel %vm4585, 1, 0
          %v4602 = vsel %vm4586, 1, 0
          %v4603 = vsel %vm4587, 1, 0
          %v4604 = vsel %vm4588, 1, 0
          %v4605 = vsel %vm4589, 1, 0
          %v4606 = vsel %vm4590, 1, 0
          %v4607 = vsel %vm4591, 1, 0
          %v4608 = vsel %vm4592, 1, 0
          %v4609 = vsel %vm4593, 1, 0
          %v4610 = vcvt.s32.f32 %v4594
          %v4611 = vcvt.s32.f32 %v4595
          %v4612 = vcvt.s32.f32 %v4596
          %v4613 = vcvt.s32.f32 %v4597
          %v4614 = vcvt.s32.f32 %v4598
          %v4615 = vcvt.s32.f32 %v4599
          %v4616 = vcvt.s32.f32 %v4600
          %v4617 = vcvt.s32.f32 %v4601
          %v4618 = vcvt.s32.f32 %v4602
          %v4619 = vcvt.s32.f32 %v4603
          %v4620 = vcvt.s32.f32 %v4604
          %v4621 = vcvt.s32.f32 %v4605
          %v4622 = vcvt.s32.f32 %v4606
          %v4623 = vcvt.s32.f32 %v4607
          %v4624 = vcvt.s32.f32 %v4608
          %v4625 = vcvt.s32.f32 %v4609
          %v4626 = vld [vmem:[#allocation5] sm:$0x1]
          %v4627 = vld [vmem:[#allocation2] sm:$0xff]
          %v4628 = vld [vmem:[#allocation2 + $0x8] sm:$0xff]
          %v4629 = vld [vmem:[#allocation2 + $0x10] sm:$0xff]
          %v4630 = vld [vmem:[#allocation2 + $0x18] sm:$0xff]
          %v4631 = vld [vmem:[#allocation2 + $0x20] sm:$0xff]
          %v4632 = vld [vmem:[#allocation2 + $0x28] sm:$0xff]
          %v4633 = vld [vmem:[#allocation2 + $0x30] sm:$0xff]
          %v4634 = vld [vmem:[#allocation2 + $0x38] sm:$0xff]
          %v4635 = vld [vmem:[#allocation2 + $0x40] sm:$0xff]
          %v4636 = vld [vmem:[#allocation2 + $0x48] sm:$0xff]
          %v4637 = vld [vmem:[#allocation2 + $0x50] sm:$0xff]
          %v4638 = vld [vmem:[#allocation2 + $0x58] sm:$0xff]
          %v4639 = vld [vmem:[#allocation2 + $0x60] sm:$0xff]
          %v4640 = vld [vmem:[#allocation2 + $0x68] sm:$0xff]
          %v4641 = vld [vmem:[#allocation2 + $0x70] sm:$0xff]
          %v4642 = vld [vmem:[#allocation2 + $0x78] sm:$0xff]
          %v4643 = vmul.f32 %v4627, %v4627
          %v4644 = vmul.f32 %v4628, %v4628
          %v4645 = vmul.f32 %v4629, %v4629
          %v4646 = vmul.f32 %v4630, %v4630
          %v4647 = vmul.f32 %v4631, %v4631
          %v4648 = vmul.f32 %v4632, %v4632
          %v4649 = vmul.f32 %v4633, %v4633
          %v4650 = vmul.f32 %v4634, %v4634
          %v4651 = vmul.f32 %v4635, %v4635
          %v4652 = vmul.f32 %v4636, %v4636
          %v4653 = vmul.f32 %v4637, %v4637
          %v4654 = vmul.f32 %v4638, %v4638
          %v4655 = vmul.f32 %v4639, %v4639
          %v4656 = vmul.f32 %v4640, %v4640
          %v4657 = vmul.f32 %v4641, %v4641
          %v4658 = vmul.f32 %v4642, %v4642
          %v4659 = vadd.f32 %v4643, %v4644
          %v4660 = vadd.f32 %v4659, %v4645
          %v4661 = vadd.f32 %v4660, %v4646
          %v4662 = vadd.f32 %v4661, %v4647
          %v4663 = vadd.f32 %v4662, %v4648
          %v4664 = vadd.f32 %v4663, %v4649
          %v4665 = vadd.f32 %v4664, %v4650
          %v4666 = vadd.f32 %v4665, %v4651
          %v4667 = vadd.f32 %v4666, %v4652
          %v4668 = vadd.f32 %v4667, %v4653
          %v4669 = vadd.f32 %v4668, %v4654
          %v4670 = vadd.f32 %v4669, %v4655
          %v4671 = vadd.f32 %v4670, %v4656
          %v4672 = vadd.f32 %v4671, %v4657
          %v4673 = vadd.f32 %v4672, %v4658
          %4674 = vadd.xlane.f32.xlu0 %v4673
          %v4675 = vpop.xlane.xlu0 %4674
          %v4676 = vrot.slane %v4675, 4
          %v4677 = vadd.f32 %v4675, %v4676
          %v4678 = vrot.slane %v4677, 2
          %v4679 = vadd.f32 %v4677, %v4678
          %v4680 = vrot.slane %v4679, 1
          %v4681 = vadd.f32 %v4679, %v4680
          %s4682 = vtos %v4681
          %v4683 = vstv %s4682
          %v4684 = vrsqrt.pop %v4683
          %v4685 = vmul.f32 %v4683, %v4684
          %vm4686 = vcmp.eq.f32.partialorder %v4683, inf
          %v4687 = vsel %vm4686, %v4683, %v4685
          %vm4688 = vcmp.eq.f32.partialorder %v4683, 0.0
          %v4689 = vand.u32 %v4683, 2147483648
          %v4690 = vsel %vm4688, %v4689, %v4687
          %v4691 = vrcp.pop %v4690
          %v4692 = vmul.f32 %v4627, %v4691
          %v4693 = vmul.f32 %v4628, %v4691
          %v4694 = vmul.f32 %v4629, %v4691
          %v4695 = vmul.f32 %v4630, %v4691
          %v4696 = vmul.f32 %v4631, %v4691
          %v4697 = vmul.f32 %v4632, %v4691
          %v4698 = vmul.f32 %v4633, %v4691
          %v4699 = vmul.f32 %v4634, %v4691
          %v4700 = vmul.f32 %v4635, %v4691
          %v4701 = vmul.f32 %v4636, %v4691
          %v4702 = vmul.f32 %v4637, %v4691
          %v4703 = vmul.f32 %v4638, %v4691
          %v4704 = vmul.f32 %v4639, %v4691
          %v4705 = vmul.f32 %v4640, %v4691
          %v4706 = vmul.f32 %v4641, %v4691
          %v4707 = vmul.f32 %v4642, %v4691
          %v4708 = vmul.f32 %v4610, 0.25
          %v4709 = vmul.f32 %v4611, 0.25
          %v4710 = vmul.f32 %v4612, 0.25
          %v4711 = vmul.f32 %v4613, 0.25
          %v4712 = vmul.f32 %v4614, 0.25
          %v4713 = vmul.f32 %v4615, 0.25
          %v4714 = vmul.f32 %v4616, 0.25
          %v4715 = vmul.f32 %v4617, 0.25
          %v4716 = vmul.f32 %v4618, 0.25
          %v4717 = vmul.f32 %v4619, 0.25
          %v4718 = vmul.f32 %v4620, 0.25
          %v4719 = vmul.f32 %v4621, 0.25
          %v4720 = vmul.f32 %v4622, 0.25
          %v4721 = vmul.f32 %v4623, 0.25
          %v4722 = vmul.f32 %v4624, 0.25
          %v4723 = vmul.f32 %v4625, 0.25
          %v4724 = vsub.f32 %v4692, %v4708
          %v4725 = vsub.f32 %v4693, %v4709
          %v4726 = vsub.f32 %v4694, %v4710
          %v4727 = vsub.f32 %v4695, %v4711
          %v4728 = vsub.f32 %v4696, %v4712
          %v4729 = vsub.f32 %v4697, %v4713
          %v4730 = vsub.f32 %v4698, %v4714
          %v4731 = vsub.f32 %v4699, %v4715
          %v4732 = vsub.f32 %v4700, %v4716
          %v4733 = vsub.f32 %v4701, %v4717
          %v4734 = vsub.f32 %v4702, %v4718
          %v4735 = vsub.f32 %v4703, %v4719
          %v4736 = vsub.f32 %v4704, %v4720
          %v4737 = vsub.f32 %v4705, %v4721
          %v4738 = vsub.f32 %v4706, %v4722
          %v4739 = vsub.f32 %v4707, %v4723
          %v4740 = vmul.f32 %v4724, %v4724
          %v4741 = vmul.f32 %v4725, %v4725
          %v4742 = vmul.f32 %v4726, %v4726
          %v4743 = vmul.f32 %v4727, %v4727
          %v4744 = vmul.f32 %v4728, %v4728
          %v4745 = vmul.f32 %v4729, %v4729
          %v4746 = vmul.f32 %v4730, %v4730
          %v4747 = vmul.f32 %v4731, %v4731
          %v4748 = vmul.f32 %v4732, %v4732
          %v4749 = vmul.f32 %v4733, %v4733
          %v4750 = vmul.f32 %v4734, %v4734
          %v4751 = vmul.f32 %v4735, %v4735
          %v4752 = vmul.f32 %v4736, %v4736
          %v4753 = vmul.f32 %v4737, %v4737
          %v4754 = vmul.f32 %v4738, %v4738
          %v4755 = vmul.f32 %v4739, %v4739
          %v4756 = vadd.f32 %v4740, %v4741
          %v4757 = vadd.f32 %v4756, %v4742
          %v4758 = vadd.f32 %v4757, %v4743
          %v4759 = vadd.f32 %v4758, %v4744
          %v4760 = vadd.f32 %v4759, %v4745
          %v4761 = vadd.f32 %v4760, %v4746
          %v4762 = vadd.f32 %v4761, %v4747
          %v4763 = vadd.f32 %v4762, %v4748
          %v4764 = vadd.f32 %v4763, %v4749
          %v4765 = vadd.f32 %v4764, %v4750
          %v4766 = vadd.f32 %v4765, %v4751
          %v4767 = vadd.f32 %v4766, %v4752
          %v4768 = vadd.f32 %v4767, %v4753
          %v4769 = vadd.f32 %v4768, %v4754
          %v4770 = vadd.f32 %v4769, %v4755
          %4771 = vadd.xlane.f32.xlu0 %v4770
          %v4772 = vpop.xlane.xlu0 %4771
          %v4773 = vrot.slane %v4772, 4
          %v4774 = vadd.f32 %v4772, %v4773
          %v4775 = vrot.slane %v4774, 2
          %v4776 = vadd.f32 %v4774, %v4775
          %v4777 = vrot.slane %v4776, 1
          %v4778 = vadd.f32 %v4776, %v4777
          %s4779 = vtos %v4778
          %v4780 = vstv %s4779
          %v4781 = vrsqrt.pop %v4780
          %v4782 = vmul.f32 %v4780, %v4781
          %vm4783 = vcmp.eq.f32.partialorder %v4780, inf
          %v4784 = vsel %vm4783, %v4780, %v4782
          %vm4785 = vcmp.eq.f32.partialorder %v4780, 0.0
          %v4786 = vand.u32 %v4780, 2147483648
          %v4787 = vsel %vm4785, %v4786, %v4784
          %v4788 = vld [vmem:[#allocation4] sm:$0x1]
          %v4789 = vmul.f32 %v4788, %v4788
          %vm4790 = vcmask 1040384
          %v4791 = vsel %vm4790, %v4789, 0.0
          %4792 = vadd.xlane.f32.xlu0 %v4791
          %v4793 = vpop.xlane.xlu0 %4792
          %v4794 = vrot.slane %v4793, 4
          %v4795 = vadd.f32 %v4793, %v4794
          %v4796 = vrot.slane %v4795, 2
          %v4797 = vadd.f32 %v4795, %v4796
          %v4798 = vrot.slane %v4797, 1
          %v4799 = vadd.f32 %v4797, %v4798
          %s4800 = vtos %v4799
          %v4801 = vstv %s4800
          %v4802 = vrsqrt.pop %v4801
          %v4803 = vmul.f32 %v4801, %v4802
          %vm4804 = vcmp.eq.f32.partialorder %v4801, inf
          %v4805 = vsel %vm4804, %v4801, %v4803
          %vm4806 = vcmp.eq.f32.partialorder %v4801, 0.0
          %v4807 = vand.u32 %v4801, 2147483648
          %v4808 = vsel %vm4806, %v4807, %v4805
          %v4809 = vmul.f32 %v4808, 0.010416667
          %v4810 = vsub.f32 %v4809, 1.0
          %v4811 = vld [vmem:[#allocation3] sm:$0x1]
          %v4812 = vmul.f32 %v4811, %v4811
          %v4813 = vsel %vm4790, %v4812, 0.0
          %4814 = vadd.xlane.f32.xlu0 %v4813
          %v4815 = vpop.xlane.xlu0 %4814
          %v4816 = vrot.slane %v4815, 4
          %v4817 = vadd.f32 %v4815, %v4816
          %v4818 = vrot.slane %v4817, 2
          %v4819 = vadd.f32 %v4817, %v4818
          %v4820 = vrot.slane %v4819, 1
          %v4821 = vadd.f32 %v4819, %v4820
          %s4822 = vtos %v4821
          %v4823 = vstv %s4822
          %v4824 = vrcp.pop %v4626
          %v4825 = vmul.f32 %v4823, %v4824
          %vm4826 = vcmp.eq.s32.totalorder %v4545, 0
          %v4827 = vsel %vm4826, 1, 0
          %v4828 = vcvt.s32.f32 %v4827
          %v4829 = vmul.f32 %v4787, %v4828
          %vm4830 = vcmp.eq.s32.totalorder %v4545, 1
          %v4831 = vsel %vm4830, 1, 0
          %v4832 = vcvt.s32.f32 %v4831
          %v4833 = vmul.f32 %v4810, %v4832
          %v4834 = vadd.f32 %v4829, %v4833
          %vm4835 = vcmp.eq.s32.totalorder %v4545, 2
          %v4836 = vsel %vm4835, 1, 0
          %v4837 = vcvt.s32.f32 %v4836
          %4839 = vset.pattern.permute.xlu0 0
          %4840 = vperm.xlu0 %4839, %v4825
          %v4841 = vpop.permute.xlu0 %4840
          %v4843 = vlaneseq
          %v4844 = vshrl.u32 %v4843, 7
          %v4845 = vsub.s32 0, %v4844
          %v4846 = vrot.slane %v4841, %v4845
          %v4847 = vmul.f32 %v4846, %v4837
          %v4848 = vadd.f32 %v4834, %v4847
          %vm4849 = vcmp.eq.s32.totalorder %v4545, 3
          %v4850 = vsel %vm4849, 1, 0
          %v4851 = vcvt.s32.f32 %v4850
          %4853 = vset.pattern.permute.xlu0 0
          %4854 = vperm.xlu0 %4853, %v4626
          %v4855 = vpop.permute.xlu0 %4854
          %v4857 = vlaneseq
          %v4858 = vshrl.u32 %v4857, 7
          %v4859 = vsub.s32 0, %v4858
          %v4860 = vrot.slane %v4855, %v4859
          %v4861 = vmul.f32 %v4860, %v4851
          %v4862 = vadd.f32 %v4848, %v4861
          %4863 = vst [vmem:[#allocation10] sm:$0x1] %v4862
        $region60: #{tpu_custom_call.1} parent=51 // pred_fallthru
          _
        %s4864 = sand.u32 %s222, 1
        %s4865 = scalar_lea.sflag [#allocation7], %s4864
        %s4866 = sand.u32 %s222, 1
        %s4867 = smul.addr %s4866, 128
        %s4868 = scalar_lea.vmem [#allocation6], %s4867
        // Predicated region
        $region61: #{tpu_custom_call.1} parent=51 // pred_check
          %p4869 = pneg %p232
        $region62: #{tpu_custom_call.1} parent=51 // pred_check_branch
          %4871 = sbr.rel (%p4869) target = $region64
        $region63: #{tpu_custom_call.1} parent=51 // pred_region
          %s4872 = smul.u32 32, %s26
          %s4874 = ssub.s32 2048, 2048
          %4875 = vsyncadd %s4865, %s4874
          %s4876 = smul.addr %s4872, 64
          %s4877 = scalar_lea.hbm %s8, %s4876
          %s4878 = sshll.u32 %s4868, 4
          %s4879 = int_to_ptr.vmem [resolvable:$true] %s4878
          %4884 = dma.vmem_to_hbm [thread:$0]  %s4879, 2048, %s4877, %s4865, 64, 64, 4
        $region64: #{tpu_custom_call.1} parent=51 // pred_fallthru
          _
        // Predicated region
        $region65: #{tpu_custom_call.1} parent=51 // pred_check
          %p4885 = pneg %p253
        $region66: #{tpu_custom_call.1} parent=51 // pred_check_branch
          %4887 = sbr.rel (%p4885) target = $region68
        $region67: #{tpu_custom_call.1} parent=51 // pred_region
          %s4889 = ssub.s32 8192, 8192
          %4890 = vsyncadd [#allocation9], %s4889
          %s4891 = sshll.u32 [#allocation8], 4
          %s4892 = int_to_ptr.vmem [resolvable:$true] %s4891
          %4897 = dma.vmem_to_hbm [thread:$0]  %s4892, 8192, %s9, [#allocation9], 512, 512, 32
        $region68: #{tpu_custom_call.1} parent=51 // pred_fallthru
          _
        // Predicated region
        $region69: #{tpu_custom_call.1} parent=51 // pred_check
          %p4898 = pneg %p274
        $region70: #{tpu_custom_call.1} parent=51 // pred_check_branch
          %4900 = sbr.rel (%p4898) target = $region72
        $region71: #{tpu_custom_call.1} parent=51 // pred_region
          %s4902 = ssub.s32 16, 16
          %4903 = vsyncadd [#allocation9], %s4902
          %s4905 = sshll.u32 [#allocation10], 4
          %s4906 = int_to_ptr.vmem [resolvable:$true] %s4905
          %4908 = dma.vmem_to_hbm [thread:$0]  %s4906, 16, %s10, [#allocation9]
        $region72: #{tpu_custom_call.1} parent=51 // pred_fallthru
          _
        // Predicated region
        $region73: #{tpu_custom_call.1} parent=51 // pred_check
          %p4909 = pneg %p253
        $region74: #{tpu_custom_call.1} parent=51 // pred_check_branch
          %4911 = sbr.rel (%p4909) target = $region76
        $region75: #{tpu_custom_call.1} parent=51 // pred_region
          %4912 = dma.done [#allocation9], 8192
        $region76: #{tpu_custom_call.1} parent=51 // pred_fallthru
          _
        // Predicated region
        $region77: #{tpu_custom_call.1} parent=51 // pred_check
          %p4913 = pneg %p274
        $region78: #{tpu_custom_call.1} parent=51 // pred_check_branch
          %4915 = sbr.rel (%p4913) target = $region80
        $region79: #{tpu_custom_call.1} parent=51 // pred_region
          %4916 = dma.done [#allocation9], 16
        $region80: #{tpu_custom_call.1} parent=51 // pred_fallthru
          _
      $region52: #{tpu_custom_call.1} parent=5 // pred_fallthru
        _
      %p4917 = scmp.le.s32.totalorder 2, %s21
      // Predicated region
      $region81: #{tpu_custom_call.1} parent=5 // pred_check
        %p4918 = pneg %p4917
      $region82: #{tpu_custom_call.1} parent=5 // pred_check_branch
        %4920 = sbr.rel (%p4918) target = $region84
      $region83: #{tpu_custom_call.1} parent=5 // pred_region
        %s4921 = ssub.s32 %s21, 2
        // Predicated region
        $region85: #{tpu_custom_call.1} parent=83 // pred_check
          %p4922 = pneg %p238
        $region86: #{tpu_custom_call.1} parent=83 // pred_check_branch
          %4924 = sbr.rel (%p4922) target = $region88
        $region87: #{tpu_custom_call.1} parent=83 // pred_region
          %s4925 = sand.u32 %s223, 1
          %s4926 = scalar_lea.sflag [#allocation7], %s4925
          %s4927 = sand.u32 %s223, 1
          %s4928 = smul.addr %s4927, 128
          %s4929 = scalar_lea.vmem [#allocation6], %s4928
          %4930 = dma.done %s4926, 2048
        $region88: #{tpu_custom_call.1} parent=83 // pred_fallthru
          _
      $region84: #{tpu_custom_call.1} parent=5 // pred_fallthru
        _
    $region6: #{tpu_custom_call.1} parent=1 // loop_footer
      %s25 = sadd.s32 1, %s21
    $region7: #{tpu_custom_call.1} parent=1 // loop_footer_branch
      %20 = sbr.rel target = $region3
    $region8: #{tpu_custom_call.1} parent=1 // loop_exit
      _
    %4931 = vsyncpa [#allocation7], 1
    %s4932 = scalar_lea.sflag [#allocation7], 1
    %4933 = vsyncpa %s4932, 1
    %4934 = vsyncpa [#allocation9], 1

</llo_original>
